<compile_context>
chip_gen: v5e
topology: v5e:2x2
jax: 0.10.0
libtpu: 0.0.40
codegen_flags: <defaults>
</compile_context>

<pallas_src>
import functools

import jax
import jax.numpy as jnp
from jax import lax
from jax.experimental import pallas as pl
from jax.experimental.pallas import tpu as pltpu

LRELU_SLOPE = 0.1
_PAD = 8  # left/right zero padding (rows) of the VMEM input scratch; needs d < _PAD


def _leaky_relu(x):
    return jnp.where(x >= 0, x, LRELU_SLOPE * x)


# ------------------------------ Pallas kernel --------------------------------

def _res_stage_kernel(x_ref, w1_ref, b1_ref, w2_ref, b2_ref, o_ref,
                      xs_ref, h_ref, *, d, lt):
    # x_ref : (L, C)        full channels-last input of this batch (VMEM resident)
    # w*_ref: (3, C, C)     per-tap weight matrices (bf16), w[k][cin, cout]
    # b*_ref: (1, C)        biases (f32)
    # o_ref : (lt, C)       output tile
    # xs_ref: (L+2*_PAD, C) scratch: zero-padded LeakyReLU(x), filled at tile 0
    # h_ref : (lt+8, C)     scratch: conv1 activation over the haloed tile
    L, C = x_ref.shape
    i = pl.program_id(1)

    # --- once per batch: build the padded, pre-activated conv1 input in VMEM ---
    @pl.when(i == 0)
    def _():
        xs_ref[pl.ds(0, _PAD), :] = jnp.zeros((_PAD, C), jnp.float32)
        xs_ref[pl.ds(_PAD + L, _PAD), :] = jnp.zeros((_PAD, C), jnp.float32)

        def _fill(j, carry):
            off = j * lt
            if lt % 8 == 0:
                off = pl.multiple_of(off, 8)
            xs_ref[pl.ds(_PAD + off, lt), :] = _leaky_relu(x_ref[pl.ds(off, lt), :])
            return carry

        lax.fori_loop(0, L // lt, _fill, 0)

    base = i * lt
    if lt % 8 == 0:
        base = pl.multiple_of(base, 8)

    # --- conv1 (dilation d) over the haloed tile rows [base-1, base+lt+1) -----
    acc1 = jnp.zeros((lt + 2, C), jnp.float32)
    for k in range(3):
        start = base + (_PAD - 1) + (k - 1) * d
        xs = xs_ref[pl.ds(start, lt + 2), :]
        acc1 = acc1 + jnp.dot(xs.astype(jnp.bfloat16), w1_ref[k],
                              preferred_element_type=jnp.float32)
    h = _leaky_relu(acc1 + b1_ref[...])
    # Halo rows whose position falls outside [0, L) are conv2's zero padding.
    pos = base - 1 + lax.broadcasted_iota(jnp.int32, (lt + 2, 1), 0)
    h = jnp.where((pos >= 0) & (pos < L), h, 0.0)
    h_ref[pl.ds(0, lt + 2), :] = h

    # --- conv2 (dilation 1) + bias + fused residual ---------------------------
    acc2 = jnp.zeros((lt, C), jnp.float32)
    for k in range(3):
        hk = h_ref[pl.ds(k, lt), :]
        acc2 = acc2 + jnp.dot(hk.astype(jnp.bfloat16), w2_ref[k],
                              preferred_element_type=jnp.float32)
    out = acc2 + b2_ref[...] + x_ref[pl.ds(base, lt), :]
    o_ref[...] = out.astype(o_ref.dtype)


def _pick_l_tile(length):
    for cand in (256, 128, 64, 32, 16, 8):
        if length % cand == 0 and length // cand >= 2:
            return cand
    return length


def res_stage(x_blc, w1, b1, w2, b2, *, dilation, l_tile=None):
    """One fused ResBlock1 stage on a channels-last (B, L, C) input.

    Computes conv2(lrelu(conv1(lrelu(x)) + b1)) + b2 + x with K=3 'same' convs.
    w1, w2 are PyTorch Conv1d weights (Cout, Cin, K); b1, b2 are (C,).
    """
    B, L, C = x_blc.shape
    for w in (w1, w2):
        co, ci, k = w.shape
        assert co == C and ci == C and k == 3
    assert 1 <= dilation <= _PAD - 1

    lt = l_tile if l_tile is not None else _pick_l_tile(L)
    assert L % lt == 0
    n_lt = L // lt

    w1k = jnp.transpose(w1, (2, 1, 0)).astype(jnp.bfloat16)  # (K, Cin, Cout)
    w2k = jnp.transpose(w2, (2, 1, 0)).astype(jnp.bfloat16)
    b1r = b1.reshape(1, C).astype(jnp.float32)
    b2r = b2.reshape(1, C).astype(jnp.float32)

    kern = functools.partial(_res_stage_kernel, d=dilation, lt=lt)

    flops = 2 * (2 * B * L * C * C * 3)                       # two K=3 convs
    bytes_accessed = (2 * B * L * C * 4                        # x read + out write
                      + (w1k.size + w2k.size) * 2
                      + (b1r.size + b2r.size) * 4)
    cost = pl.CostEstimate(flops=int(flops), transcendentals=0,
                           bytes_accessed=int(bytes_accessed))

    return pl.pallas_call(
        kern,
        out_shape=jax.ShapeDtypeStruct((B, L, C), x_blc.dtype),
        grid=(B, n_lt),
        in_specs=[
            # Whole sequence of batch b; block index is constant across the
            # L-tile axis, so it is DMA'd once per batch and stays resident.
            pl.BlockSpec((None, L, C), lambda b, i: (b, 0, 0)),
            pl.BlockSpec((3, C, C), lambda b, i: (0, 0, 0)),
            pl.BlockSpec((1, C), lambda b, i: (0, 0)),
            pl.BlockSpec((3, C, C), lambda b, i: (0, 0, 0)),
            pl.BlockSpec((1, C), lambda b, i: (0, 0)),
        ],
        out_specs=pl.BlockSpec((None, lt, C), lambda b, i: (b, i, 0)),
        scratch_shapes=[
            pltpu.VMEM((L + 2 * _PAD, C), jnp.float32),   # padded lrelu(x)
            pltpu.VMEM((lt + 8, C), jnp.float32),         # conv1 activation tile
        ],
        compiler_params=pltpu.CompilerParams(
            dimension_semantics=("parallel", "arbitrary")),
        cost_estimate=cost,
    )(x_blc, w1k, b1r, w2k, b2r)


# ------------------------------ ResBlock1 model ------------------------------

def init_params(key, channels, kernel_size=3):
    # weight_norm is a pure reparameterization; forward math equals plain Conv1d.
    params = []
    fan_in = channels * kernel_size
    for i in range(3):
        pair = []
        for j in range(2):
            kw, kb = jax.random.split(jax.random.fold_in(key, 10 * i + j))
            w = jax.random.normal(kw, (channels, channels, kernel_size),
                                  jnp.float32) / jnp.sqrt(fan_in)
            b = 0.1 * jax.random.normal(kb, (channels,), jnp.float32)
            pair.append((w, b))
        params.append(tuple(pair))
    return params


def resblock1_forward(params, x_ncl, dilations=(1, 3, 5)):
    # x_ncl: (B, C, T) like PyTorch. Kernels run channels-last internally.
    x = jnp.transpose(x_ncl, (0, 2, 1))  # (B, T, C)
    for ((w1, b1), (w2, b2)), d in zip(params, dilations):
        x = res_stage(x, w1, b1, w2, b2, dilation=d)
    return jnp.transpose(x, (0, 2, 1))   # back to (B, C, T)


# -------------------------------- reference ----------------------------------

def reference_forward(params, x_ncl, dilations=(1, 3, 5)):
    x = x_ncl
    for ((w1, b1), (w2, b2)), d in zip(params, dilations):
        xt = jnp.where(x >= 0, x, LRELU_SLOPE * x)
        xt = lax.conv_general_dilated(
            xt, w1, (1,), [(d, d)], rhs_dilation=(d,),
            dimension_numbers=("NCH", "OIH", "NCH"))
        xt = xt + b1[None, :, None]
        xt = jnp.where(xt >= 0, xt, LRELU_SLOPE * xt)
        xt = lax.conv_general_dilated(
            xt, w2, (1,), [(1, 1)], rhs_dilation=(1,),
            dimension_numbers=("NCH", "OIH", "NCH"))
        xt = xt + b2[None, :, None]
        x = xt + x
    return x


# ----------------------------------- main -------------------------------------

if __name__ == "__main__":
    key = jax.random.PRNGKey(0)
    B, C, T = 2, 128, 256  # C=128 keeps output blocks lane-dense (128-lane vregs)
    params = init_params(key, channels=C)
    x = jax.random.normal(jax.random.fold_in(key, 999), (B, C, T), jnp.float32)

    fwd = jax.jit(resblock1_forward)
    y = jax.block_until_ready(fwd(params, x))

    y_ref = reference_forward(params, x)
    assert y.shape == y_ref.shape == (B, C, T), (y.shape, y_ref.shape)
    # bf16 dot operands with f32 accumulation -> loose-ish tolerance.
    assert jnp.allclose(y, y_ref, rtol=5e-2, atol=5e-2), \
        float(jnp.max(jnp.abs(y - y_ref)))

    print("KERNEL_OK")
</pallas_src>

<mosaic_0001>
module attributes {stable_mosaic.version = 11 : i64} {
  func.func @_res_stage_kernel(%arg0: i32, %arg1: i32, %arg2: memref<1x256x128xf32, #tpu.memory_space<vmem>>, %arg3: memref<3x128x128xbf16, #tpu.memory_space<vmem>>, %arg4: memref<1x128xf32, #tpu.memory_space<vmem>>, %arg5: memref<3x128x128xbf16, #tpu.memory_space<vmem>>, %arg6: memref<1x128xf32, #tpu.memory_space<vmem>>, %arg7: memref<1x128x128xf32, #tpu.memory_space<vmem>>, %arg8: memref<272x128xf32, #tpu.memory_space<vmem>>, %arg9: memref<136x128xf32, #tpu.memory_space<vmem>>) attributes {dimension_semantics = [#tpu.dimension_semantics<parallel>, #tpu.dimension_semantics<arbitrary>], iteration_bounds = array<i64: 2, 2>, scalar_prefetch = 0 : i64, scratch_operands = 2 : i64, tpu.core_type = #tpu.core_type<tc>, window_params = [{transform_indices = @transform_0, window_bounds = array<i64: 1, 256, 128>}, {pipeline_mode = #tpu.pipeline_mode<synchronous>, transform_indices = @transform_1, window_bounds = array<i64: 3, 128, 128>}, {pipeline_mode = #tpu.pipeline_mode<synchronous>, transform_indices = @transform_2, window_bounds = array<i64: 1, 128>}, {pipeline_mode = #tpu.pipeline_mode<synchronous>, transform_indices = @transform_3, window_bounds = array<i64: 3, 128, 128>}, {pipeline_mode = #tpu.pipeline_mode<synchronous>, transform_indices = @transform_4, window_bounds = array<i64: 1, 128>}, {transform_indices = @transform_5, window_bounds = array<i64: 1, 128, 128>}]} {
    %c0_i32 = arith.constant 0 : i32
    %0 = arith.cmpi eq, %arg1, %c0_i32 : i32
    %1 = arith.extui %0 : i1 to i32
    %c0_i32_0 = arith.constant 0 : i32
    %2 = arith.cmpi ne, %1, %c0_i32_0 : i32
    scf.if %2 {
      %cst_51 = arith.constant 0.000000e+00 : f32
      %84 = vector.broadcast %cst_51 : f32 to vector<8x128xf32>
      %c0_52 = arith.constant 0 : index
      %c0_53 = arith.constant 0 : index
      %85 = vector.load %arg8[%c0_52, %c0_53] : memref<272x128xf32, #tpu.memory_space<vmem>>, vector<8x128xf32>
      tpu.vector_store %arg8[%c0_52, %c0_53], %84 {strides = array<i32>} : memref<272x128xf32, #tpu.memory_space<vmem>>, vector<8x128xf32>,
      %cst_54 = arith.constant 0.000000e+00 : f32
      %86 = vector.broadcast %cst_54 : f32 to vector<8x128xf32>
      %c264 = arith.constant 264 : index
      %c0_55 = arith.constant 0 : index
      %87 = vector.load %arg8[%c264, %c0_55] : memref<272x128xf32, #tpu.memory_space<vmem>>, vector<8x128xf32>
      tpu.vector_store %arg8[%c264, %c0_55], %86 {strides = array<i32>} : memref<272x128xf32, #tpu.memory_space<vmem>>, vector<8x128xf32>,
      %c0_i32_56 = arith.constant 0 : i32
      %c2_i32 = arith.constant 2 : i32
      %88 = arith.addi %c0_i32_56, %c2_i32 : i32
      %c1_i32_57 = arith.constant 1 : i32
      scf.for %arg10 = %c0_i32_56 to %88 step %c1_i32_57  : i32 {
        %c128_i32_59 = arith.constant 128 : i32
        %89 = arith.muli %arg10, %c128_i32_59 : i32
        %90 = tpu.assume_multiple %89, 8 : i32
        %c0_60 = arith.constant 0 : index
        %91 = arith.index_cast %90 : i32 to index
        %c0_61 = arith.constant 0 : index
        %92 = vector.load %arg2[%c0_60, %91, %c0_61] : memref<1x256x128xf32, #tpu.memory_space<vmem>>, vector<1x128x128xf32>
        %93 = vector.shape_cast %92 : vector<1x128x128xf32> to vector<128x128xf32>
        %cst_62 = arith.constant 0.000000e+00 : f32
        %94 = vector.broadcast %cst_62 : f32 to vector<128x128xf32>
        %95 = arith.cmpf oge, %93, %94 : vector<128x128xf32>
        %cst_63 = arith.constant 1.000000e-01 : f32
        %96 = vector.broadcast %cst_63 : f32 to vector<128x128xf32>
        %97 = arith.mulf %96, %93 : vector<128x128xf32>
        %98 = arith.select %95, %93, %97 : vector<128x128xi1>, vector<128x128xf32>
        %c8_i32 = arith.constant 8 : i32
        %99 = arith.addi %c8_i32, %90 : i32
        %100 = arith.index_cast %99 : i32 to index
        %c0_64 = arith.constant 0 : index
        %101 = vector.load %arg8[%100, %c0_64] : memref<272x128xf32, #tpu.memory_space<vmem>>, vector<128x128xf32>
        tpu.vector_store %arg8[%100, %c0_64], %98 {strides = array<i32>} : memref<272x128xf32, #tpu.memory_space<vmem>>, vector<128x128xf32>,
      }
      %c2_i32_58 = arith.constant 2 : i32
    } else {
    }
    %c128_i32 = arith.constant 128 : i32
    %3 = arith.muli %arg1, %c128_i32 : i32
    %4 = tpu.assume_multiple %3, 8 : i32
    %cst = arith.constant 0.000000e+00 : f32
    %5 = vector.broadcast %cst : f32 to vector<130x128xf32>
    %c7_i32 = arith.constant 7 : i32
    %6 = arith.addi %4, %c7_i32 : i32
    %c-1_i32 = arith.constant -1 : i32
    %7 = arith.addi %6, %c-1_i32 : i32
    %8 = arith.index_cast %7 : i32 to index
    %c0 = arith.constant 0 : index
    %9 = vector.load %arg8[%8, %c0] : memref<272x128xf32, #tpu.memory_space<vmem>>, vector<130x128xf32>
    %10 = arith.truncf %9 : vector<130x128xf32> to vector<130x128xbf16>
    %c0_1 = arith.constant 0 : index
    %c0_2 = arith.constant 0 : index
    %c0_3 = arith.constant 0 : index
    %11 = vector.load %arg3[%c0_1, %c0_2, %c0_3] : memref<3x128x128xbf16, #tpu.memory_space<vmem>>, vector<1x128x128xbf16>
    %12 = vector.shape_cast %11 : vector<1x128x128xbf16> to vector<128x128xbf16>
    %cst_4 = arith.constant dense<0.000000e+00> : vector<130x128xf32>
    %13 = tpu.matmul %10, %12, %cst_4 {dimension_numbers = #tpu.dot_dimension_numbers<[1], [0], [0], [1], [0, 0, 1, 1], [], []>} : vector<130x128xbf16>, vector<128x128xbf16>, vector<130x128xf32> -> vector<130x128xf32>
    %14 = arith.addf %5, %13 : vector<130x128xf32>
    %c7_i32_5 = arith.constant 7 : i32
    %15 = arith.addi %4, %c7_i32_5 : i32
    %c0_i32_6 = arith.constant 0 : i32
    %16 = arith.addi %15, %c0_i32_6 : i32
    %17 = arith.index_cast %16 : i32 to index
    %c0_7 = arith.constant 0 : index
    %18 = vector.load %arg8[%17, %c0_7] : memref<272x128xf32, #tpu.memory_space<vmem>>, vector<130x128xf32>
    %19 = arith.truncf %18 : vector<130x128xf32> to vector<130x128xbf16>
    %c1 = arith.constant 1 : index
    %c0_8 = arith.constant 0 : index
    %c0_9 = arith.constant 0 : index
    %20 = vector.load %arg3[%c1, %c0_8, %c0_9] : memref<3x128x128xbf16, #tpu.memory_space<vmem>>, vector<1x128x128xbf16>
    %21 = vector.shape_cast %20 : vector<1x128x128xbf16> to vector<128x128xbf16>
    %cst_10 = arith.constant dense<0.000000e+00> : vector<130x128xf32>
    %22 = tpu.matmul %19, %21, %cst_10 {dimension_numbers = #tpu.dot_dimension_numbers<[1], [0], [0], [1], [0, 0, 1, 1], [], []>} : vector<130x128xbf16>, vector<128x128xbf16>, vector<130x128xf32> -> vector<130x128xf32>
    %23 = arith.addf %14, %22 : vector<130x128xf32>
    %c7_i32_11 = arith.constant 7 : i32
    %24 = arith.addi %4, %c7_i32_11 : i32
    %c1_i32 = arith.constant 1 : i32
    %25 = arith.addi %24, %c1_i32 : i32
    %26 = arith.index_cast %25 : i32 to index
    %c0_12 = arith.constant 0 : index
    %27 = vector.load %arg8[%26, %c0_12] : memref<272x128xf32, #tpu.memory_space<vmem>>, vector<130x128xf32>
    %28 = arith.truncf %27 : vector<130x128xf32> to vector<130x128xbf16>
    %c2 = arith.constant 2 : index
    %c0_13 = arith.constant 0 : index
    %c0_14 = arith.constant 0 : index
    %29 = vector.load %arg3[%c2, %c0_13, %c0_14] : memref<3x128x128xbf16, #tpu.memory_space<vmem>>, vector<1x128x128xbf16>
    %30 = vector.shape_cast %29 : vector<1x128x128xbf16> to vector<128x128xbf16>
    %cst_15 = arith.constant dense<0.000000e+00> : vector<130x128xf32>
    %31 = tpu.matmul %28, %30, %cst_15 {dimension_numbers = #tpu.dot_dimension_numbers<[1], [0], [0], [1], [0, 0, 1, 1], [], []>} : vector<130x128xbf16>, vector<128x128xbf16>, vector<130x128xf32> -> vector<130x128xf32>
    %32 = arith.addf %23, %31 : vector<130x128xf32>
    %c0_16 = arith.constant 0 : index
    %c0_17 = arith.constant 0 : index
    %33 = vector.load %arg4[%c0_16, %c0_17] : memref<1x128xf32, #tpu.memory_space<vmem>>, vector<1x128xf32>
    %34 = vector.broadcast %33 : vector<1x128xf32> to vector<130x128xf32>
    %35 = arith.addf %32, %34 : vector<130x128xf32>
    %cst_18 = arith.constant 0.000000e+00 : f32
    %36 = vector.broadcast %cst_18 : f32 to vector<130x128xf32>
    %37 = arith.cmpf oge, %35, %36 : vector<130x128xf32>
    %cst_19 = arith.constant 1.000000e-01 : f32
    %38 = vector.broadcast %cst_19 : f32 to vector<130x128xf32>
    %39 = arith.mulf %38, %35 : vector<130x128xf32>
    %40 = arith.select %37, %35, %39 : vector<130x128xi1>, vector<130x128xf32>
    %c1_i32_20 = arith.constant 1 : i32
    %41 = arith.subi %4, %c1_i32_20 : i32
    %42 = tpu.iota {dimensions = array<i32: 0>} : vector<130x1xi32>
    %43 = vector.broadcast %41 : i32 to vector<130x1xi32>
    %44 = arith.addi %43, %42 : vector<130x1xi32>
    %c0_i32_21 = arith.constant 0 : i32
    %45 = vector.broadcast %c0_i32_21 : i32 to vector<130x1xi32>
    %46 = arith.cmpi sge, %44, %45 : vector<130x1xi32>
    %c256_i32 = arith.constant 256 : i32
    %47 = vector.broadcast %c256_i32 : i32 to vector<130x1xi32>
    %48 = arith.cmpi slt, %44, %47 : vector<130x1xi32>
    %49 = arith.andi %46, %48 : vector<130x1xi1>
    %cst_22 = arith.constant 0.000000e+00 : f32
    %50 = vector.shape_cast %49 : vector<130x1xi1> to vector<130x1xi1>
    %51 = vector.broadcast %50 : vector<130x1xi1> to vector<130x128xi1>
    %52 = vector.broadcast %cst_22 : f32 to vector<130x128xf32>
    %53 = arith.select %51, %40, %52 : vector<130x128xi1>, vector<130x128xf32>
    %c0_23 = arith.constant 0 : index
    %c0_24 = arith.constant 0 : index
    %54 = vector.load %arg9[%c0_23, %c0_24] : memref<136x128xf32, #tpu.memory_space<vmem>>, vector<130x128xf32>
    tpu.vector_store %arg9[%c0_23, %c0_24], %53 {strides = array<i32>} : memref<136x128xf32, #tpu.memory_space<vmem>>, vector<130x128xf32>,
    %cst_25 = arith.constant 0.000000e+00 : f32
    %55 = vector.broadcast %cst_25 : f32 to vector<128x128xf32>
    %c0_26 = arith.constant 0 : index
    %c0_27 = arith.constant 0 : index
    %56 = vector.load %arg9[%c0_26, %c0_27] : memref<136x128xf32, #tpu.memory_space<vmem>>, vector<128x128xf32>
    %57 = arith.truncf %56 : vector<128x128xf32> to vector<128x128xbf16>
    %c0_28 = arith.constant 0 : index
    %c0_29 = arith.constant 0 : index
    %c0_30 = arith.constant 0 : index
    %58 = vector.load %arg5[%c0_28, %c0_29, %c0_30] : memref<3x128x128xbf16, #tpu.memory_space<vmem>>, vector<1x128x128xbf16>
    %59 = vector.shape_cast %58 : vector<1x128x128xbf16> to vector<128x128xbf16>
    %cst_31 = arith.constant dense<0.000000e+00> : vector<128x128xf32>
    %60 = tpu.matmul %57, %59, %cst_31 {dimension_numbers = #tpu.dot_dimension_numbers<[1], [0], [0], [1], [0, 0, 1, 1], [], []>} : vector<128x128xbf16>, vector<128x128xbf16>, vector<128x128xf32> -> vector<128x128xf32>
    %61 = arith.addf %55, %60 : vector<128x128xf32>
    %c1_32 = arith.constant 1 : index
    %c0_33 = arith.constant 0 : index
    %62 = vector.load %arg9[%c1_32, %c0_33] : memref<136x128xf32, #tpu.memory_space<vmem>>, vector<128x128xf32>
    %63 = arith.truncf %62 : vector<128x128xf32> to vector<128x128xbf16>
    %c1_34 = arith.constant 1 : index
    %c0_35 = arith.constant 0 : index
    %c0_36 = arith.constant 0 : index
    %64 = vector.load %arg5[%c1_34, %c0_35, %c0_36] : memref<3x128x128xbf16, #tpu.memory_space<vmem>>, vector<1x128x128xbf16>
    %65 = vector.shape_cast %64 : vector<1x128x128xbf16> to vector<128x128xbf16>
    %cst_37 = arith.constant dense<0.000000e+00> : vector<128x128xf32>
    %66 = tpu.matmul %63, %65, %cst_37 {dimension_numbers = #tpu.dot_dimension_numbers<[1], [0], [0], [1], [0, 0, 1, 1], [], []>} : vector<128x128xbf16>, vector<128x128xbf16>, vector<128x128xf32> -> vector<128x128xf32>
    %67 = arith.addf %61, %66 : vector<128x128xf32>
    %c2_38 = arith.constant 2 : index
    %c0_39 = arith.constant 0 : index
    %68 = vector.load %arg9[%c2_38, %c0_39] : memref<136x128xf32, #tpu.memory_space<vmem>>, vector<128x128xf32>
    %69 = arith.truncf %68 : vector<128x128xf32> to vector<128x128xbf16>
    %c2_40 = arith.constant 2 : index
    %c0_41 = arith.constant 0 : index
    %c0_42 = arith.constant 0 : index
    %70 = vector.load %arg5[%c2_40, %c0_41, %c0_42] : memref<3x128x128xbf16, #tpu.memory_space<vmem>>, vector<1x128x128xbf16>
    %71 = vector.shape_cast %70 : vector<1x128x128xbf16> to vector<128x128xbf16>
    %cst_43 = arith.constant dense<0.000000e+00> : vector<128x128xf32>
    %72 = tpu.matmul %69, %71, %cst_43 {dimension_numbers = #tpu.dot_dimension_numbers<[1], [0], [0], [1], [0, 0, 1, 1], [], []>} : vector<128x128xbf16>, vector<128x128xbf16>, vector<128x128xf32> -> vector<128x128xf32>
    %73 = arith.addf %67, %72 : vector<128x128xf32>
    %c0_44 = arith.constant 0 : index
    %c0_45 = arith.constant 0 : index
    %74 = vector.load %arg6[%c0_44, %c0_45] : memref<1x128xf32, #tpu.memory_space<vmem>>, vector<1x128xf32>
    %75 = vector.broadcast %74 : vector<1x128xf32> to vector<128x128xf32>
    %76 = arith.addf %73, %75 : vector<128x128xf32>
    %c0_46 = arith.constant 0 : index
    %77 = arith.index_cast %4 : i32 to index
    %c0_47 = arith.constant 0 : index
    %78 = vector.load %arg2[%c0_46, %77, %c0_47] : memref<1x256x128xf32, #tpu.memory_space<vmem>>, vector<1x128x128xf32>
    %79 = vector.shape_cast %78 : vector<1x128x128xf32> to vector<128x128xf32>
    %80 = arith.addf %76, %79 : vector<128x128xf32>
    %c0_48 = arith.constant 0 : index
    %c0_49 = arith.constant 0 : index
    %c0_50 = arith.constant 0 : index
    %81 = vector.load %arg7[%c0_48, %c0_49, %c0_50] : memref<1x128x128xf32, #tpu.memory_space<vmem>>, vector<1x128x128xf32>
    %82 = vector.shape_cast %81 : vector<1x128x128xf32> to vector<128x128xf32>
    %83 = vector.shape_cast %80 : vector<128x128xf32> to vector<1x128x128xf32>
    tpu.vector_store %arg7[%c0_48, %c0_49, %c0_50], %83 {strides = array<i32>} : memref<1x128x128xf32, #tpu.memory_space<vmem>>, vector<1x128x128xf32>,
    return
  }
  func.func @transform_0(%arg0: i32, %arg1: i32) -> (i32, i32, i32) {
    %c0_i32 = arith.constant 0 : i32
    %c0_i32_0 = arith.constant 0 : i32
    %c0_i32_1 = arith.constant 0 : i32
    return %arg0, %c0_i32, %c0_i32_0 : i32, i32, i32
  }
  func.func @transform_1(%arg0: i32, %arg1: i32) -> (i32, i32, i32) {
    %c0_i32 = arith.constant 0 : i32
    %c0_i32_0 = arith.constant 0 : i32
    %c0_i32_1 = arith.constant 0 : i32
    %c0_i32_2 = arith.constant 0 : i32
    return %c0_i32, %c0_i32_0, %c0_i32_1 : i32, i32, i32
  }
  func.func @transform_2(%arg0: i32, %arg1: i32) -> (i32, i32) {
    %c0_i32 = arith.constant 0 : i32
    %c0_i32_0 = arith.constant 0 : i32
    %c0_i32_1 = arith.constant 0 : i32
    return %c0_i32, %c0_i32_0 : i32, i32
  }
  func.func @transform_3(%arg0: i32, %arg1: i32) -> (i32, i32, i32) {
    %c0_i32 = arith.constant 0 : i32
    %c0_i32_0 = arith.constant 0 : i32
    %c0_i32_1 = arith.constant 0 : i32
    %c0_i32_2 = arith.constant 0 : i32
    return %c0_i32, %c0_i32_0, %c0_i32_1 : i32, i32, i32
  }
  func.func @transform_4(%arg0: i32, %arg1: i32) -> (i32, i32) {
    %c0_i32 = arith.constant 0 : i32
    %c0_i32_0 = arith.constant 0 : i32
    %c0_i32_1 = arith.constant 0 : i32
    return %c0_i32, %c0_i32_0 : i32, i32
  }
  func.func @transform_5(%arg0: i32, %arg1: i32) -> (i32, i32, i32) {
    %c0_i32 = arith.constant 0 : i32
    %c0_i32_0 = arith.constant 0 : i32
    return %arg0, %arg1, %c0_i32 : i32, i32, i32
  }
}

module attributes {stable_mosaic.version = 11 : i64} {
  func.func @_res_stage_kernel(%arg0: i32, %arg1: i32, %arg2: memref<1x256x128xf32, #tpu.memory_space<vmem>>, %arg3: memref<3x128x128xbf16, #tpu.memory_space<vmem>>, %arg4: memref<1x128xf32, #tpu.memory_space<vmem>>, %arg5: memref<3x128x128xbf16, #tpu.memory_space<vmem>>, %arg6: memref<1x128xf32, #tpu.memory_space<vmem>>, %arg7: memref<1x128x128xf32, #tpu.memory_space<vmem>>, %arg8: memref<272x128xf32, #tpu.memory_space<vmem>>, %arg9: memref<136x128xf32, #tpu.memory_space<vmem>>) attributes {dimension_semantics = [#tpu.dimension_semantics<parallel>, #tpu.dimension_semantics<arbitrary>], iteration_bounds = array<i64: 2, 2>, scalar_prefetch = 0 : i64, scratch_operands = 2 : i64, tpu.core_type = #tpu.core_type<tc>, window_params = [{transform_indices = @transform_0, window_bounds = array<i64: 1, 256, 128>}, {pipeline_mode = #tpu.pipeline_mode<synchronous>, transform_indices = @transform_1, window_bounds = array<i64: 3, 128, 128>}, {pipeline_mode = #tpu.pipeline_mode<synchronous>, transform_indices = @transform_2, window_bounds = array<i64: 1, 128>}, {pipeline_mode = #tpu.pipeline_mode<synchronous>, transform_indices = @transform_3, window_bounds = array<i64: 3, 128, 128>}, {pipeline_mode = #tpu.pipeline_mode<synchronous>, transform_indices = @transform_4, window_bounds = array<i64: 1, 128>}, {transform_indices = @transform_5, window_bounds = array<i64: 1, 128, 128>}]} {
    %c0_i32 = arith.constant 0 : i32
    %0 = arith.cmpi eq, %arg1, %c0_i32 : i32
    %1 = arith.extui %0 : i1 to i32
    %c0_i32_0 = arith.constant 0 : i32
    %2 = arith.cmpi ne, %1, %c0_i32_0 : i32
    scf.if %2 {
      %cst_50 = arith.constant 0.000000e+00 : f32
      %84 = vector.broadcast %cst_50 : f32 to vector<8x128xf32>
      %c0_51 = arith.constant 0 : index
      %c0_52 = arith.constant 0 : index
      %85 = vector.load %arg8[%c0_51, %c0_52] : memref<272x128xf32, #tpu.memory_space<vmem>>, vector<8x128xf32>
      tpu.vector_store %arg8[%c0_51, %c0_52], %84 {strides = array<i32>} : memref<272x128xf32, #tpu.memory_space<vmem>>, vector<8x128xf32>,
      %cst_53 = arith.constant 0.000000e+00 : f32
      %86 = vector.broadcast %cst_53 : f32 to vector<8x128xf32>
      %c264 = arith.constant 264 : index
      %c0_54 = arith.constant 0 : index
      %87 = vector.load %arg8[%c264, %c0_54] : memref<272x128xf32, #tpu.memory_space<vmem>>, vector<8x128xf32>
      tpu.vector_store %arg8[%c264, %c0_54], %86 {strides = array<i32>} : memref<272x128xf32, #tpu.memory_space<vmem>>, vector<8x128xf32>,
      %c0_i32_55 = arith.constant 0 : i32
      %c2_i32 = arith.constant 2 : i32
      %88 = arith.addi %c0_i32_55, %c2_i32 : i32
      %c1_i32_56 = arith.constant 1 : i32
      scf.for %arg10 = %c0_i32_55 to %88 step %c1_i32_56  : i32 {
        %c128_i32_58 = arith.constant 128 : i32
        %89 = arith.muli %arg10, %c128_i32_58 : i32
        %90 = tpu.assume_multiple %89, 8 : i32
        %c0_59 = arith.constant 0 : index
        %91 = arith.index_cast %90 : i32 to index
        %c0_60 = arith.constant 0 : index
        %92 = vector.load %arg2[%c0_59, %91, %c0_60] : memref<1x256x128xf32, #tpu.memory_space<vmem>>, vector<1x128x128xf32>
        %93 = vector.shape_cast %92 : vector<1x128x128xf32> to vector<128x128xf32>
        %cst_61 = arith.constant 0.000000e+00 : f32
        %94 = vector.broadcast %cst_61 : f32 to vector<128x128xf32>
        %95 = arith.cmpf oge, %93, %94 : vector<128x128xf32>
        %cst_62 = arith.constant 1.000000e-01 : f32
        %96 = vector.broadcast %cst_62 : f32 to vector<128x128xf32>
        %97 = arith.mulf %96, %93 : vector<128x128xf32>
        %98 = arith.select %95, %93, %97 : vector<128x128xi1>, vector<128x128xf32>
        %c8_i32 = arith.constant 8 : i32
        %99 = arith.addi %c8_i32, %90 : i32
        %100 = arith.index_cast %99 : i32 to index
        %c0_63 = arith.constant 0 : index
        %101 = vector.load %arg8[%100, %c0_63] : memref<272x128xf32, #tpu.memory_space<vmem>>, vector<128x128xf32>
        tpu.vector_store %arg8[%100, %c0_63], %98 {strides = array<i32>} : memref<272x128xf32, #tpu.memory_space<vmem>>, vector<128x128xf32>,
      }
      %c2_i32_57 = arith.constant 2 : i32
    } else {
    }
    %c128_i32 = arith.constant 128 : i32
    %3 = arith.muli %arg1, %c128_i32 : i32
    %4 = tpu.assume_multiple %3, 8 : i32
    %cst = arith.constant 0.000000e+00 : f32
    %5 = vector.broadcast %cst : f32 to vector<130x128xf32>
    %c7_i32 = arith.constant 7 : i32
    %6 = arith.addi %4, %c7_i32 : i32
    %c-3_i32 = arith.constant -3 : i32
    %7 = arith.addi %6, %c-3_i32 : i32
    %8 = arith.index_cast %7 : i32 to index
    %c0 = arith.constant 0 : index
    %9 = vector.load %arg8[%8, %c0] : memref<272x128xf32, #tpu.memory_space<vmem>>, vector<130x128xf32>
    %10 = arith.truncf %9 : vector<130x128xf32> to vector<130x128xbf16>
    %c0_1 = arith.constant 0 : index
    %c0_2 = arith.constant 0 : index
    %c0_3 = arith.constant 0 : index
    %11 = vector.load %arg3[%c0_1, %c0_2, %c0_3] : memref<3x128x128xbf16, #tpu.memory_space<vmem>>, vector<1x128x128xbf16>
    %12 = vector.shape_cast %11 : vector<1x128x128xbf16> to vector<128x128xbf16>
    %cst_4 = arith.constant dense<0.000000e+00> : vector<130x128xf32>
    %13 = tpu.matmul %10, %12, %cst_4 {dimension_numbers = #tpu.dot_dimension_numbers<[1], [0], [0], [1], [0, 0, 1, 1], [], []>} : vector<130x128xbf16>, vector<128x128xbf16>, vector<130x128xf32> -> vector<130x128xf32>
    %14 = arith.addf %5, %13 : vector<130x128xf32>
    %c7_i32_5 = arith.constant 7 : i32
    %15 = arith.addi %4, %c7_i32_5 : i32
    %c0_i32_6 = arith.constant 0 : i32
    %16 = arith.addi %15, %c0_i32_6 : i32
    %17 = arith.index_cast %16 : i32 to index
    %c0_7 = arith.constant 0 : index
    %18 = vector.load %arg8[%17, %c0_7] : memref<272x128xf32, #tpu.memory_space<vmem>>, vector<130x128xf32>
    %19 = arith.truncf %18 : vector<130x128xf32> to vector<130x128xbf16>
    %c1 = arith.constant 1 : index
    %c0_8 = arith.constant 0 : index
    %c0_9 = arith.constant 0 : index
    %20 = vector.load %arg3[%c1, %c0_8, %c0_9] : memref<3x128x128xbf16, #tpu.memory_space<vmem>>, vector<1x128x128xbf16>
    %21 = vector.shape_cast %20 : vector<1x128x128xbf16> to vector<128x128xbf16>
    %cst_10 = arith.constant dense<0.000000e+00> : vector<130x128xf32>
    %22 = tpu.matmul %19, %21, %cst_10 {dimension_numbers = #tpu.dot_dimension_numbers<[1], [0], [0], [1], [0, 0, 1, 1], [], []>} : vector<130x128xbf16>, vector<128x128xbf16>, vector<130x128xf32> -> vector<130x128xf32>
    %23 = arith.addf %14, %22 : vector<130x128xf32>
    %c7_i32_11 = arith.constant 7 : i32
    %24 = arith.addi %4, %c7_i32_11 : i32
    %c3_i32 = arith.constant 3 : i32
    %25 = arith.addi %24, %c3_i32 : i32
    %26 = arith.index_cast %25 : i32 to index
    %c0_12 = arith.constant 0 : index
    %27 = vector.load %arg8[%26, %c0_12] : memref<272x128xf32, #tpu.memory_space<vmem>>, vector<130x128xf32>
    %28 = arith.truncf %27 : vector<130x128xf32> to vector<130x128xbf16>
    %c2 = arith.constant 2 : index
    %c0_13 = arith.constant 0 : index
    %c0_14 = arith.constant 0 : index
    %29 = vector.load %arg3[%c2, %c0_13, %c0_14] : memref<3x128x128xbf16, #tpu.memory_space<vmem>>, vector<1x128x128xbf16>
    %30 = vector.shape_cast %29 : vector<1x128x128xbf16> to vector<128x128xbf16>
    %cst_15 = arith.constant dense<0.000000e+00> : vector<130x128xf32>
    %31 = tpu.matmul %28, %30, %cst_15 {dimension_numbers = #tpu.dot_dimension_numbers<[1], [0], [0], [1], [0, 0, 1, 1], [], []>} : vector<130x128xbf16>, vector<128x128xbf16>, vector<130x128xf32> -> vector<130x128xf32>
    %32 = arith.addf %23, %31 : vector<130x128xf32>
    %c0_16 = arith.constant 0 : index
    %c0_17 = arith.constant 0 : index
    %33 = vector.load %arg4[%c0_16, %c0_17] : memref<1x128xf32, #tpu.memory_space<vmem>>, vector<1x128xf32>
    %34 = vector.broadcast %33 : vector<1x128xf32> to vector<130x128xf32>
    %35 = arith.addf %32, %34 : vector<130x128xf32>
    %cst_18 = arith.constant 0.000000e+00 : f32
    %36 = vector.broadcast %cst_18 : f32 to vector<130x128xf32>
    %37 = arith.cmpf oge, %35, %36 : vector<130x128xf32>
    %cst_19 = arith.constant 1.000000e-01 : f32
    %38 = vector.broadcast %cst_19 : f32 to vector<130x128xf32>
    %39 = arith.mulf %38, %35 : vector<130x128xf32>
    %40 = arith.select %37, %35, %39 : vector<130x128xi1>, vector<130x128xf32>
    %c1_i32 = arith.constant 1 : i32
    %41 = arith.subi %4, %c1_i32 : i32
    %42 = tpu.iota {dimensions = array<i32: 0>} : vector<130x1xi32>
    %43 = vector.broadcast %41 : i32 to vector<130x1xi32>
    %44 = arith.addi %43, %42 : vector<130x1xi32>
    %c0_i32_20 = arith.constant 0 : i32
    %45 = vector.broadcast %c0_i32_20 : i32 to vector<130x1xi32>
    %46 = arith.cmpi sge, %44, %45 : vector<130x1xi32>
    %c256_i32 = arith.constant 256 : i32
    %47 = vector.broadcast %c256_i32 : i32 to vector<130x1xi32>
    %48 = arith.cmpi slt, %44, %47 : vector<130x1xi32>
    %49 = arith.andi %46, %48 : vector<130x1xi1>
    %cst_21 = arith.constant 0.000000e+00 : f32
    %50 = vector.shape_cast %49 : vector<130x1xi1> to vector<130x1xi1>
    %51 = vector.broadcast %50 : vector<130x1xi1> to vector<130x128xi1>
    %52 = vector.broadcast %cst_21 : f32 to vector<130x128xf32>
    %53 = arith.select %51, %40, %52 : vector<130x128xi1>, vector<130x128xf32>
    %c0_22 = arith.constant 0 : index
    %c0_23 = arith.constant 0 : index
    %54 = vector.load %arg9[%c0_22, %c0_23] : memref<136x128xf32, #tpu.memory_space<vmem>>, vector<130x128xf32>
    tpu.vector_store %arg9[%c0_22, %c0_23], %53 {strides = array<i32>} : memref<136x128xf32, #tpu.memory_space<vmem>>, vector<130x128xf32>,
    %cst_24 = arith.constant 0.000000e+00 : f32
    %55 = vector.broadcast %cst_24 : f32 to vector<128x128xf32>
    %c0_25 = arith.constant 0 : index
    %c0_26 = arith.constant 0 : index
    %56 = vector.load %arg9[%c0_25, %c0_26] : memref<136x128xf32, #tpu.memory_space<vmem>>, vector<128x128xf32>
    %57 = arith.truncf %56 : vector<128x128xf32> to vector<128x128xbf16>
    %c0_27 = arith.constant 0 : index
    %c0_28 = arith.constant 0 : index
    %c0_29 = arith.constant 0 : index
    %58 = vector.load %arg5[%c0_27, %c0_28, %c0_29] : memref<3x128x128xbf16, #tpu.memory_space<vmem>>, vector<1x128x128xbf16>
    %59 = vector.shape_cast %58 : vector<1x128x128xbf16> to vector<128x128xbf16>
    %cst_30 = arith.constant dense<0.000000e+00> : vector<128x128xf32>
    %60 = tpu.matmul %57, %59, %cst_30 {dimension_numbers = #tpu.dot_dimension_numbers<[1], [0], [0], [1], [0, 0, 1, 1], [], []>} : vector<128x128xbf16>, vector<128x128xbf16>, vector<128x128xf32> -> vector<128x128xf32>
    %61 = arith.addf %55, %60 : vector<128x128xf32>
    %c1_31 = arith.constant 1 : index
    %c0_32 = arith.constant 0 : index
    %62 = vector.load %arg9[%c1_31, %c0_32] : memref<136x128xf32, #tpu.memory_space<vmem>>, vector<128x128xf32>
    %63 = arith.truncf %62 : vector<128x128xf32> to vector<128x128xbf16>
    %c1_33 = arith.constant 1 : index
    %c0_34 = arith.constant 0 : index
    %c0_35 = arith.constant 0 : index
    %64 = vector.load %arg5[%c1_33, %c0_34, %c0_35] : memref<3x128x128xbf16, #tpu.memory_space<vmem>>, vector<1x128x128xbf16>
    %65 = vector.shape_cast %64 : vector<1x128x128xbf16> to vector<128x128xbf16>
    %cst_36 = arith.constant dense<0.000000e+00> : vector<128x128xf32>
    %66 = tpu.matmul %63, %65, %cst_36 {dimension_numbers = #tpu.dot_dimension_numbers<[1], [0], [0], [1], [0, 0, 1, 1], [], []>} : vector<128x128xbf16>, vector<128x128xbf16>, vector<128x128xf32> -> vector<128x128xf32>
    %67 = arith.addf %61, %66 : vector<128x128xf32>
    %c2_37 = arith.constant 2 : index
    %c0_38 = arith.constant 0 : index
    %68 = vector.load %arg9[%c2_37, %c0_38] : memref<136x128xf32, #tpu.memory_space<vmem>>, vector<128x128xf32>
    %69 = arith.truncf %68 : vector<128x128xf32> to vector<128x128xbf16>
    %c2_39 = arith.constant 2 : index
    %c0_40 = arith.constant 0 : index
    %c0_41 = arith.constant 0 : index
    %70 = vector.load %arg5[%c2_39, %c0_40, %c0_41] : memref<3x128x128xbf16, #tpu.memory_space<vmem>>, vector<1x128x128xbf16>
    %71 = vector.shape_cast %70 : vector<1x128x128xbf16> to vector<128x128xbf16>
    %cst_42 = arith.constant dense<0.000000e+00> : vector<128x128xf32>
    %72 = tpu.matmul %69, %71, %cst_42 {dimension_numbers = #tpu.dot_dimension_numbers<[1], [0], [0], [1], [0, 0, 1, 1], [], []>} : vector<128x128xbf16>, vector<128x128xbf16>, vector<128x128xf32> -> vector<128x128xf32>
    %73 = arith.addf %67, %72 : vector<128x128xf32>
    %c0_43 = arith.constant 0 : index
    %c0_44 = arith.constant 0 : index
    %74 = vector.load %arg6[%c0_43, %c0_44] : memref<1x128xf32, #tpu.memory_space<vmem>>, vector<1x128xf32>
    %75 = vector.broadcast %74 : vector<1x128xf32> to vector<128x128xf32>
    %76 = arith.addf %73, %75 : vector<128x128xf32>
    %c0_45 = arith.constant 0 : index
    %77 = arith.index_cast %4 : i32 to index
    %c0_46 = arith.constant 0 : index
    %78 = vector.load %arg2[%c0_45, %77, %c0_46] : memref<1x256x128xf32, #tpu.memory_space<vmem>>, vector<1x128x128xf32>
    %79 = vector.shape_cast %78 : vector<1x128x128xf32> to vector<128x128xf32>
    %80 = arith.addf %76, %79 : vector<128x128xf32>
    %c0_47 = arith.constant 0 : index
    %c0_48 = arith.constant 0 : index
    %c0_49 = arith.constant 0 : index
    %81 = vector.load %arg7[%c0_47, %c0_48, %c0_49] : memref<1x128x128xf32, #tpu.memory_space<vmem>>, vector<1x128x128xf32>
    %82 = vector.shape_cast %81 : vector<1x128x128xf32> to vector<128x128xf32>
    %83 = vector.shape_cast %80 : vector<128x128xf32> to vector<1x128x128xf32>
    tpu.vector_store %arg7[%c0_47, %c0_48, %c0_49], %83 {strides = array<i32>} : memref<1x128x128xf32, #tpu.memory_space<vmem>>, vector<1x128x128xf32>,
    return
  }
  func.func @transform_0(%arg0: i32, %arg1: i32) -> (i32, i32, i32) {
    %c0_i32 = arith.constant 0 : i32
    %c0_i32_0 = arith.constant 0 : i32
    %c0_i32_1 = arith.constant 0 : i32
    return %arg0, %c0_i32, %c0_i32_0 : i32, i32, i32
  }
  func.func @transform_1(%arg0: i32, %arg1: i32) -> (i32, i32, i32) {
    %c0_i32 = arith.constant 0 : i32
    %c0_i32_0 = arith.constant 0 : i32
    %c0_i32_1 = arith.constant 0 : i32
    %c0_i32_2 = arith.constant 0 : i32
    return %c0_i32, %c0_i32_0, %c0_i32_1 : i32, i32, i32
  }
  func.func @transform_2(%arg0: i32, %arg1: i32) -> (i32, i32) {
    %c0_i32 = arith.constant 0 : i32
    %c0_i32_0 = arith.constant 0 : i32
    %c0_i32_1 = arith.constant 0 : i32
    return %c0_i32, %c0_i32_0 : i32, i32
  }
  func.func @transform_3(%arg0: i32, %arg1: i32) -> (i32, i32, i32) {
    %c0_i32 = arith.constant 0 : i32
    %c0_i32_0 = arith.constant 0 : i32
    %c0_i32_1 = arith.constant 0 : i32
    %c0_i32_2 = arith.constant 0 : i32
    return %c0_i32, %c0_i32_0, %c0_i32_1 : i32, i32, i32
  }
  func.func @transform_4(%arg0: i32, %arg1: i32) -> (i32, i32) {
    %c0_i32 = arith.constant 0 : i32
    %c0_i32_0 = arith.constant 0 : i32
    %c0_i32_1 = arith.constant 0 : i32
    return %c0_i32, %c0_i32_0 : i32, i32
  }
  func.func @transform_5(%arg0: i32, %arg1: i32) -> (i32, i32, i32) {
    %c0_i32 = arith.constant 0 : i32
    %c0_i32_0 = arith.constant 0 : i32
    return %arg0, %arg1, %c0_i32 : i32, i32, i32
  }
}

module attributes {stable_mosaic.version = 11 : i64} {
  func.func @_res_stage_kernel(%arg0: i32, %arg1: i32, %arg2: memref<1x256x128xf32, #tpu.memory_space<vmem>>, %arg3: memref<3x128x128xbf16, #tpu.memory_space<vmem>>, %arg4: memref<1x128xf32, #tpu.memory_space<vmem>>, %arg5: memref<3x128x128xbf16, #tpu.memory_space<vmem>>, %arg6: memref<1x128xf32, #tpu.memory_space<vmem>>, %arg7: memref<1x128x128xf32, #tpu.memory_space<vmem>>, %arg8: memref<272x128xf32, #tpu.memory_space<vmem>>, %arg9: memref<136x128xf32, #tpu.memory_space<vmem>>) attributes {dimension_semantics = [#tpu.dimension_semantics<parallel>, #tpu.dimension_semantics<arbitrary>], iteration_bounds = array<i64: 2, 2>, scalar_prefetch = 0 : i64, scratch_operands = 2 : i64, tpu.core_type = #tpu.core_type<tc>, window_params = [{transform_indices = @transform_0, window_bounds = array<i64: 1, 256, 128>}, {pipeline_mode = #tpu.pipeline_mode<synchronous>, transform_indices = @transform_1, window_bounds = array<i64: 3, 128, 128>}, {pipeline_mode = #tpu.pipeline_mode<synchronous>, transform_indices = @transform_2, window_bounds = array<i64: 1, 128>}, {pipeline_mode = #tpu.pipeline_mode<synchronous>, transform_indices = @transform_3, window_bounds = array<i64: 3, 128, 128>}, {pipeline_mode = #tpu.pipeline_mode<synchronous>, transform_indices = @transform_4, window_bounds = array<i64: 1, 128>}, {transform_indices = @transform_5, window_bounds = array<i64: 1, 128, 128>}]} {
    %c0_i32 = arith.constant 0 : i32
    %0 = arith.cmpi eq, %arg1, %c0_i32 : i32
    %1 = arith.extui %0 : i1 to i32
    %c0_i32_0 = arith.constant 0 : i32
    %2 = arith.cmpi ne, %1, %c0_i32_0 : i32
    scf.if %2 {
      %cst_50 = arith.constant 0.000000e+00 : f32
      %84 = vector.broadcast %cst_50 : f32 to vector<8x128xf32>
      %c0_51 = arith.constant 0 : index
      %c0_52 = arith.constant 0 : index
      %85 = vector.load %arg8[%c0_51, %c0_52] : memref<272x128xf32, #tpu.memory_space<vmem>>, vector<8x128xf32>
      tpu.vector_store %arg8[%c0_51, %c0_52], %84 {strides = array<i32>} : memref<272x128xf32, #tpu.memory_space<vmem>>, vector<8x128xf32>,
      %cst_53 = arith.constant 0.000000e+00 : f32
      %86 = vector.broadcast %cst_53 : f32 to vector<8x128xf32>
      %c264 = arith.constant 264 : index
      %c0_54 = arith.constant 0 : index
      %87 = vector.load %arg8[%c264, %c0_54] : memref<272x128xf32, #tpu.memory_space<vmem>>, vector<8x128xf32>
      tpu.vector_store %arg8[%c264, %c0_54], %86 {strides = array<i32>} : memref<272x128xf32, #tpu.memory_space<vmem>>, vector<8x128xf32>,
      %c0_i32_55 = arith.constant 0 : i32
      %c2_i32 = arith.constant 2 : i32
      %88 = arith.addi %c0_i32_55, %c2_i32 : i32
      %c1_i32_56 = arith.constant 1 : i32
      scf.for %arg10 = %c0_i32_55 to %88 step %c1_i32_56  : i32 {
        %c128_i32_58 = arith.constant 128 : i32
        %89 = arith.muli %arg10, %c128_i32_58 : i32
        %90 = tpu.assume_multiple %89, 8 : i32
        %c0_59 = arith.constant 0 : index
        %91 = arith.index_cast %90 : i32 to index
        %c0_60 = arith.constant 0 : index
        %92 = vector.load %arg2[%c0_59, %91, %c0_60] : memref<1x256x128xf32, #tpu.memory_space<vmem>>, vector<1x128x128xf32>
        %93 = vector.shape_cast %92 : vector<1x128x128xf32> to vector<128x128xf32>
        %cst_61 = arith.constant 0.000000e+00 : f32
        %94 = vector.broadcast %cst_61 : f32 to vector<128x128xf32>
        %95 = arith.cmpf oge, %93, %94 : vector<128x128xf32>
        %cst_62 = arith.constant 1.000000e-01 : f32
        %96 = vector.broadcast %cst_62 : f32 to vector<128x128xf32>
        %97 = arith.mulf %96, %93 : vector<128x128xf32>
        %98 = arith.select %95, %93, %97 : vector<128x128xi1>, vector<128x128xf32>
        %c8_i32 = arith.constant 8 : i32
        %99 = arith.addi %c8_i32, %90 : i32
        %100 = arith.index_cast %99 : i32 to index
        %c0_63 = arith.constant 0 : index
        %101 = vector.load %arg8[%100, %c0_63] : memref<272x128xf32, #tpu.memory_space<vmem>>, vector<128x128xf32>
        tpu.vector_store %arg8[%100, %c0_63], %98 {strides = array<i32>} : memref<272x128xf32, #tpu.memory_space<vmem>>, vector<128x128xf32>,
      }
      %c2_i32_57 = arith.constant 2 : i32
    } else {
    }
    %c128_i32 = arith.constant 128 : i32
    %3 = arith.muli %arg1, %c128_i32 : i32
    %4 = tpu.assume_multiple %3, 8 : i32
    %cst = arith.constant 0.000000e+00 : f32
    %5 = vector.broadcast %cst : f32 to vector<130x128xf32>
    %c7_i32 = arith.constant 7 : i32
    %6 = arith.addi %4, %c7_i32 : i32
    %c-5_i32 = arith.constant -5 : i32
    %7 = arith.addi %6, %c-5_i32 : i32
    %8 = arith.index_cast %7 : i32 to index
    %c0 = arith.constant 0 : index
    %9 = vector.load %arg8[%8, %c0] : memref<272x128xf32, #tpu.memory_space<vmem>>, vector<130x128xf32>
    %10 = arith.truncf %9 : vector<130x128xf32> to vector<130x128xbf16>
    %c0_1 = arith.constant 0 : index
    %c0_2 = arith.constant 0 : index
    %c0_3 = arith.constant 0 : index
    %11 = vector.load %arg3[%c0_1, %c0_2, %c0_3] : memref<3x128x128xbf16, #tpu.memory_space<vmem>>, vector<1x128x128xbf16>
    %12 = vector.shape_cast %11 : vector<1x128x128xbf16> to vector<128x128xbf16>
    %cst_4 = arith.constant dense<0.000000e+00> : vector<130x128xf32>
    %13 = tpu.matmul %10, %12, %cst_4 {dimension_numbers = #tpu.dot_dimension_numbers<[1], [0], [0], [1], [0, 0, 1, 1], [], []>} : vector<130x128xbf16>, vector<128x128xbf16>, vector<130x128xf32> -> vector<130x128xf32>
    %14 = arith.addf %5, %13 : vector<130x128xf32>
    %c7_i32_5 = arith.constant 7 : i32
    %15 = arith.addi %4, %c7_i32_5 : i32
    %c0_i32_6 = arith.constant 0 : i32
    %16 = arith.addi %15, %c0_i32_6 : i32
    %17 = arith.index_cast %16 : i32 to index
    %c0_7 = arith.constant 0 : index
    %18 = vector.load %arg8[%17, %c0_7] : memref<272x128xf32, #tpu.memory_space<vmem>>, vector<130x128xf32>
    %19 = arith.truncf %18 : vector<130x128xf32> to vector<130x128xbf16>
    %c1 = arith.constant 1 : index
    %c0_8 = arith.constant 0 : index
    %c0_9 = arith.constant 0 : index
    %20 = vector.load %arg3[%c1, %c0_8, %c0_9] : memref<3x128x128xbf16, #tpu.memory_space<vmem>>, vector<1x128x128xbf16>
    %21 = vector.shape_cast %20 : vector<1x128x128xbf16> to vector<128x128xbf16>
    %cst_10 = arith.constant dense<0.000000e+00> : vector<130x128xf32>
    %22 = tpu.matmul %19, %21, %cst_10 {dimension_numbers = #tpu.dot_dimension_numbers<[1], [0], [0], [1], [0, 0, 1, 1], [], []>} : vector<130x128xbf16>, vector<128x128xbf16>, vector<130x128xf32> -> vector<130x128xf32>
    %23 = arith.addf %14, %22 : vector<130x128xf32>
    %c7_i32_11 = arith.constant 7 : i32
    %24 = arith.addi %4, %c7_i32_11 : i32
    %c5_i32 = arith.constant 5 : i32
    %25 = arith.addi %24, %c5_i32 : i32
    %26 = arith.index_cast %25 : i32 to index
    %c0_12 = arith.constant 0 : index
    %27 = vector.load %arg8[%26, %c0_12] : memref<272x128xf32, #tpu.memory_space<vmem>>, vector<130x128xf32>
    %28 = arith.truncf %27 : vector<130x128xf32> to vector<130x128xbf16>
    %c2 = arith.constant 2 : index
    %c0_13 = arith.constant 0 : index
    %c0_14 = arith.constant 0 : index
    %29 = vector.load %arg3[%c2, %c0_13, %c0_14] : memref<3x128x128xbf16, #tpu.memory_space<vmem>>, vector<1x128x128xbf16>
    %30 = vector.shape_cast %29 : vector<1x128x128xbf16> to vector<128x128xbf16>
    %cst_15 = arith.constant dense<0.000000e+00> : vector<130x128xf32>
    %31 = tpu.matmul %28, %30, %cst_15 {dimension_numbers = #tpu.dot_dimension_numbers<[1], [0], [0], [1], [0, 0, 1, 1], [], []>} : vector<130x128xbf16>, vector<128x128xbf16>, vector<130x128xf32> -> vector<130x128xf32>
    %32 = arith.addf %23, %31 : vector<130x128xf32>
    %c0_16 = arith.constant 0 : index
    %c0_17 = arith.constant 0 : index
    %33 = vector.load %arg4[%c0_16, %c0_17] : memref<1x128xf32, #tpu.memory_space<vmem>>, vector<1x128xf32>
    %34 = vector.broadcast %33 : vector<1x128xf32> to vector<130x128xf32>
    %35 = arith.addf %32, %34 : vector<130x128xf32>
    %cst_18 = arith.constant 0.000000e+00 : f32
    %36 = vector.broadcast %cst_18 : f32 to vector<130x128xf32>
    %37 = arith.cmpf oge, %35, %36 : vector<130x128xf32>
    %cst_19 = arith.constant 1.000000e-01 : f32
    %38 = vector.broadcast %cst_19 : f32 to vector<130x128xf32>
    %39 = arith.mulf %38, %35 : vector<130x128xf32>
    %40 = arith.select %37, %35, %39 : vector<130x128xi1>, vector<130x128xf32>
    %c1_i32 = arith.constant 1 : i32
    %41 = arith.subi %4, %c1_i32 : i32
    %42 = tpu.iota {dimensions = array<i32: 0>} : vector<130x1xi32>
    %43 = vector.broadcast %41 : i32 to vector<130x1xi32>
    %44 = arith.addi %43, %42 : vector<130x1xi32>
    %c0_i32_20 = arith.constant 0 : i32
    %45 = vector.broadcast %c0_i32_20 : i32 to vector<130x1xi32>
    %46 = arith.cmpi sge, %44, %45 : vector<130x1xi32>
    %c256_i32 = arith.constant 256 : i32
    %47 = vector.broadcast %c256_i32 : i32 to vector<130x1xi32>
    %48 = arith.cmpi slt, %44, %47 : vector<130x1xi32>
    %49 = arith.andi %46, %48 : vector<130x1xi1>
    %cst_21 = arith.constant 0.000000e+00 : f32
    %50 = vector.shape_cast %49 : vector<130x1xi1> to vector<130x1xi1>
    %51 = vector.broadcast %50 : vector<130x1xi1> to vector<130x128xi1>
    %52 = vector.broadcast %cst_21 : f32 to vector<130x128xf32>
    %53 = arith.select %51, %40, %52 : vector<130x128xi1>, vector<130x128xf32>
    %c0_22 = arith.constant 0 : index
    %c0_23 = arith.constant 0 : index
    %54 = vector.load %arg9[%c0_22, %c0_23] : memref<136x128xf32, #tpu.memory_space<vmem>>, vector<130x128xf32>
    tpu.vector_store %arg9[%c0_22, %c0_23], %53 {strides = array<i32>} : memref<136x128xf32, #tpu.memory_space<vmem>>, vector<130x128xf32>,
    %cst_24 = arith.constant 0.000000e+00 : f32
    %55 = vector.broadcast %cst_24 : f32 to vector<128x128xf32>
    %c0_25 = arith.constant 0 : index
    %c0_26 = arith.constant 0 : index
    %56 = vector.load %arg9[%c0_25, %c0_26] : memref<136x128xf32, #tpu.memory_space<vmem>>, vector<128x128xf32>
    %57 = arith.truncf %56 : vector<128x128xf32> to vector<128x128xbf16>
    %c0_27 = arith.constant 0 : index
    %c0_28 = arith.constant 0 : index
    %c0_29 = arith.constant 0 : index
    %58 = vector.load %arg5[%c0_27, %c0_28, %c0_29] : memref<3x128x128xbf16, #tpu.memory_space<vmem>>, vector<1x128x128xbf16>
    %59 = vector.shape_cast %58 : vector<1x128x128xbf16> to vector<128x128xbf16>
    %cst_30 = arith.constant dense<0.000000e+00> : vector<128x128xf32>
    %60 = tpu.matmul %57, %59, %cst_30 {dimension_numbers = #tpu.dot_dimension_numbers<[1], [0], [0], [1], [0, 0, 1, 1], [], []>} : vector<128x128xbf16>, vector<128x128xbf16>, vector<128x128xf32> -> vector<128x128xf32>
    %61 = arith.addf %55, %60 : vector<128x128xf32>
    %c1_31 = arith.constant 1 : index
    %c0_32 = arith.constant 0 : index
    %62 = vector.load %arg9[%c1_31, %c0_32] : memref<136x128xf32, #tpu.memory_space<vmem>>, vector<128x128xf32>
    %63 = arith.truncf %62 : vector<128x128xf32> to vector<128x128xbf16>
    %c1_33 = arith.constant 1 : index
    %c0_34 = arith.constant 0 : index
    %c0_35 = arith.constant 0 : index
    %64 = vector.load %arg5[%c1_33, %c0_34, %c0_35] : memref<3x128x128xbf16, #tpu.memory_space<vmem>>, vector<1x128x128xbf16>
    %65 = vector.shape_cast %64 : vector<1x128x128xbf16> to vector<128x128xbf16>
    %cst_36 = arith.constant dense<0.000000e+00> : vector<128x128xf32>
    %66 = tpu.matmul %63, %65, %cst_36 {dimension_numbers = #tpu.dot_dimension_numbers<[1], [0], [0], [1], [0, 0, 1, 1], [], []>} : vector<128x128xbf16>, vector<128x128xbf16>, vector<128x128xf32> -> vector<128x128xf32>
    %67 = arith.addf %61, %66 : vector<128x128xf32>
    %c2_37 = arith.constant 2 : index
    %c0_38 = arith.constant 0 : index
    %68 = vector.load %arg9[%c2_37, %c0_38] : memref<136x128xf32, #tpu.memory_space<vmem>>, vector<128x128xf32>
    %69 = arith.truncf %68 : vector<128x128xf32> to vector<128x128xbf16>
    %c2_39 = arith.constant 2 : index
    %c0_40 = arith.constant 0 : index
    %c0_41 = arith.constant 0 : index
    %70 = vector.load %arg5[%c2_39, %c0_40, %c0_41] : memref<3x128x128xbf16, #tpu.memory_space<vmem>>, vector<1x128x128xbf16>
    %71 = vector.shape_cast %70 : vector<1x128x128xbf16> to vector<128x128xbf16>
    %cst_42 = arith.constant dense<0.000000e+00> : vector<128x128xf32>
    %72 = tpu.matmul %69, %71, %cst_42 {dimension_numbers = #tpu.dot_dimension_numbers<[1], [0], [0], [1], [0, 0, 1, 1], [], []>} : vector<128x128xbf16>, vector<128x128xbf16>, vector<128x128xf32> -> vector<128x128xf32>
    %73 = arith.addf %67, %72 : vector<128x128xf32>
    %c0_43 = arith.constant 0 : index
    %c0_44 = arith.constant 0 : index
    %74 = vector.load %arg6[%c0_43, %c0_44] : memref<1x128xf32, #tpu.memory_space<vmem>>, vector<1x128xf32>
    %75 = vector.broadcast %74 : vector<1x128xf32> to vector<128x128xf32>
    %76 = arith.addf %73, %75 : vector<128x128xf32>
    %c0_45 = arith.constant 0 : index
    %77 = arith.index_cast %4 : i32 to index
    %c0_46 = arith.constant 0 : index
    %78 = vector.load %arg2[%c0_45, %77, %c0_46] : memref<1x256x128xf32, #tpu.memory_space<vmem>>, vector<1x128x128xf32>
    %79 = vector.shape_cast %78 : vector<1x128x128xf32> to vector<128x128xf32>
    %80 = arith.addf %76, %79 : vector<128x128xf32>
    %c0_47 = arith.constant 0 : index
    %c0_48 = arith.constant 0 : index
    %c0_49 = arith.constant 0 : index
    %81 = vector.load %arg7[%c0_47, %c0_48, %c0_49] : memref<1x128x128xf32, #tpu.memory_space<vmem>>, vector<1x128x128xf32>
    %82 = vector.shape_cast %81 : vector<1x128x128xf32> to vector<128x128xf32>
    %83 = vector.shape_cast %80 : vector<128x128xf32> to vector<1x128x128xf32>
    tpu.vector_store %arg7[%c0_47, %c0_48, %c0_49], %83 {strides = array<i32>} : memref<1x128x128xf32, #tpu.memory_space<vmem>>, vector<1x128x128xf32>,
    return
  }
  func.func @transform_0(%arg0: i32, %arg1: i32) -> (i32, i32, i32) {
    %c0_i32 = arith.constant 0 : i32
    %c0_i32_0 = arith.constant 0 : i32
    %c0_i32_1 = arith.constant 0 : i32
    return %arg0, %c0_i32, %c0_i32_0 : i32, i32, i32
  }
  func.func @transform_1(%arg0: i32, %arg1: i32) -> (i32, i32, i32) {
    %c0_i32 = arith.constant 0 : i32
    %c0_i32_0 = arith.constant 0 : i32
    %c0_i32_1 = arith.constant 0 : i32
    %c0_i32_2 = arith.constant 0 : i32
    return %c0_i32, %c0_i32_0, %c0_i32_1 : i32, i32, i32
  }
  func.func @transform_2(%arg0: i32, %arg1: i32) -> (i32, i32) {
    %c0_i32 = arith.constant 0 : i32
    %c0_i32_0 = arith.constant 0 : i32
    %c0_i32_1 = arith.constant 0 : i32
    return %c0_i32, %c0_i32_0 : i32, i32
  }
  func.func @transform_3(%arg0: i32, %arg1: i32) -> (i32, i32, i32) {
    %c0_i32 = arith.constant 0 : i32
    %c0_i32_0 = arith.constant 0 : i32
    %c0_i32_1 = arith.constant 0 : i32
    %c0_i32_2 = arith.constant 0 : i32
    return %c0_i32, %c0_i32_0, %c0_i32_1 : i32, i32, i32
  }
  func.func @transform_4(%arg0: i32, %arg1: i32) -> (i32, i32) {
    %c0_i32 = arith.constant 0 : i32
    %c0_i32_0 = arith.constant 0 : i32
    %c0_i32_1 = arith.constant 0 : i32
    return %c0_i32, %c0_i32_0 : i32, i32
  }
  func.func @transform_5(%arg0: i32, %arg1: i32) -> (i32, i32, i32) {
    %c0_i32 = arith.constant 0 : i32
    %c0_i32_0 = arith.constant 0 : i32
    return %arg0, %arg1, %c0_i32 : i32, i32, i32
  }
}

</mosaic_0001>

<llo_original>
// kernel: resblock1_forward.3
$region0: #{resblock1_forward.3}
  #allocation0 [shape = 'u32[]', space=smem, size = 0x4, offset = 0x4, fixed_abs, tag = 'smem constant byte address 0x4 - core index']
  #allocation1 [shape = 'u32[72,128]{1,0:T(1,128)}', space=vmem, size = 0x9000, scoped, tag = 'internal scratch']
  #allocation2 [shape = 'f32[272,128]{1,0:T(8,128)}', space=vmem, size = 0x22000, scoped, tag = 'scratch operand']
  #allocation3 [shape = 'f32[136,128]{1,0:T(8,128)}', space=vmem, size = 0x11000, scoped, tag = 'scratch operand']
  %s0 = inlined_call_operand.vmem [shape: f32[2,256,128], index: 0, kind: input, shape index: {}]
  %s1 = inlined_call_operand.vmem [shape: bf16[3,128,128], index: 1, kind: input, shape index: {}]
  %s2 = inlined_call_operand.vmem [shape: f32[1,128], index: 2, kind: input, shape index: {}]
  %s3 = inlined_call_operand.vmem [shape: bf16[3,128,128], index: 3, kind: input, shape index: {}]
  %s4 = inlined_call_operand.vmem [shape: f32[1,128], index: 4, kind: input, shape index: {}]
  %s5 = inlined_call_operand.vmem [shape: f32[2,256,128], index: 5, kind: output, shape index: {}]
  %s6 = sld [smem:[#allocation0]]
  $region64: #{resblock1_forward.3} parent=0
    _
  %s8 = ssub.s32 1, %s6
  %s9 = scalar_select 0, %s8, %s6
  loop: start=0, step=1, limit=6
  $region2: #{resblock1_forward.3} parent=0 // loop_pre_header
    _
  $region3: #{resblock1_forward.3} parent=0 // loop_header
    %s11 = sphi 0, %s15
    %p12 = scmp.ge.s32.totalorder %s11, 6
    %s18 = sphi 0, %s30
    %s19 = sphi 0, %s26
    %s20 = sphi 0, %s18
    %s21 = sphi 0, %s19
    %s22 = sphi 0, %s20
    %s23 = sphi 0, %s21
    %s33 = sphi 0, %s35
    %s36 = sphi 0, %s33
    %s37 = sphi 0, %s36
    %s53 = sphi 0, %s37
    %s57 = sphi 0, %s57
    %s59 = sphi 0, %s57
    %s60 = sphi 0, %s59
    %s74 = sphi 0, %s60
    %s78 = sphi 0, %s78
    %s80 = sphi 0, %s78
    %s81 = sphi 0, %s80
    %s95 = sphi 0, %s81
    %s99 = sphi 0, %s99
    %s101 = sphi 0, %s99
    %s102 = sphi 0, %s101
    %s116 = sphi 0, %s102
    %s120 = sphi 0, %s120
    %s122 = sphi 0, %s120
    %s123 = sphi 0, %s122
    %s137 = sphi 0, %s123
    %s145 = sphi 0, %s147
    %s148 = sphi 0, %s145
    %s149 = sphi 0, %s148
    %s165 = sphi 0, %s149
  $region4: #{resblock1_forward.3} parent=0 // loop_header_branch
    %14 = sbr.rel (%p12) target = $region8
  $region5: #{resblock1_forward.3} parent=0 // loop_body
    %s16 = ssub.s32 %s11, 1
    %s17 = ssub.s32 %s11, 2
    %s24 = sadd.s32 1, %s19
    %p25 = scmp.ge.s32.totalorder %s24, 2
    %s26 = scalar_select %p25, 0, %s24
    %s27 = sadd.s32 1, %s18
    %s28 = scalar_select %p25, %s27, %s18
    %p29 = scmp.ge.s32.totalorder %s28, 2
    %s30 = scalar_select %p29, 0, %s28
    %s31 = ssub.s32 %s18, %s30
    %p32 = scmp.eq.s32.totalorder %s31, 0
    %s34 = sadd.s32 %s33, 1
    %s35 = scalar_select %p32, %s33, %s34
    %p38 = pneg %p32
    %p39 = scmp.eq.s32.totalorder %s11, 3
    %p40 = por %p38, %p39
    %p41 = scmp.ne.s32.totalorder %s33, %s36
    %p42 = scmp.eq.s32.totalorder %s11, 0
    %p43 = por %p41, %p42
    %p44 = scmp.ne.s32.totalorder %s33, %s36
    %p45 = scmp.eq.s32.totalorder %s16, 3
    %p46 = por %p44, %p45
    %p47 = scmp.ne.s32.totalorder %s36, %s37
    %p48 = scmp.eq.s32.totalorder %s16, 0
    %p49 = por %p47, %p48
    %p50 = scmp.ne.s32.totalorder %s36, %s37
    %p51 = scmp.eq.s32.totalorder %s17, 3
    %p52 = por %p50, %p51
    %p54 = scmp.ne.s32.totalorder %s37, %s53
    %p55 = scmp.eq.s32.totalorder %s17, 0
    %p56 = por %p54, %p55
    %s58 = sadd.s32 %s57, 1
    %p61 = scmp.eq.s32.totalorder %s11, 3
    %p62 = scmp.ne.s32.totalorder %s57, %s59
    %p63 = scmp.eq.s32.totalorder %s11, 0
    %p64 = por %p62, %p63
    %p65 = scmp.ne.s32.totalorder %s57, %s59
    %p66 = scmp.eq.s32.totalorder %s16, 3
    %p67 = por %p65, %p66
    %p68 = scmp.ne.s32.totalorder %s59, %s60
    %p69 = scmp.eq.s32.totalorder %s16, 0
    %p70 = por %p68, %p69
    %p71 = scmp.ne.s32.totalorder %s59, %s60
    %p72 = scmp.eq.s32.totalorder %s17, 3
    %p73 = por %p71, %p72
    %p75 = scmp.ne.s32.totalorder %s60, %s74
    %p76 = scmp.eq.s32.totalorder %s17, 0
    %p77 = por %p75, %p76
    %s79 = sadd.s32 %s78, 1
    %p82 = scmp.eq.s32.totalorder %s11, 3
    %p83 = scmp.ne.s32.totalorder %s78, %s80
    %p84 = scmp.eq.s32.totalorder %s11, 0
    %p85 = por %p83, %p84
    %p86 = scmp.ne.s32.totalorder %s78, %s80
    %p87 = scmp.eq.s32.totalorder %s16, 3
    %p88 = por %p86, %p87
    %p89 = scmp.ne.s32.totalorder %s80, %s81
    %p90 = scmp.eq.s32.totalorder %s16, 0
    %p91 = por %p89, %p90
    %p92 = scmp.ne.s32.totalorder %s80, %s81
    %p93 = scmp.eq.s32.totalorder %s17, 3
    %p94 = por %p92, %p93
    %p96 = scmp.ne.s32.totalorder %s81, %s95
    %p97 = scmp.eq.s32.totalorder %s17, 0
    %p98 = por %p96, %p97
    %s100 = sadd.s32 %s99, 1
    %p103 = scmp.eq.s32.totalorder %s11, 3
    %p104 = scmp.ne.s32.totalorder %s99, %s101
    %p105 = scmp.eq.s32.totalorder %s11, 0
    %p106 = por %p104, %p105
    %p107 = scmp.ne.s32.totalorder %s99, %s101
    %p108 = scmp.eq.s32.totalorder %s16, 3
    %p109 = por %p107, %p108
    %p110 = scmp.ne.s32.totalorder %s101, %s102
    %p111 = scmp.eq.s32.totalorder %s16, 0
    %p112 = por %p110, %p111
    %p113 = scmp.ne.s32.totalorder %s101, %s102
    %p114 = scmp.eq.s32.totalorder %s17, 3
    %p115 = por %p113, %p114
    %p117 = scmp.ne.s32.totalorder %s102, %s116
    %p118 = scmp.eq.s32.totalorder %s17, 0
    %p119 = por %p117, %p118
    %s121 = sadd.s32 %s120, 1
    %p124 = scmp.eq.s32.totalorder %s11, 3
    %p125 = scmp.ne.s32.totalorder %s120, %s122
    %p126 = scmp.eq.s32.totalorder %s11, 0
    %p127 = por %p125, %p126
    %p128 = scmp.ne.s32.totalorder %s120, %s122
    %p129 = scmp.eq.s32.totalorder %s16, 3
    %p130 = por %p128, %p129
    %p131 = scmp.ne.s32.totalorder %s122, %s123
    %p132 = scmp.eq.s32.totalorder %s16, 0
    %p133 = por %p131, %p132
    %p134 = scmp.ne.s32.totalorder %s122, %s123
    %p135 = scmp.eq.s32.totalorder %s17, 3
    %p136 = por %p134, %p135
    %p138 = scmp.ne.s32.totalorder %s123, %s137
    %p139 = scmp.eq.s32.totalorder %s17, 0
    %p140 = por %p138, %p139
    %s141 = ssub.s32 %s18, %s30
    %s142 = ssub.s32 %s19, %s26
    %s143 = sor.u32 %s141, %s142
    %p144 = scmp.eq.s32.totalorder %s143, 0
    %s146 = sadd.s32 %s145, 1
    %s147 = scalar_select %p144, %s145, %s146
    %p150 = pneg %p144
    %p151 = scmp.eq.s32.totalorder %s11, 3
    %p152 = por %p150, %p151
    %p153 = scmp.ne.s32.totalorder %s145, %s148
    %p154 = scmp.eq.s32.totalorder %s11, 0
    %p155 = por %p153, %p154
    %p156 = scmp.ne.s32.totalorder %s145, %s148
    %p157 = scmp.eq.s32.totalorder %s16, 3
    %p158 = por %p156, %p157
    %p159 = scmp.ne.s32.totalorder %s148, %s149
    %p160 = scmp.eq.s32.totalorder %s16, 0
    %p161 = por %p159, %p160
    %p162 = scmp.ne.s32.totalorder %s148, %s149
    %p163 = scmp.eq.s32.totalorder %s17, 3
    %p164 = por %p162, %p163
    %p166 = scmp.ne.s32.totalorder %s149, %s165
    %p167 = scmp.eq.s32.totalorder %s17, 0
    %p168 = por %p166, %p167
    %p169 = scmp.le.s32.totalorder 1, %s11
    %p170 = scmp.lt.s32.totalorder %s11, 5
    %p171 = pnand %p169, %p170
    %p172 = pneg %p171
    // Predicated region
    $region9: #{resblock1_forward.3} parent=5 // pred_check
      _
    $region10: #{resblock1_forward.3} parent=5 // pred_check_branch
      %174 = sbr.rel (%p171) target = $region12
    $region11: #{resblock1_forward.3} parent=5 // pred_region
      %s175 = ssub.s32 %s11, 1
      // Predicated region
      $region13: #{resblock1_forward.3} parent=11 // pred_check
        %p176 = pneg %p70
      $region14: #{resblock1_forward.3} parent=11 // pred_check_branch
        %178 = sbr.rel (%p176) target = $region16
      $region15: #{resblock1_forward.3} parent=11 // pred_region
        _
      $region16: #{resblock1_forward.3} parent=11 // pred_fallthru
        _
      // Predicated region
      $region17: #{resblock1_forward.3} parent=11 // pred_check
        %p179 = pneg %p91
      $region18: #{resblock1_forward.3} parent=11 // pred_check_branch
        %181 = sbr.rel (%p179) target = $region20
      $region19: #{resblock1_forward.3} parent=11 // pred_region
        _
      $region20: #{resblock1_forward.3} parent=11 // pred_fallthru
        _
      // Predicated region
      $region21: #{resblock1_forward.3} parent=11 // pred_check
        %p182 = pneg %p112
      $region22: #{resblock1_forward.3} parent=11 // pred_check_branch
        %184 = sbr.rel (%p182) target = $region24
      $region23: #{resblock1_forward.3} parent=11 // pred_region
        _
      $region24: #{resblock1_forward.3} parent=11 // pred_fallthru
        _
      // Predicated region
      $region25: #{resblock1_forward.3} parent=11 // pred_check
        %p185 = pneg %p133
      $region26: #{resblock1_forward.3} parent=11 // pred_check_branch
        %187 = sbr.rel (%p185) target = $region28
      $region27: #{resblock1_forward.3} parent=11 // pred_region
        _
      $region28: #{resblock1_forward.3} parent=11 // pred_fallthru
        _
    $region12: #{resblock1_forward.3} parent=5 // pred_fallthru
      _
    %p188 = scmp.lt.s32.totalorder %s11, 4
    // Predicated region
    $region29: #{resblock1_forward.3} parent=5 // pred_check
      %p189 = pneg %p188
    $region30: #{resblock1_forward.3} parent=5 // pred_check_branch
      %191 = sbr.rel (%p189) target = $region32
    $region31: #{resblock1_forward.3} parent=5 // pred_region
      // Predicated region
      $region33: #{resblock1_forward.3} parent=31 // pred_check
        %p192 = pneg %p43
      $region34: #{resblock1_forward.3} parent=31 // pred_check_branch
        %194 = sbr.rel (%p192) target = $region36
      $region35: #{resblock1_forward.3} parent=31 // pred_region
        %p195 = scmp.lt.s32.totalorder %s18, 1
        %s196 = scalar_select %p195, %s18, 1
        %s197 = smul.addr %s196, 32
        %s198 = smul.addr %s197, 8
        %s199 = scalar_lea.vmem %s0, %s198
      $region36: #{resblock1_forward.3} parent=31 // pred_fallthru
        _
    $region32: #{resblock1_forward.3} parent=5 // pred_fallthru
      _
    %p200 = scmp.le.s32.totalorder 1, %s11
    %p201 = scmp.lt.s32.totalorder %s11, 5
    %p202 = pnand %p200, %p201
    %p203 = pneg %p202
    // Predicated region
    $region37: #{resblock1_forward.3} parent=5 // pred_check
      _
    $region38: #{resblock1_forward.3} parent=5 // pred_check_branch
      %205 = sbr.rel (%p202) target = $region40
    $region39: #{resblock1_forward.3} parent=5 // pred_region
      %s206 = ssub.s32 %s11, 1
      %p207 = scmp.lt.s32.totalorder %s20, 1
      %s208 = scalar_select %p207, %s20, 1
      %s209 = smul.addr %s208, 32
      %s210 = smul.addr %s209, 8
      %s211 = scalar_lea.vmem %s0, %s210
      %p212 = pneg %p49
      %p213 = pneg %p46
      %p214 = pneg %p70
      %p215 = pneg %p67
      %p216 = pneg %p91
      %p217 = pneg %p88
      %p218 = pneg %p112
      %p219 = pneg %p109
      %p220 = pneg %p133
      %p221 = pneg %p130
      %p222 = pneg %p161
      %p223 = pneg %p158
      %s224 = smul.u32 16, %s21
      %p225 = scmp.lt.s32.totalorder %s20, 1
      %s226 = scalar_select %p225, %s20, 1
      %p227 = scmp.lt.s32.totalorder %s224, 31
      %s228 = scalar_select %p227, %s224, 31
      %s229 = smul.addr %s226, 32
      %s230 = sadd.s32 %s228, %s229
      %s231 = smul.addr %s230, 8
      %s232 = scalar_lea.vmem %s5, %s231
      %p233 = scmp.lt.s32.totalorder %s20, 1
      %s234 = scalar_select %p233, %s20, 1
      %s235 = smul.addr %s234, 32
      %s236 = smul.addr %s235, 8
      %s237 = scalar_lea.vmem %s0, %s236
      %s238 = smul.u32 16, %s21
      %p239 = scmp.lt.s32.totalorder %s20, 1
      %s240 = scalar_select %p239, %s20, 1
      %p241 = scmp.lt.s32.totalorder %s238, 31
      %s242 = scalar_select %p241, %s238, 31
      %s243 = smul.addr %s240, 32
      %s244 = sadd.s32 %s242, %s243
      %s245 = smul.addr %s244, 8
      %s246 = scalar_lea.vmem %s5, %s245
      %s247 = smul.u32 16, %s21
      %p248 = scmp.eq.s32.totalorder %s21, 0
      // Predicated region
      $region41: #{resblock1_forward.3} parent=39 // pred_check
        %p249 = pneg %p248
      $region42: #{resblock1_forward.3} parent=39 // pred_check_branch
        %251 = sbr.rel (%p249) target = $region44
      $region43: #{resblock1_forward.3} parent=39 // pred_region
        %252 = vst [vmem:[#allocation2] sm:$0xff] 0.0
        %253 = vst [vmem:[#allocation2 + $0x108] sm:$0xff] 0.0
        loop: start=0, step=1, limit=2
        $region45: #{resblock1_forward.3} parent=43 // loop_pre_header
          _
        $region46: #{resblock1_forward.3} parent=43 // loop_header
          %s255 = sphi 0, %s259
          %p256 = scmp.ge.s32.totalorder %s255, 2
        $region47: #{resblock1_forward.3} parent=43 // loop_header_branch
          %258 = sbr.rel (%p256) target = $region51
        $region48: #{resblock1_forward.3} parent=43 // loop_body
          %s260 = smul.u32 %s255, 128
          %s261 = scalar_lea.vmem %s237, %s260
          %v262 = vld [vmem:[%s261] sm:$0xff]
          %v263 = vld [vmem:[%s261 + $0x8] sm:$0xff]
          %v264 = vld [vmem:[%s261 + $0x10] sm:$0xff]
          %v265 = vld [vmem:[%s261 + $0x18] sm:$0xff]
          %v266 = vld [vmem:[%s261 + $0x20] sm:$0xff]
          %v267 = vld [vmem:[%s261 + $0x28] sm:$0xff]
          %v268 = vld [vmem:[%s261 + $0x30] sm:$0xff]
          %v269 = vld [vmem:[%s261 + $0x38] sm:$0xff]
          %v270 = vld [vmem:[%s261 + $0x40] sm:$0xff]
          %v271 = vld [vmem:[%s261 + $0x48] sm:$0xff]
          %v272 = vld [vmem:[%s261 + $0x50] sm:$0xff]
          %v273 = vld [vmem:[%s261 + $0x58] sm:$0xff]
          %v274 = vld [vmem:[%s261 + $0x60] sm:$0xff]
          %v275 = vld [vmem:[%s261 + $0x68] sm:$0xff]
          %v276 = vld [vmem:[%s261 + $0x70] sm:$0xff]
          %v277 = vld [vmem:[%s261 + $0x78] sm:$0xff]
          %vm278 = vcmp.ge.f32.partialorder %v262, 0.0
          %vm279 = vcmp.ge.f32.partialorder %v263, 0.0
          %vm280 = vcmp.ge.f32.partialorder %v264, 0.0
          %vm281 = vcmp.ge.f32.partialorder %v265, 0.0
          %vm282 = vcmp.ge.f32.partialorder %v266, 0.0
          %vm283 = vcmp.ge.f32.partialorder %v267, 0.0
          %vm284 = vcmp.ge.f32.partialorder %v268, 0.0
          %vm285 = vcmp.ge.f32.partialorder %v269, 0.0
          %vm286 = vcmp.ge.f32.partialorder %v270, 0.0
          %vm287 = vcmp.ge.f32.partialorder %v271, 0.0
          %vm288 = vcmp.ge.f32.partialorder %v272, 0.0
          %vm289 = vcmp.ge.f32.partialorder %v273, 0.0
          %vm290 = vcmp.ge.f32.partialorder %v274, 0.0
          %vm291 = vcmp.ge.f32.partialorder %v275, 0.0
          %vm292 = vcmp.ge.f32.partialorder %v276, 0.0
          %vm293 = vcmp.ge.f32.partialorder %v277, 0.0
          %v294 = vmul.f32 %v262, 0.1
          %v295 = vmul.f32 %v263, 0.1
          %v296 = vmul.f32 %v264, 0.1
          %v297 = vmul.f32 %v265, 0.1
          %v298 = vmul.f32 %v266, 0.1
          %v299 = vmul.f32 %v267, 0.1
          %v300 = vmul.f32 %v268, 0.1
          %v301 = vmul.f32 %v269, 0.1
          %v302 = vmul.f32 %v270, 0.1
          %v303 = vmul.f32 %v271, 0.1
          %v304 = vmul.f32 %v272, 0.1
          %v305 = vmul.f32 %v273, 0.1
          %v306 = vmul.f32 %v274, 0.1
          %v307 = vmul.f32 %v275, 0.1
          %v308 = vmul.f32 %v276, 0.1
          %v309 = vmul.f32 %v277, 0.1
          %v310 = vsel %vm278, %v262, %v294
          %v311 = vsel %vm279, %v263, %v295
          %v312 = vsel %vm280, %v264, %v296
          %v313 = vsel %vm281, %v265, %v297
          %v314 = vsel %vm282, %v266, %v298
          %v315 = vsel %vm283, %v267, %v299
          %v316 = vsel %vm284, %v268, %v300
          %v317 = vsel %vm285, %v269, %v301
          %v318 = vsel %vm286, %v270, %v302
          %v319 = vsel %vm287, %v271, %v303
          %v320 = vsel %vm288, %v272, %v304
          %v321 = vsel %vm289, %v273, %v305
          %v322 = vsel %vm290, %v274, %v306
          %v323 = vsel %vm291, %v275, %v307
          %v324 = vsel %vm292, %v276, %v308
          %v325 = vsel %vm293, %v277, %v309
          %s326 = sadd.s32 %s260, 8
          %s327 = scalar_lea.vmem [#allocation2], %s326
          %328 = vst [vmem:[%s327] sm:$0xff] %v310
          %329 = vst [vmem:[%s327 + $0x8] sm:$0xff] %v311
          %330 = vst [vmem:[%s327 + $0x10] sm:$0xff] %v312
          %331 = vst [vmem:[%s327 + $0x18] sm:$0xff] %v313
          %332 = vst [vmem:[%s327 + $0x20] sm:$0xff] %v314
          %333 = vst [vmem:[%s327 + $0x28] sm:$0xff] %v315
          %334 = vst [vmem:[%s327 + $0x30] sm:$0xff] %v316
          %335 = vst [vmem:[%s327 + $0x38] sm:$0xff] %v317
          %336 = vst [vmem:[%s327 + $0x40] sm:$0xff] %v318
          %337 = vst [vmem:[%s327 + $0x48] sm:$0xff] %v319
          %338 = vst [vmem:[%s327 + $0x50] sm:$0xff] %v320
          %339 = vst [vmem:[%s327 + $0x58] sm:$0xff] %v321
          %340 = vst [vmem:[%s327 + $0x60] sm:$0xff] %v322
          %341 = vst [vmem:[%s327 + $0x68] sm:$0xff] %v323
          %342 = vst [vmem:[%s327 + $0x70] sm:$0xff] %v324
          %343 = vst [vmem:[%s327 + $0x78] sm:$0xff] %v325
        $region49: #{resblock1_forward.3} parent=43 // loop_footer
          %s259 = sadd.s32 1, %s255
        $region50: #{resblock1_forward.3} parent=43 // loop_footer_branch
          %254 = sbr.rel target = $region46
        $region51: #{resblock1_forward.3} parent=43 // loop_exit
          _
      $region44: #{resblock1_forward.3} parent=39 // pred_fallthru
        _
      %s344 = smul.u32 %s21, 128
      %s345 = sadd.s32 %s344, 6
      %s346 = scalar_lea.vmem [#allocation2], %s345
      %v347 = vld [vmem:[%s346] sm:$0xff]
      %v348 = vld [vmem:[%s346 + $0x8] sm:$0xff]
      %v349 = vld [vmem:[%s346 + $0x10] sm:$0xff]
      %v350 = vld [vmem:[%s346 + $0x18] sm:$0xff]
      %v351 = vld [vmem:[%s346 + $0x20] sm:$0xff]
      %v352 = vld [vmem:[%s346 + $0x28] sm:$0xff]
      %v353 = vld [vmem:[%s346 + $0x30] sm:$0xff]
      %v354 = vld [vmem:[%s346 + $0x38] sm:$0xff]
      %v355 = vld [vmem:[%s346 + $0x40] sm:$0xff]
      %v356 = vld [vmem:[%s346 + $0x48] sm:$0xff]
      %v357 = vld [vmem:[%s346 + $0x50] sm:$0xff]
      %v358 = vld [vmem:[%s346 + $0x58] sm:$0xff]
      %v359 = vld [vmem:[%s346 + $0x60] sm:$0xff]
      %v360 = vld [vmem:[%s346 + $0x68] sm:$0xff]
      %v361 = vld [vmem:[%s346 + $0x70] sm:$0xff]
      %v362 = vld [vmem:[%s346 + $0x78] sm:$0xff]
      %v363 = vld [vmem:[%s346 + $0x80] sm:$0x3]
      %v364 = vpack.c.bf16 %v348, %v347
      %v365 = vpack.c.bf16 %v350, %v349
      %v366 = vpack.c.bf16 %v352, %v351
      %v367 = vpack.c.bf16 %v354, %v353
      %v368 = vpack.c.bf16 %v356, %v355
      %v369 = vpack.c.bf16 %v358, %v357
      %v370 = vpack.c.bf16 %v360, %v359
      %v371 = vpack.c.bf16 %v362, %v361
      %v372 = vpack.c.bf16 %v363, %v363
      %v373 = vld [vmem:[%s1] sm:$0xf]
      %v374 = vld [vmem:[%s1 + $0x4] sm:$0xf]
      %v375 = vld [vmem:[%s1 + $0x8] sm:$0xf]
      %v376 = vld [vmem:[%s1 + $0xc] sm:$0xf]
      %v377 = vld [vmem:[%s1 + $0x10] sm:$0xf]
      %v378 = vld [vmem:[%s1 + $0x14] sm:$0xf]
      %v379 = vld [vmem:[%s1 + $0x18] sm:$0xf]
      %v380 = vld [vmem:[%s1 + $0x1c] sm:$0xf]
      %v381 = vld [vmem:[%s1 + $0x20] sm:$0xf]
      %v382 = vld [vmem:[%s1 + $0x24] sm:$0xf]
      %v383 = vld [vmem:[%s1 + $0x28] sm:$0xf]
      %v384 = vld [vmem:[%s1 + $0x2c] sm:$0xf]
      %v385 = vld [vmem:[%s1 + $0x30] sm:$0xf]
      %v386 = vld [vmem:[%s1 + $0x34] sm:$0xf]
      %v387 = vld [vmem:[%s1 + $0x38] sm:$0xf]
      %v388 = vld [vmem:[%s1 + $0x3c] sm:$0xf]
      %s389 = sadd.s32 %s344, 7
      %s390 = scalar_lea.vmem [#allocation2], %s389
      %v391 = vld [vmem:[%s390] sm:$0xff]
      %v392 = vld [vmem:[%s390 + $0x8] sm:$0xff]
      %v393 = vld [vmem:[%s390 + $0x10] sm:$0xff]
      %v394 = vld [vmem:[%s390 + $0x18] sm:$0xff]
      %v395 = vld [vmem:[%s390 + $0x20] sm:$0xff]
      %v396 = vld [vmem:[%s390 + $0x28] sm:$0xff]
      %v397 = vld [vmem:[%s390 + $0x30] sm:$0xff]
      %v398 = vld [vmem:[%s390 + $0x38] sm:$0xff]
      %v399 = vld [vmem:[%s390 + $0x40] sm:$0xff]
      %v400 = vld [vmem:[%s390 + $0x48] sm:$0xff]
      %v401 = vld [vmem:[%s390 + $0x50] sm:$0xff]
      %v402 = vld [vmem:[%s390 + $0x58] sm:$0xff]
      %v403 = vld [vmem:[%s390 + $0x60] sm:$0xff]
      %v404 = vld [vmem:[%s390 + $0x68] sm:$0xff]
      %v405 = vld [vmem:[%s390 + $0x70] sm:$0xff]
      %v406 = vld [vmem:[%s390 + $0x78] sm:$0xff]
      %v407 = vld [vmem:[%s390 + $0x80] sm:$0x3]
      %v408 = vpack.c.bf16 %v392, %v391
      %v409 = vpack.c.bf16 %v394, %v393
      %v410 = vpack.c.bf16 %v396, %v395
      %v411 = vpack.c.bf16 %v398, %v397
      %v412 = vpack.c.bf16 %v400, %v399
      %v413 = vpack.c.bf16 %v402, %v401
      %v414 = vpack.c.bf16 %v404, %v403
      %v415 = vpack.c.bf16 %v406, %v405
      %v416 = vpack.c.bf16 %v407, %v407
      %s417 = scalar_lea.vmem %s1, 64
      %v418 = vld [vmem:[%s417] sm:$0xf]
      %v419 = vld [vmem:[%s417 + $0x4] sm:$0xf]
      %v420 = vld [vmem:[%s417 + $0x8] sm:$0xf]
      %v421 = vld [vmem:[%s417 + $0xc] sm:$0xf]
      %v422 = vld [vmem:[%s417 + $0x10] sm:$0xf]
      %v423 = vld [vmem:[%s417 + $0x14] sm:$0xf]
      %v424 = vld [vmem:[%s417 + $0x18] sm:$0xf]
      %v425 = vld [vmem:[%s417 + $0x1c] sm:$0xf]
      %v426 = vld [vmem:[%s417 + $0x20] sm:$0xf]
      %v427 = vld [vmem:[%s417 + $0x24] sm:$0xf]
      %v428 = vld [vmem:[%s417 + $0x28] sm:$0xf]
      %v429 = vld [vmem:[%s417 + $0x2c] sm:$0xf]
      %v430 = vld [vmem:[%s417 + $0x30] sm:$0xf]
      %v431 = vld [vmem:[%s417 + $0x34] sm:$0xf]
      %v432 = vld [vmem:[%s417 + $0x38] sm:$0xf]
      %v433 = vld [vmem:[%s417 + $0x3c] sm:$0xf]
      %v450 = vunpack.c.l.b16 %v418
      %v451 = vunpack.c.l.b16 %v419
      %v452 = vunpack.c.l.b16 %v420
      %v453 = vunpack.c.l.b16 %v421
      %v454 = vunpack.c.l.b16 %v422
      %v455 = vunpack.c.l.b16 %v423
      %v456 = vunpack.c.l.b16 %v424
      %v457 = vunpack.c.l.b16 %v425
      %v458 = vunpack.c.l.b16 %v426
      %v459 = vunpack.c.l.b16 %v427
      %v460 = vunpack.c.l.b16 %v428
      %v461 = vunpack.c.l.b16 %v429
      %v462 = vunpack.c.l.b16 %v430
      %v463 = vunpack.c.l.b16 %v431
      %v464 = vunpack.c.l.b16 %v432
      %v465 = vunpack.c.l.b16 %v433
      %v466 = vpack.c.b16 %v451, %v450
      %v467 = vpack.c.b16 %v453, %v452
      %v468 = vpack.c.b16 %v455, %v454
      %v469 = vpack.c.b16 %v457, %v456
      %v470 = vpack.c.b16 %v459, %v458
      %v471 = vpack.c.b16 %v461, %v460
      %v472 = vpack.c.b16 %v463, %v462
      %v473 = vpack.c.b16 %v465, %v464
      %482 = vmatpush.bf16.msra.mxu0 %v473
      %483 = vmatpush.bf16.msra.mxu0 %v472
      %484 = vmatpush.bf16.msra.mxu0 %v471
      %485 = vmatpush.bf16.msra.mxu0 %v470
      %486 = vmatpush.bf16.msra.mxu0 %v469
      %487 = vmatpush.bf16.msra.mxu0 %v468
      %488 = vmatpush.bf16.msra.mxu0 %v467
      %489 = vmatpush.bf16.msra.mxu0 %v466
      %490 = vmatmul.bf16.gmra.mxu0 %v408
      %v491 = vpop.f32.mrf.mxu0
      %v492 = vadd.f32 0.0, %v491
      %v493 = vpop.f32.mrf.mxu0
      %v494 = vadd.f32 0.0, %v493
      %495 = vmatmul.bf16.gmra.mxu0 %v409
      %v496 = vpop.f32.mrf.mxu0
      %v497 = vadd.f32 0.0, %v496
      %v498 = vpop.f32.mrf.mxu0
      %v499 = vadd.f32 0.0, %v498
      %500 = vmatmul.bf16.gmra.mxu0 %v410
      %v501 = vpop.f32.mrf.mxu0
      %v502 = vadd.f32 0.0, %v501
      %v503 = vpop.f32.mrf.mxu0
      %v504 = vadd.f32 0.0, %v503
      %505 = vmatmul.bf16.gmra.mxu0 %v411
      %v506 = vpop.f32.mrf.mxu0
      %v507 = vadd.f32 0.0, %v506
      %v508 = vpop.f32.mrf.mxu0
      %v509 = vadd.f32 0.0, %v508
      %510 = vmatmul.bf16.gmra.mxu0 %v412
      %v511 = vpop.f32.mrf.mxu0
      %v512 = vadd.f32 0.0, %v511
      %v513 = vpop.f32.mrf.mxu0
      %v514 = vadd.f32 0.0, %v513
      %515 = vmatmul.bf16.gmra.mxu0 %v413
      %v516 = vpop.f32.mrf.mxu0
      %v517 = vadd.f32 0.0, %v516
      %v518 = vpop.f32.mrf.mxu0
      %v519 = vadd.f32 0.0, %v518
      %520 = vmatmul.bf16.gmra.mxu0 %v414
      %v521 = vpop.f32.mrf.mxu0
      %v522 = vadd.f32 0.0, %v521
      %v523 = vpop.f32.mrf.mxu0
      %v524 = vadd.f32 0.0, %v523
      %525 = vmatmul.bf16.gmra.mxu0 %v415
      %v526 = vpop.f32.mrf.mxu0
      %v527 = vadd.f32 0.0, %v526
      %v528 = vpop.f32.mrf.mxu0
      %v529 = vadd.f32 0.0, %v528
      %530 = vmatmul.bf16.gmra.mxu0 %v416
      %v531 = vpop.f32.mrf.mxu0
      %v532 = vadd.f32 0.0, %v531
      %v533 = vpop.f32.mrf.mxu0
      %534 = vdwg.mxu0
      %v551 = vunpack.c.l.b16 %v373
      %v552 = vunpack.c.l.b16 %v374
      %v553 = vunpack.c.l.b16 %v375
      %v554 = vunpack.c.l.b16 %v376
      %v555 = vunpack.c.l.b16 %v377
      %v556 = vunpack.c.l.b16 %v378
      %v557 = vunpack.c.l.b16 %v379
      %v558 = vunpack.c.l.b16 %v380
      %v559 = vunpack.c.l.b16 %v381
      %v560 = vunpack.c.l.b16 %v382
      %v561 = vunpack.c.l.b16 %v383
      %v562 = vunpack.c.l.b16 %v384
      %v563 = vunpack.c.l.b16 %v385
      %v564 = vunpack.c.l.b16 %v386
      %v565 = vunpack.c.l.b16 %v387
      %v566 = vunpack.c.l.b16 %v388
      %v567 = vpack.c.b16 %v552, %v551
      %v568 = vpack.c.b16 %v554, %v553
      %v569 = vpack.c.b16 %v556, %v555
      %v570 = vpack.c.b16 %v558, %v557
      %v571 = vpack.c.b16 %v560, %v559
      %v572 = vpack.c.b16 %v562, %v561
      %v573 = vpack.c.b16 %v564, %v563
      %v574 = vpack.c.b16 %v566, %v565
      %583 = vmatpush.bf16.msra.mxu0 %v574
      %584 = vmatpush.bf16.msra.mxu0 %v573
      %585 = vmatpush.bf16.msra.mxu0 %v572
      %586 = vmatpush.bf16.msra.mxu0 %v571
      %587 = vmatpush.bf16.msra.mxu0 %v570
      %588 = vmatpush.bf16.msra.mxu0 %v569
      %589 = vmatpush.bf16.msra.mxu0 %v568
      %590 = vmatpush.bf16.msra.mxu0 %v567
      %591 = vmatmul.bf16.gmra.mxu0 %v364
      %v592 = vpop.f32.mrf.mxu0
      %v593 = vadd.f32 %v492, %v592
      %v594 = vpop.f32.mrf.mxu0
      %v595 = vadd.f32 %v494, %v594
      %596 = vmatmul.bf16.gmra.mxu0 %v365
      %v597 = vpop.f32.mrf.mxu0
      %v598 = vadd.f32 %v497, %v597
      %v599 = vpop.f32.mrf.mxu0
      %v600 = vadd.f32 %v499, %v599
      %601 = vmatmul.bf16.gmra.mxu0 %v366
      %v602 = vpop.f32.mrf.mxu0
      %v603 = vadd.f32 %v502, %v602
      %v604 = vpop.f32.mrf.mxu0
      %v605 = vadd.f32 %v504, %v604
      %606 = vmatmul.bf16.gmra.mxu0 %v367
      %v607 = vpop.f32.mrf.mxu0
      %v608 = vadd.f32 %v507, %v607
      %v609 = vpop.f32.mrf.mxu0
      %v610 = vadd.f32 %v509, %v609
      %611 = vmatmul.bf16.gmra.mxu0 %v368
      %v612 = vpop.f32.mrf.mxu0
      %v613 = vadd.f32 %v512, %v612
      %v614 = vpop.f32.mrf.mxu0
      %v615 = vadd.f32 %v514, %v614
      %616 = vmatmul.bf16.gmra.mxu0 %v369
      %v617 = vpop.f32.mrf.mxu0
      %v618 = vadd.f32 %v517, %v617
      %v619 = vpop.f32.mrf.mxu0
      %v620 = vadd.f32 %v519, %v619
      %621 = vmatmul.bf16.gmra.mxu0 %v370
      %v622 = vpop.f32.mrf.mxu0
      %v623 = vadd.f32 %v522, %v622
      %v624 = vpop.f32.mrf.mxu0
      %v625 = vadd.f32 %v524, %v624
      %626 = vmatmul.bf16.gmra.mxu0 %v371
      %v627 = vpop.f32.mrf.mxu0
      %v628 = vadd.f32 %v527, %v627
      %v629 = vpop.f32.mrf.mxu0
      %v630 = vadd.f32 %v529, %v629
      %631 = vmatmul.bf16.gmra.mxu0 %v372
      %v632 = vpop.f32.mrf.mxu0
      %v633 = vadd.f32 %v532, %v632
      %v634 = vpop.f32.mrf.mxu0
      %635 = vdwg.mxu0
      %s636 = sadd.s32 %s344, 8
      %s637 = scalar_lea.vmem [#allocation2], %s636
      %v638 = vld [vmem:[%s637] sm:$0xff]
      %v639 = vld [vmem:[%s637 + $0x8] sm:$0xff]
      %v640 = vld [vmem:[%s637 + $0x10] sm:$0xff]
      %v641 = vld [vmem:[%s637 + $0x18] sm:$0xff]
      %v642 = vld [vmem:[%s637 + $0x20] sm:$0xff]
      %v643 = vld [vmem:[%s637 + $0x28] sm:$0xff]
      %v644 = vld [vmem:[%s637 + $0x30] sm:$0xff]
      %v645 = vld [vmem:[%s637 + $0x38] sm:$0xff]
      %v646 = vld [vmem:[%s637 + $0x40] sm:$0xff]
      %v647 = vld [vmem:[%s637 + $0x48] sm:$0xff]
      %v648 = vld [vmem:[%s637 + $0x50] sm:$0xff]
      %v649 = vld [vmem:[%s637 + $0x58] sm:$0xff]
      %v650 = vld [vmem:[%s637 + $0x60] sm:$0xff]
      %v651 = vld [vmem:[%s637 + $0x68] sm:$0xff]
      %v652 = vld [vmem:[%s637 + $0x70] sm:$0xff]
      %v653 = vld [vmem:[%s637 + $0x78] sm:$0xff]
      %v654 = vld [vmem:[%s637 + $0x80] sm:$0x3]
      %v655 = vpack.c.bf16 %v639, %v638
      %v656 = vpack.c.bf16 %v641, %v640
      %v657 = vpack.c.bf16 %v643, %v642
      %v658 = vpack.c.bf16 %v645, %v644
      %v659 = vpack.c.bf16 %v647, %v646
      %v660 = vpack.c.bf16 %v649, %v648
      %v661 = vpack.c.bf16 %v651, %v650
      %v662 = vpack.c.bf16 %v653, %v652
      %v663 = vpack.c.bf16 %v654, %v654
      %s664 = scalar_lea.vmem %s1, 128
      %v665 = vld [vmem:[%s664] sm:$0xf]
      %v666 = vld [vmem:[%s664 + $0x4] sm:$0xf]
      %v667 = vld [vmem:[%s664 + $0x8] sm:$0xf]
      %v668 = vld [vmem:[%s664 + $0xc] sm:$0xf]
      %v669 = vld [vmem:[%s664 + $0x10] sm:$0xf]
      %v670 = vld [vmem:[%s664 + $0x14] sm:$0xf]
      %v671 = vld [vmem:[%s664 + $0x18] sm:$0xf]
      %v672 = vld [vmem:[%s664 + $0x1c] sm:$0xf]
      %v673 = vld [vmem:[%s664 + $0x20] sm:$0xf]
      %v674 = vld [vmem:[%s664 + $0x24] sm:$0xf]
      %v675 = vld [vmem:[%s664 + $0x28] sm:$0xf]
      %v676 = vld [vmem:[%s664 + $0x2c] sm:$0xf]
      %v677 = vld [vmem:[%s664 + $0x30] sm:$0xf]
      %v678 = vld [vmem:[%s664 + $0x34] sm:$0xf]
      %v679 = vld [vmem:[%s664 + $0x38] sm:$0xf]
      %v680 = vld [vmem:[%s664 + $0x3c] sm:$0xf]
      %v697 = vunpack.c.l.b16 %v665
      %v698 = vunpack.c.l.b16 %v666
      %v699 = vunpack.c.l.b16 %v667
      %v700 = vunpack.c.l.b16 %v668
      %v701 = vunpack.c.l.b16 %v669
      %v702 = vunpack.c.l.b16 %v670
      %v703 = vunpack.c.l.b16 %v671
      %v704 = vunpack.c.l.b16 %v672
      %v705 = vunpack.c.l.b16 %v673
      %v706 = vunpack.c.l.b16 %v674
      %v707 = vunpack.c.l.b16 %v675
      %v708 = vunpack.c.l.b16 %v676
      %v709 = vunpack.c.l.b16 %v677
      %v710 = vunpack.c.l.b16 %v678
      %v711 = vunpack.c.l.b16 %v679
      %v712 = vunpack.c.l.b16 %v680
      %v713 = vpack.c.b16 %v698, %v697
      %v714 = vpack.c.b16 %v700, %v699
      %v715 = vpack.c.b16 %v702, %v701
      %v716 = vpack.c.b16 %v704, %v703
      %v717 = vpack.c.b16 %v706, %v705
      %v718 = vpack.c.b16 %v708, %v707
      %v719 = vpack.c.b16 %v710, %v709
      %v720 = vpack.c.b16 %v712, %v711
      %729 = vmatpush.bf16.msra.mxu0 %v720
      %730 = vmatpush.bf16.msra.mxu0 %v719
      %731 = vmatpush.bf16.msra.mxu0 %v718
      %732 = vmatpush.bf16.msra.mxu0 %v717
      %733 = vmatpush.bf16.msra.mxu0 %v716
      %734 = vmatpush.bf16.msra.mxu0 %v715
      %735 = vmatpush.bf16.msra.mxu0 %v714
      %736 = vmatpush.bf16.msra.mxu0 %v713
      %737 = vmatmul.bf16.gmra.mxu0 %v655
      %v738 = vpop.f32.mrf.mxu0
      %v739 = vadd.f32 0.0, %v738
      %v740 = vpop.f32.mrf.mxu0
      %v741 = vadd.f32 0.0, %v740
      %742 = vmatmul.bf16.gmra.mxu0 %v656
      %v743 = vpop.f32.mrf.mxu0
      %v744 = vadd.f32 0.0, %v743
      %v745 = vpop.f32.mrf.mxu0
      %v746 = vadd.f32 0.0, %v745
      %747 = vmatmul.bf16.gmra.mxu0 %v657
      %v748 = vpop.f32.mrf.mxu0
      %v749 = vadd.f32 0.0, %v748
      %v750 = vpop.f32.mrf.mxu0
      %v751 = vadd.f32 0.0, %v750
      %752 = vmatmul.bf16.gmra.mxu0 %v658
      %v753 = vpop.f32.mrf.mxu0
      %v754 = vadd.f32 0.0, %v753
      %v755 = vpop.f32.mrf.mxu0
      %v756 = vadd.f32 0.0, %v755
      %757 = vmatmul.bf16.gmra.mxu0 %v659
      %v758 = vpop.f32.mrf.mxu0
      %v759 = vadd.f32 0.0, %v758
      %v760 = vpop.f32.mrf.mxu0
      %v761 = vadd.f32 0.0, %v760
      %762 = vmatmul.bf16.gmra.mxu0 %v660
      %v763 = vpop.f32.mrf.mxu0
      %v764 = vadd.f32 0.0, %v763
      %v765 = vpop.f32.mrf.mxu0
      %v766 = vadd.f32 0.0, %v765
      %767 = vmatmul.bf16.gmra.mxu0 %v661
      %v768 = vpop.f32.mrf.mxu0
      %v769 = vadd.f32 0.0, %v768
      %v770 = vpop.f32.mrf.mxu0
      %v771 = vadd.f32 0.0, %v770
      %772 = vmatmul.bf16.gmra.mxu0 %v662
      %v773 = vpop.f32.mrf.mxu0
      %v774 = vadd.f32 0.0, %v773
      %v775 = vpop.f32.mrf.mxu0
      %v776 = vadd.f32 0.0, %v775
      %777 = vmatmul.bf16.gmra.mxu0 %v663
      %v778 = vpop.f32.mrf.mxu0
      %v779 = vadd.f32 0.0, %v778
      %v780 = vpop.f32.mrf.mxu0
      %781 = vdwg.mxu0
      %v782 = vadd.f32 %v593, %v739
      %v783 = vadd.f32 %v595, %v741
      %v784 = vadd.f32 %v598, %v744
      %v785 = vadd.f32 %v600, %v746
      %v786 = vadd.f32 %v603, %v749
      %v787 = vadd.f32 %v605, %v751
      %v788 = vadd.f32 %v608, %v754
      %v789 = vadd.f32 %v610, %v756
      %v790 = vadd.f32 %v613, %v759
      %v791 = vadd.f32 %v615, %v761
      %v792 = vadd.f32 %v618, %v764
      %v793 = vadd.f32 %v620, %v766
      %v794 = vadd.f32 %v623, %v769
      %v795 = vadd.f32 %v625, %v771
      %v796 = vadd.f32 %v628, %v774
      %v797 = vadd.f32 %v630, %v776
      %v798 = vadd.f32 %v633, %v779
      %v799 = vld [vmem:[%s2] sm:$0x1]
      %v801 = vperm.slane %v799, 0
      %v803 = vadd.f32 %v782, %v801
      %v804 = vadd.f32 %v783, %v801
      %v805 = vadd.f32 %v784, %v801
      %v806 = vadd.f32 %v785, %v801
      %v807 = vadd.f32 %v786, %v801
      %v808 = vadd.f32 %v787, %v801
      %v809 = vadd.f32 %v788, %v801
      %v810 = vadd.f32 %v789, %v801
      %v811 = vadd.f32 %v790, %v801
      %v812 = vadd.f32 %v791, %v801
      %v813 = vadd.f32 %v792, %v801
      %v814 = vadd.f32 %v793, %v801
      %v815 = vadd.f32 %v794, %v801
      %v816 = vadd.f32 %v795, %v801
      %v817 = vadd.f32 %v796, %v801
      %v818 = vadd.f32 %v797, %v801
      %v819 = vadd.f32 %v798, %v801
      %vm820 = vcmp.ge.f32.partialorder %v803, 0.0
      %vm821 = vcmp.ge.f32.partialorder %v804, 0.0
      %vm822 = vcmp.ge.f32.partialorder %v805, 0.0
      %vm823 = vcmp.ge.f32.partialorder %v806, 0.0
      %vm824 = vcmp.ge.f32.partialorder %v807, 0.0
      %vm825 = vcmp.ge.f32.partialorder %v808, 0.0
      %vm826 = vcmp.ge.f32.partialorder %v809, 0.0
      %vm827 = vcmp.ge.f32.partialorder %v810, 0.0
      %vm828 = vcmp.ge.f32.partialorder %v811, 0.0
      %vm829 = vcmp.ge.f32.partialorder %v812, 0.0
      %vm830 = vcmp.ge.f32.partialorder %v813, 0.0
      %vm831 = vcmp.ge.f32.partialorder %v814, 0.0
      %vm832 = vcmp.ge.f32.partialorder %v815, 0.0
      %vm833 = vcmp.ge.f32.partialorder %v816, 0.0
      %vm834 = vcmp.ge.f32.partialorder %v817, 0.0
      %vm835 = vcmp.ge.f32.partialorder %v818, 0.0
      %vm836 = vcmp.ge.f32.partialorder %v819, 0.0
      %v837 = vmul.f32 %v803, 0.1
      %v838 = vmul.f32 %v804, 0.1
      %v839 = vmul.f32 %v805, 0.1
      %v840 = vmul.f32 %v806, 0.1
      %v841 = vmul.f32 %v807, 0.1
      %v842 = vmul.f32 %v808, 0.1
      %v843 = vmul.f32 %v809, 0.1
      %v844 = vmul.f32 %v810, 0.1
      %v845 = vmul.f32 %v811, 0.1
      %v846 = vmul.f32 %v812, 0.1
      %v847 = vmul.f32 %v813, 0.1
      %v848 = vmul.f32 %v814, 0.1
      %v849 = vmul.f32 %v815, 0.1
      %v850 = vmul.f32 %v816, 0.1
      %v851 = vmul.f32 %v817, 0.1
      %v852 = vmul.f32 %v818, 0.1
      %v853 = vmul.f32 %v819, 0.1
      %v854 = vsel %vm820, %v803, %v837
      %v855 = vsel %vm821, %v804, %v838
      %v856 = vsel %vm822, %v805, %v839
      %v857 = vsel %vm823, %v806, %v840
      %v858 = vsel %vm824, %v807, %v841
      %v859 = vsel %vm825, %v808, %v842
      %v860 = vsel %vm826, %v809, %v843
      %v861 = vsel %vm827, %v810, %v844
      %v862 = vsel %vm828, %v811, %v845
      %v863 = vsel %vm829, %v812, %v846
      %v864 = vsel %vm830, %v813, %v847
      %v865 = vsel %vm831, %v814, %v848
      %v866 = vsel %vm832, %v815, %v849
      %v867 = vsel %vm833, %v816, %v850
      %v868 = vsel %vm834, %v817, %v851
      %v869 = vsel %vm835, %v818, %v852
      %v870 = vsel %vm836, %v819, %v853
      %s871 = ssub.s32 %s344, 1
      %v872 = vlaneseq
      %v873 = vshrl.u32 %v872, 7
      %v874 = vadd.s32 %v873, 8
      %v875 = vadd.s32 %v873, 16
      %v876 = vadd.s32 %v873, 24
      %v877 = vadd.s32 %v873, 32
      %v878 = vadd.s32 %v873, 40
      %v879 = vadd.s32 %v873, 48
      %v880 = vadd.s32 %v873, 56
      %v881 = vadd.s32 %v873, 64
      %v882 = vadd.s32 %v873, 72
      %v883 = vadd.s32 %v873, 80
      %v884 = vadd.s32 %v873, 88
      %v885 = vadd.s32 %v873, 96
      %v886 = vadd.s32 %v873, 104
      %v887 = vadd.s32 %v873, 112
      %v888 = vadd.s32 %v873, 120
      %v889 = vadd.s32 %v873, 128
      %v890 = vstv %s871
      %v891 = vadd.s32 %v890, %v873
      %v892 = vadd.s32 %v890, %v874
      %v893 = vadd.s32 %v890, %v875
      %v894 = vadd.s32 %v890, %v876
      %v895 = vadd.s32 %v890, %v877
      %v896 = vadd.s32 %v890, %v878
      %v897 = vadd.s32 %v890, %v879
      %v898 = vadd.s32 %v890, %v880
      %v899 = vadd.s32 %v890, %v881
      %v900 = vadd.s32 %v890, %v882
      %v901 = vadd.s32 %v890, %v883
      %v902 = vadd.s32 %v890, %v884
      %v903 = vadd.s32 %v890, %v885
      %v904 = vadd.s32 %v890, %v886
      %v905 = vadd.s32 %v890, %v887
      %v906 = vadd.s32 %v890, %v888
      %v907 = vadd.s32 %v890, %v889
      %vm908 = vcmp.ge.s32.totalorder %v891, 0
      %vm909 = vcmp.ge.s32.totalorder %v892, 0
      %vm910 = vcmp.ge.s32.totalorder %v893, 0
      %vm911 = vcmp.ge.s32.totalorder %v894, 0
      %vm912 = vcmp.ge.s32.totalorder %v895, 0
      %vm913 = vcmp.ge.s32.totalorder %v896, 0
      %vm914 = vcmp.ge.s32.totalorder %v897, 0
      %vm915 = vcmp.ge.s32.totalorder %v898, 0
      %vm916 = vcmp.ge.s32.totalorder %v899, 0
      %vm917 = vcmp.ge.s32.totalorder %v900, 0
      %vm918 = vcmp.ge.s32.totalorder %v901, 0
      %vm919 = vcmp.ge.s32.totalorder %v902, 0
      %vm920 = vcmp.ge.s32.totalorder %v903, 0
      %vm921 = vcmp.ge.s32.totalorder %v904, 0
      %vm922 = vcmp.ge.s32.totalorder %v905, 0
      %vm923 = vcmp.ge.s32.totalorder %v906, 0
      %vm924 = vcmp.ge.s32.totalorder %v907, 0
      %vm925 = vcmp.lt.s32.totalorder %v891, 256
      %vm926 = vcmp.lt.s32.totalorder %v892, 256
      %vm927 = vcmp.lt.s32.totalorder %v893, 256
      %vm928 = vcmp.lt.s32.totalorder %v894, 256
      %vm929 = vcmp.lt.s32.totalorder %v895, 256
      %vm930 = vcmp.lt.s32.totalorder %v896, 256
      %vm931 = vcmp.lt.s32.totalorder %v897, 256
      %vm932 = vcmp.lt.s32.totalorder %v898, 256
      %vm933 = vcmp.lt.s32.totalorder %v899, 256
      %vm934 = vcmp.lt.s32.totalorder %v900, 256
      %vm935 = vcmp.lt.s32.totalorder %v901, 256
      %vm936 = vcmp.lt.s32.totalorder %v902, 256
      %vm937 = vcmp.lt.s32.totalorder %v903, 256
      %vm938 = vcmp.lt.s32.totalorder %v904, 256
      %vm939 = vcmp.lt.s32.totalorder %v905, 256
      %vm940 = vcmp.lt.s32.totalorder %v906, 256
      %vm941 = vcmp.lt.s32.totalorder %v907, 256
      %vm942 = vmand %vm908, %vm925
      %vm943 = vmand %vm909, %vm926
      %vm944 = vmand %vm910, %vm927
      %vm945 = vmand %vm911, %vm928
      %vm946 = vmand %vm912, %vm929
      %vm947 = vmand %vm913, %vm930
      %vm948 = vmand %vm914, %vm931
      %vm949 = vmand %vm915, %vm932
      %vm950 = vmand %vm916, %vm933
      %vm951 = vmand %vm917, %vm934
      %vm952 = vmand %vm918, %vm935
      %vm953 = vmand %vm919, %vm936
      %vm954 = vmand %vm920, %vm937
      %vm955 = vmand %vm921, %vm938
      %vm956 = vmand %vm922, %vm939
      %vm957 = vmand %vm923, %vm940
      %vm958 = vmand %vm924, %vm941
      %v959 = vsel %vm942, 1, 0
      %v960 = vsel %vm943, 1, 0
      %v961 = vsel %vm944, 1, 0
      %v962 = vsel %vm945, 1, 0
      %v963 = vsel %vm946, 1, 0
      %v964 = vsel %vm947, 1, 0
      %v965 = vsel %vm948, 1, 0
      %v966 = vsel %vm949, 1, 0
      %v967 = vsel %vm950, 1, 0
      %v968 = vsel %vm951, 1, 0
      %v969 = vsel %vm952, 1, 0
      %v970 = vsel %vm953, 1, 0
      %v971 = vsel %vm954, 1, 0
      %v972 = vsel %vm955, 1, 0
      %v973 = vsel %vm956, 1, 0
      %v974 = vsel %vm957, 1, 0
      %v975 = vsel %vm958, 1, 0
      %vm976 = vcmp.eq.s32.totalorder %v959, 1
      %vm977 = vcmp.eq.s32.totalorder %v960, 1
      %vm978 = vcmp.eq.s32.totalorder %v961, 1
      %vm979 = vcmp.eq.s32.totalorder %v962, 1
      %vm980 = vcmp.eq.s32.totalorder %v963, 1
      %vm981 = vcmp.eq.s32.totalorder %v964, 1
      %vm982 = vcmp.eq.s32.totalorder %v965, 1
      %vm983 = vcmp.eq.s32.totalorder %v966, 1
      %vm984 = vcmp.eq.s32.totalorder %v967, 1
      %vm985 = vcmp.eq.s32.totalorder %v968, 1
      %vm986 = vcmp.eq.s32.totalorder %v969, 1
      %vm987 = vcmp.eq.s32.totalorder %v970, 1
      %vm988 = vcmp.eq.s32.totalorder %v971, 1
      %vm989 = vcmp.eq.s32.totalorder %v972, 1
      %vm990 = vcmp.eq.s32.totalorder %v973, 1
      %vm991 = vcmp.eq.s32.totalorder %v974, 1
      %vm992 = vcmp.eq.s32.totalorder %v975, 1
      %v993 = vsel %vm976, %v854, 0.0
      %v994 = vsel %vm977, %v855, 0.0
      %v995 = vsel %vm978, %v856, 0.0
      %v996 = vsel %vm979, %v857, 0.0
      %v997 = vsel %vm980, %v858, 0.0
      %v998 = vsel %vm981, %v859, 0.0
      %v999 = vsel %vm982, %v860, 0.0
      %v1000 = vsel %vm983, %v861, 0.0
      %v1001 = vsel %vm984, %v862, 0.0
      %v1002 = vsel %vm985, %v863, 0.0
      %v1003 = vsel %vm986, %v864, 0.0
      %v1004 = vsel %vm987, %v865, 0.0
      %v1005 = vsel %vm988, %v866, 0.0
      %v1006 = vsel %vm989, %v867, 0.0
      %v1007 = vsel %vm990, %v868, 0.0
      %v1008 = vsel %vm991, %v869, 0.0
      %v1009 = vsel %vm992, %v870, 0.0
      %1010 = vst [vmem:[#allocation3] sm:$0xff] %v993
      %1011 = vst [vmem:[#allocation3 + $0x8] sm:$0xff] %v994
      %1012 = vst [vmem:[#allocation3 + $0x10] sm:$0xff] %v995
      %1013 = vst [vmem:[#allocation3 + $0x18] sm:$0xff] %v996
      %1014 = vst [vmem:[#allocation3 + $0x20] sm:$0xff] %v997
      %1015 = vst [vmem:[#allocation3 + $0x28] sm:$0xff] %v998
      %1016 = vst [vmem:[#allocation3 + $0x30] sm:$0xff] %v999
      %1017 = vst [vmem:[#allocation3 + $0x38] sm:$0xff] %v1000
      %1018 = vst [vmem:[#allocation3 + $0x40] sm:$0xff] %v1001
      %1019 = vst [vmem:[#allocation3 + $0x48] sm:$0xff] %v1002
      %1020 = vst [vmem:[#allocation3 + $0x50] sm:$0xff] %v1003
      %1021 = vst [vmem:[#allocation3 + $0x58] sm:$0xff] %v1004
      %1022 = vst [vmem:[#allocation3 + $0x60] sm:$0xff] %v1005
      %1023 = vst [vmem:[#allocation3 + $0x68] sm:$0xff] %v1006
      %1024 = vst [vmem:[#allocation3 + $0x70] sm:$0xff] %v1007
      %1025 = vst [vmem:[#allocation3 + $0x78] sm:$0xff] %v1008
      %1026 = vst [vmem:[#allocation3 + $0x80] sm:$0x3] %v1009
      %v1027 = vld [vmem:[#allocation3] sm:$0xff]
      %v1028 = vld [vmem:[#allocation3 + $0x8] sm:$0xff]
      %v1029 = vld [vmem:[#allocation3 + $0x10] sm:$0xff]
      %v1030 = vld [vmem:[#allocation3 + $0x18] sm:$0xff]
      %v1031 = vld [vmem:[#allocation3 + $0x20] sm:$0xff]
      %v1032 = vld [vmem:[#allocation3 + $0x28] sm:$0xff]
      %v1033 = vld [vmem:[#allocation3 + $0x30] sm:$0xff]
      %v1034 = vld [vmem:[#allocation3 + $0x38] sm:$0xff]
      %v1035 = vld [vmem:[#allocation3 + $0x40] sm:$0xff]
      %v1036 = vld [vmem:[#allocation3 + $0x48] sm:$0xff]
      %v1037 = vld [vmem:[#allocation3 + $0x50] sm:$0xff]
      %v1038 = vld [vmem:[#allocation3 + $0x58] sm:$0xff]
      %v1039 = vld [vmem:[#allocation3 + $0x60] sm:$0xff]
      %v1040 = vld [vmem:[#allocation3 + $0x68] sm:$0xff]
      %v1041 = vld [vmem:[#allocation3 + $0x70] sm:$0xff]
      %v1042 = vld [vmem:[#allocation3 + $0x78] sm:$0xff]
      %v1043 = vpack.c.bf16 %v1028, %v1027
      %v1044 = vpack.c.bf16 %v1030, %v1029
      %v1045 = vpack.c.bf16 %v1032, %v1031
      %v1046 = vpack.c.bf16 %v1034, %v1033
      %v1047 = vpack.c.bf16 %v1036, %v1035
      %v1048 = vpack.c.bf16 %v1038, %v1037
      %v1049 = vpack.c.bf16 %v1040, %v1039
      %v1050 = vpack.c.bf16 %v1042, %v1041
      %v1051 = vld [vmem:[%s3] sm:$0xf]
      %v1052 = vld [vmem:[%s3 + $0x4] sm:$0xf]
      %v1053 = vld [vmem:[%s3 + $0x8] sm:$0xf]
      %v1054 = vld [vmem:[%s3 + $0xc] sm:$0xf]
      %v1055 = vld [vmem:[%s3 + $0x10] sm:$0xf]
      %v1056 = vld [vmem:[%s3 + $0x14] sm:$0xf]
      %v1057 = vld [vmem:[%s3 + $0x18] sm:$0xf]
      %v1058 = vld [vmem:[%s3 + $0x1c] sm:$0xf]
      %v1059 = vld [vmem:[%s3 + $0x20] sm:$0xf]
      %v1060 = vld [vmem:[%s3 + $0x24] sm:$0xf]
      %v1061 = vld [vmem:[%s3 + $0x28] sm:$0xf]
      %v1062 = vld [vmem:[%s3 + $0x2c] sm:$0xf]
      %v1063 = vld [vmem:[%s3 + $0x30] sm:$0xf]
      %v1064 = vld [vmem:[%s3 + $0x34] sm:$0xf]
      %v1065 = vld [vmem:[%s3 + $0x38] sm:$0xf]
      %v1066 = vld [vmem:[%s3 + $0x3c] sm:$0xf]
      %v1067 = vld [vmem:[#allocation3 + $0x1] sm:$0xff]
      %v1068 = vld [vmem:[#allocation3 + $0x9] sm:$0xff]
      %v1069 = vld [vmem:[#allocation3 + $0x11] sm:$0xff]
      %v1070 = vld [vmem:[#allocation3 + $0x19] sm:$0xff]
      %v1071 = vld [vmem:[#allocation3 + $0x21] sm:$0xff]
      %v1072 = vld [vmem:[#allocation3 + $0x29] sm:$0xff]
      %v1073 = vld [vmem:[#allocation3 + $0x31] sm:$0xff]
      %v1074 = vld [vmem:[#allocation3 + $0x39] sm:$0xff]
      %v1075 = vld [vmem:[#allocation3 + $0x41] sm:$0xff]
      %v1076 = vld [vmem:[#allocation3 + $0x49] sm:$0xff]
      %v1077 = vld [vmem:[#allocation3 + $0x51] sm:$0xff]
      %v1078 = vld [vmem:[#allocation3 + $0x59] sm:$0xff]
      %v1079 = vld [vmem:[#allocation3 + $0x61] sm:$0xff]
      %v1080 = vld [vmem:[#allocation3 + $0x69] sm:$0xff]
      %v1081 = vld [vmem:[#allocation3 + $0x71] sm:$0xff]
      %v1082 = vld [vmem:[#allocation3 + $0x79] sm:$0xff]
      %v1083 = vpack.c.bf16 %v1068, %v1067
      %v1084 = vpack.c.bf16 %v1070, %v1069
      %v1085 = vpack.c.bf16 %v1072, %v1071
      %v1086 = vpack.c.bf16 %v1074, %v1073
      %v1087 = vpack.c.bf16 %v1076, %v1075
      %v1088 = vpack.c.bf16 %v1078, %v1077
      %v1089 = vpack.c.bf16 %v1080, %v1079
      %v1090 = vpack.c.bf16 %v1082, %v1081
      %s1091 = scalar_lea.vmem %s3, 64
      %v1092 = vld [vmem:[%s1091] sm:$0xf]
      %v1093 = vld [vmem:[%s1091 + $0x4] sm:$0xf]
      %v1094 = vld [vmem:[%s1091 + $0x8] sm:$0xf]
      %v1095 = vld [vmem:[%s1091 + $0xc] sm:$0xf]
      %v1096 = vld [vmem:[%s1091 + $0x10] sm:$0xf]
      %v1097 = vld [vmem:[%s1091 + $0x14] sm:$0xf]
      %v1098 = vld [vmem:[%s1091 + $0x18] sm:$0xf]
      %v1099 = vld [vmem:[%s1091 + $0x1c] sm:$0xf]
      %v1100 = vld [vmem:[%s1091 + $0x20] sm:$0xf]
      %v1101 = vld [vmem:[%s1091 + $0x24] sm:$0xf]
      %v1102 = vld [vmem:[%s1091 + $0x28] sm:$0xf]
      %v1103 = vld [vmem:[%s1091 + $0x2c] sm:$0xf]
      %v1104 = vld [vmem:[%s1091 + $0x30] sm:$0xf]
      %v1105 = vld [vmem:[%s1091 + $0x34] sm:$0xf]
      %v1106 = vld [vmem:[%s1091 + $0x38] sm:$0xf]
      %v1107 = vld [vmem:[%s1091 + $0x3c] sm:$0xf]
      %v1124 = vunpack.c.l.b16 %v1092
      %v1125 = vunpack.c.l.b16 %v1093
      %v1126 = vunpack.c.l.b16 %v1094
      %v1127 = vunpack.c.l.b16 %v1095
      %v1128 = vunpack.c.l.b16 %v1096
      %v1129 = vunpack.c.l.b16 %v1097
      %v1130 = vunpack.c.l.b16 %v1098
      %v1131 = vunpack.c.l.b16 %v1099
      %v1132 = vunpack.c.l.b16 %v1100
      %v1133 = vunpack.c.l.b16 %v1101
      %v1134 = vunpack.c.l.b16 %v1102
      %v1135 = vunpack.c.l.b16 %v1103
      %v1136 = vunpack.c.l.b16 %v1104
      %v1137 = vunpack.c.l.b16 %v1105
      %v1138 = vunpack.c.l.b16 %v1106
      %v1139 = vunpack.c.l.b16 %v1107
      %v1140 = vpack.c.b16 %v1125, %v1124
      %v1141 = vpack.c.b16 %v1127, %v1126
      %v1142 = vpack.c.b16 %v1129, %v1128
      %v1143 = vpack.c.b16 %v1131, %v1130
      %v1144 = vpack.c.b16 %v1133, %v1132
      %v1145 = vpack.c.b16 %v1135, %v1134
      %v1146 = vpack.c.b16 %v1137, %v1136
      %v1147 = vpack.c.b16 %v1139, %v1138
      %1156 = vmatpush.bf16.msra.mxu0 %v1147
      %1157 = vmatpush.bf16.msra.mxu0 %v1146
      %1158 = vmatpush.bf16.msra.mxu0 %v1145
      %1159 = vmatpush.bf16.msra.mxu0 %v1144
      %1160 = vmatpush.bf16.msra.mxu0 %v1143
      %1161 = vmatpush.bf16.msra.mxu0 %v1142
      %1162 = vmatpush.bf16.msra.mxu0 %v1141
      %1163 = vmatpush.bf16.msra.mxu0 %v1140
      %1164 = vmatmul.bf16.gmra.mxu0 %v1083
      %v1165 = vpop.f32.mrf.mxu0
      %v1166 = vadd.f32 0.0, %v1165
      %v1167 = vpop.f32.mrf.mxu0
      %v1168 = vadd.f32 0.0, %v1167
      %1169 = vmatmul.bf16.gmra.mxu0 %v1084
      %v1170 = vpop.f32.mrf.mxu0
      %v1171 = vadd.f32 0.0, %v1170
      %v1172 = vpop.f32.mrf.mxu0
      %v1173 = vadd.f32 0.0, %v1172
      %1174 = vmatmul.bf16.gmra.mxu0 %v1085
      %v1175 = vpop.f32.mrf.mxu0
      %v1176 = vadd.f32 0.0, %v1175
      %v1177 = vpop.f32.mrf.mxu0
      %v1178 = vadd.f32 0.0, %v1177
      %1179 = vmatmul.bf16.gmra.mxu0 %v1086
      %v1180 = vpop.f32.mrf.mxu0
      %v1181 = vadd.f32 0.0, %v1180
      %v1182 = vpop.f32.mrf.mxu0
      %v1183 = vadd.f32 0.0, %v1182
      %1184 = vmatmul.bf16.gmra.mxu0 %v1087
      %v1185 = vpop.f32.mrf.mxu0
      %v1186 = vadd.f32 0.0, %v1185
      %v1187 = vpop.f32.mrf.mxu0
      %v1188 = vadd.f32 0.0, %v1187
      %1189 = vmatmul.bf16.gmra.mxu0 %v1088
      %v1190 = vpop.f32.mrf.mxu0
      %v1191 = vadd.f32 0.0, %v1190
      %v1192 = vpop.f32.mrf.mxu0
      %v1193 = vadd.f32 0.0, %v1192
      %1194 = vmatmul.bf16.gmra.mxu0 %v1089
      %v1195 = vpop.f32.mrf.mxu0
      %v1196 = vadd.f32 0.0, %v1195
      %v1197 = vpop.f32.mrf.mxu0
      %v1198 = vadd.f32 0.0, %v1197
      %1199 = vmatmul.bf16.gmra.mxu0 %v1090
      %v1200 = vpop.f32.mrf.mxu0
      %v1201 = vadd.f32 0.0, %v1200
      %v1202 = vpop.f32.mrf.mxu0
      %v1203 = vadd.f32 0.0, %v1202
      %1204 = vdwg.mxu0
      %v1221 = vunpack.c.l.b16 %v1051
      %v1222 = vunpack.c.l.b16 %v1052
      %v1223 = vunpack.c.l.b16 %v1053
      %v1224 = vunpack.c.l.b16 %v1054
      %v1225 = vunpack.c.l.b16 %v1055
      %v1226 = vunpack.c.l.b16 %v1056
      %v1227 = vunpack.c.l.b16 %v1057
      %v1228 = vunpack.c.l.b16 %v1058
      %v1229 = vunpack.c.l.b16 %v1059
      %v1230 = vunpack.c.l.b16 %v1060
      %v1231 = vunpack.c.l.b16 %v1061
      %v1232 = vunpack.c.l.b16 %v1062
      %v1233 = vunpack.c.l.b16 %v1063
      %v1234 = vunpack.c.l.b16 %v1064
      %v1235 = vunpack.c.l.b16 %v1065
      %v1236 = vunpack.c.l.b16 %v1066
      %v1237 = vpack.c.b16 %v1222, %v1221
      %v1238 = vpack.c.b16 %v1224, %v1223
      %v1239 = vpack.c.b16 %v1226, %v1225
      %v1240 = vpack.c.b16 %v1228, %v1227
      %v1241 = vpack.c.b16 %v1230, %v1229
      %v1242 = vpack.c.b16 %v1232, %v1231
      %v1243 = vpack.c.b16 %v1234, %v1233
      %v1244 = vpack.c.b16 %v1236, %v1235
      %1253 = vmatpush.bf16.msra.mxu0 %v1244
      %1254 = vmatpush.bf16.msra.mxu0 %v1243
      %1255 = vmatpush.bf16.msra.mxu0 %v1242
      %1256 = vmatpush.bf16.msra.mxu0 %v1241
      %1257 = vmatpush.bf16.msra.mxu0 %v1240
      %1258 = vmatpush.bf16.msra.mxu0 %v1239
      %1259 = vmatpush.bf16.msra.mxu0 %v1238
      %1260 = vmatpush.bf16.msra.mxu0 %v1237
      %1261 = vmatmul.bf16.gmra.mxu0 %v1043
      %v1262 = vpop.f32.mrf.mxu0
      %v1263 = vadd.f32 %v1166, %v1262
      %v1264 = vpop.f32.mrf.mxu0
      %v1265 = vadd.f32 %v1168, %v1264
      %1266 = vmatmul.bf16.gmra.mxu0 %v1044
      %v1267 = vpop.f32.mrf.mxu0
      %v1268 = vadd.f32 %v1171, %v1267
      %v1269 = vpop.f32.mrf.mxu0
      %v1270 = vadd.f32 %v1173, %v1269
      %1271 = vmatmul.bf16.gmra.mxu0 %v1045
      %v1272 = vpop.f32.mrf.mxu0
      %v1273 = vadd.f32 %v1176, %v1272
      %v1274 = vpop.f32.mrf.mxu0
      %v1275 = vadd.f32 %v1178, %v1274
      %1276 = vmatmul.bf16.gmra.mxu0 %v1046
      %v1277 = vpop.f32.mrf.mxu0
      %v1278 = vadd.f32 %v1181, %v1277
      %v1279 = vpop.f32.mrf.mxu0
      %v1280 = vadd.f32 %v1183, %v1279
      %1281 = vmatmul.bf16.gmra.mxu0 %v1047
      %v1282 = vpop.f32.mrf.mxu0
      %v1283 = vadd.f32 %v1186, %v1282
      %v1284 = vpop.f32.mrf.mxu0
      %v1285 = vadd.f32 %v1188, %v1284
      %1286 = vmatmul.bf16.gmra.mxu0 %v1048
      %v1287 = vpop.f32.mrf.mxu0
      %v1288 = vadd.f32 %v1191, %v1287
      %v1289 = vpop.f32.mrf.mxu0
      %v1290 = vadd.f32 %v1193, %v1289
      %1291 = vmatmul.bf16.gmra.mxu0 %v1049
      %v1292 = vpop.f32.mrf.mxu0
      %v1293 = vadd.f32 %v1196, %v1292
      %v1294 = vpop.f32.mrf.mxu0
      %v1295 = vadd.f32 %v1198, %v1294
      %1296 = vmatmul.bf16.gmra.mxu0 %v1050
      %v1297 = vpop.f32.mrf.mxu0
      %v1298 = vadd.f32 %v1201, %v1297
      %v1299 = vpop.f32.mrf.mxu0
      %v1300 = vadd.f32 %v1203, %v1299
      %1301 = vdwg.mxu0
      %v1302 = vld [vmem:[#allocation3 + $0x2] sm:$0xff]
      %v1303 = vld [vmem:[#allocation3 + $0xa] sm:$0xff]
      %v1304 = vld [vmem:[#allocation3 + $0x12] sm:$0xff]
      %v1305 = vld [vmem:[#allocation3 + $0x1a] sm:$0xff]
      %v1306 = vld [vmem:[#allocation3 + $0x22] sm:$0xff]
      %v1307 = vld [vmem:[#allocation3 + $0x2a] sm:$0xff]
      %v1308 = vld [vmem:[#allocation3 + $0x32] sm:$0xff]
      %v1309 = vld [vmem:[#allocation3 + $0x3a] sm:$0xff]
      %v1310 = vld [vmem:[#allocation3 + $0x42] sm:$0xff]
      %v1311 = vld [vmem:[#allocation3 + $0x4a] sm:$0xff]
      %v1312 = vld [vmem:[#allocation3 + $0x52] sm:$0xff]
      %v1313 = vld [vmem:[#allocation3 + $0x5a] sm:$0xff]
      %v1314 = vld [vmem:[#allocation3 + $0x62] sm:$0xff]
      %v1315 = vld [vmem:[#allocation3 + $0x6a] sm:$0xff]
      %v1316 = vld [vmem:[#allocation3 + $0x72] sm:$0xff]
      %v1317 = vld [vmem:[#allocation3 + $0x7a] sm:$0xff]
      %v1318 = vpack.c.bf16 %v1303, %v1302
      %v1319 = vpack.c.bf16 %v1305, %v1304
      %v1320 = vpack.c.bf16 %v1307, %v1306
      %v1321 = vpack.c.bf16 %v1309, %v1308
      %v1322 = vpack.c.bf16 %v1311, %v1310
      %v1323 = vpack.c.bf16 %v1313, %v1312
      %v1324 = vpack.c.bf16 %v1315, %v1314
      %v1325 = vpack.c.bf16 %v1317, %v1316
      %s1326 = scalar_lea.vmem %s3, 128
      %v1327 = vld [vmem:[%s1326] sm:$0xf]
      %v1328 = vld [vmem:[%s1326 + $0x4] sm:$0xf]
      %v1329 = vld [vmem:[%s1326 + $0x8] sm:$0xf]
      %v1330 = vld [vmem:[%s1326 + $0xc] sm:$0xf]
      %v1331 = vld [vmem:[%s1326 + $0x10] sm:$0xf]
      %v1332 = vld [vmem:[%s1326 + $0x14] sm:$0xf]
      %v1333 = vld [vmem:[%s1326 + $0x18] sm:$0xf]
      %v1334 = vld [vmem:[%s1326 + $0x1c] sm:$0xf]
      %v1335 = vld [vmem:[%s1326 + $0x20] sm:$0xf]
      %v1336 = vld [vmem:[%s1326 + $0x24] sm:$0xf]
      %v1337 = vld [vmem:[%s1326 + $0x28] sm:$0xf]
      %v1338 = vld [vmem:[%s1326 + $0x2c] sm:$0xf]
      %v1339 = vld [vmem:[%s1326 + $0x30] sm:$0xf]
      %v1340 = vld [vmem:[%s1326 + $0x34] sm:$0xf]
      %v1341 = vld [vmem:[%s1326 + $0x38] sm:$0xf]
      %v1342 = vld [vmem:[%s1326 + $0x3c] sm:$0xf]
      %v1359 = vunpack.c.l.b16 %v1327
      %v1360 = vunpack.c.l.b16 %v1328
      %v1361 = vunpack.c.l.b16 %v1329
      %v1362 = vunpack.c.l.b16 %v1330
      %v1363 = vunpack.c.l.b16 %v1331
      %v1364 = vunpack.c.l.b16 %v1332
      %v1365 = vunpack.c.l.b16 %v1333
      %v1366 = vunpack.c.l.b16 %v1334
      %v1367 = vunpack.c.l.b16 %v1335
      %v1368 = vunpack.c.l.b16 %v1336
      %v1369 = vunpack.c.l.b16 %v1337
      %v1370 = vunpack.c.l.b16 %v1338
      %v1371 = vunpack.c.l.b16 %v1339
      %v1372 = vunpack.c.l.b16 %v1340
      %v1373 = vunpack.c.l.b16 %v1341
      %v1374 = vunpack.c.l.b16 %v1342
      %v1375 = vpack.c.b16 %v1360, %v1359
      %v1376 = vpack.c.b16 %v1362, %v1361
      %v1377 = vpack.c.b16 %v1364, %v1363
      %v1378 = vpack.c.b16 %v1366, %v1365
      %v1379 = vpack.c.b16 %v1368, %v1367
      %v1380 = vpack.c.b16 %v1370, %v1369
      %v1381 = vpack.c.b16 %v1372, %v1371
      %v1382 = vpack.c.b16 %v1374, %v1373
      %1391 = vmatpush.bf16.msra.mxu0 %v1382
      %1392 = vmatpush.bf16.msra.mxu0 %v1381
      %1393 = vmatpush.bf16.msra.mxu0 %v1380
      %1394 = vmatpush.bf16.msra.mxu0 %v1379
      %1395 = vmatpush.bf16.msra.mxu0 %v1378
      %1396 = vmatpush.bf16.msra.mxu0 %v1377
      %1397 = vmatpush.bf16.msra.mxu0 %v1376
      %1398 = vmatpush.bf16.msra.mxu0 %v1375
      %1399 = vmatmul.bf16.gmra.mxu0 %v1318
      %v1400 = vpop.f32.mrf.mxu0
      %v1401 = vadd.f32 0.0, %v1400
      %v1402 = vpop.f32.mrf.mxu0
      %v1403 = vadd.f32 0.0, %v1402
      %1404 = vmatmul.bf16.gmra.mxu0 %v1319
      %v1405 = vpop.f32.mrf.mxu0
      %v1406 = vadd.f32 0.0, %v1405
      %v1407 = vpop.f32.mrf.mxu0
      %v1408 = vadd.f32 0.0, %v1407
      %1409 = vmatmul.bf16.gmra.mxu0 %v1320
      %v1410 = vpop.f32.mrf.mxu0
      %v1411 = vadd.f32 0.0, %v1410
      %v1412 = vpop.f32.mrf.mxu0
      %v1413 = vadd.f32 0.0, %v1412
      %1414 = vmatmul.bf16.gmra.mxu0 %v1321
      %v1415 = vpop.f32.mrf.mxu0
      %v1416 = vadd.f32 0.0, %v1415
      %v1417 = vpop.f32.mrf.mxu0
      %v1418 = vadd.f32 0.0, %v1417
      %1419 = vmatmul.bf16.gmra.mxu0 %v1322
      %v1420 = vpop.f32.mrf.mxu0
      %v1421 = vadd.f32 0.0, %v1420
      %v1422 = vpop.f32.mrf.mxu0
      %v1423 = vadd.f32 0.0, %v1422
      %1424 = vmatmul.bf16.gmra.mxu0 %v1323
      %v1425 = vpop.f32.mrf.mxu0
      %v1426 = vadd.f32 0.0, %v1425
      %v1427 = vpop.f32.mrf.mxu0
      %v1428 = vadd.f32 0.0, %v1427
      %1429 = vmatmul.bf16.gmra.mxu0 %v1324
      %v1430 = vpop.f32.mrf.mxu0
      %v1431 = vadd.f32 0.0, %v1430
      %v1432 = vpop.f32.mrf.mxu0
      %v1433 = vadd.f32 0.0, %v1432
      %1434 = vmatmul.bf16.gmra.mxu0 %v1325
      %v1435 = vpop.f32.mrf.mxu0
      %v1436 = vadd.f32 0.0, %v1435
      %v1437 = vpop.f32.mrf.mxu0
      %v1438 = vadd.f32 0.0, %v1437
      %1439 = vdwg.mxu0
      %v1440 = vadd.f32 %v1263, %v1401
      %v1441 = vadd.f32 %v1265, %v1403
      %v1442 = vadd.f32 %v1268, %v1406
      %v1443 = vadd.f32 %v1270, %v1408
      %v1444 = vadd.f32 %v1273, %v1411
      %v1445 = vadd.f32 %v1275, %v1413
      %v1446 = vadd.f32 %v1278, %v1416
      %v1447 = vadd.f32 %v1280, %v1418
      %v1448 = vadd.f32 %v1283, %v1421
      %v1449 = vadd.f32 %v1285, %v1423
      %v1450 = vadd.f32 %v1288, %v1426
      %v1451 = vadd.f32 %v1290, %v1428
      %v1452 = vadd.f32 %v1293, %v1431
      %v1453 = vadd.f32 %v1295, %v1433
      %v1454 = vadd.f32 %v1298, %v1436
      %v1455 = vadd.f32 %v1300, %v1438
      %v1456 = vld [vmem:[%s4] sm:$0x1]
      %v1458 = vperm.slane %v1456, 0
      %v1460 = vadd.f32 %v1440, %v1458
      %v1461 = vadd.f32 %v1441, %v1458
      %v1462 = vadd.f32 %v1442, %v1458
      %v1463 = vadd.f32 %v1443, %v1458
      %v1464 = vadd.f32 %v1444, %v1458
      %v1465 = vadd.f32 %v1445, %v1458
      %v1466 = vadd.f32 %v1446, %v1458
      %v1467 = vadd.f32 %v1447, %v1458
      %v1468 = vadd.f32 %v1448, %v1458
      %v1469 = vadd.f32 %v1449, %v1458
      %v1470 = vadd.f32 %v1450, %v1458
      %v1471 = vadd.f32 %v1451, %v1458
      %v1472 = vadd.f32 %v1452, %v1458
      %v1473 = vadd.f32 %v1453, %v1458
      %v1474 = vadd.f32 %v1454, %v1458
      %v1475 = vadd.f32 %v1455, %v1458
      %s1476 = scalar_lea.vmem %s237, %s344
      %v1477 = vld [vmem:[%s1476] sm:$0xff]
      %v1478 = vld [vmem:[%s1476 + $0x8] sm:$0xff]
      %v1479 = vld [vmem:[%s1476 + $0x10] sm:$0xff]
      %v1480 = vld [vmem:[%s1476 + $0x18] sm:$0xff]
      %v1481 = vld [vmem:[%s1476 + $0x20] sm:$0xff]
      %v1482 = vld [vmem:[%s1476 + $0x28] sm:$0xff]
      %v1483 = vld [vmem:[%s1476 + $0x30] sm:$0xff]
      %v1484 = vld [vmem:[%s1476 + $0x38] sm:$0xff]
      %v1485 = vld [vmem:[%s1476 + $0x40] sm:$0xff]
      %v1486 = vld [vmem:[%s1476 + $0x48] sm:$0xff]
      %v1487 = vld [vmem:[%s1476 + $0x50] sm:$0xff]
      %v1488 = vld [vmem:[%s1476 + $0x58] sm:$0xff]
      %v1489 = vld [vmem:[%s1476 + $0x60] sm:$0xff]
      %v1490 = vld [vmem:[%s1476 + $0x68] sm:$0xff]
      %v1491 = vld [vmem:[%s1476 + $0x70] sm:$0xff]
      %v1492 = vld [vmem:[%s1476 + $0x78] sm:$0xff]
      %v1493 = vadd.f32 %v1460, %v1477
      %v1494 = vadd.f32 %v1461, %v1478
      %v1495 = vadd.f32 %v1462, %v1479
      %v1496 = vadd.f32 %v1463, %v1480
      %v1497 = vadd.f32 %v1464, %v1481
      %v1498 = vadd.f32 %v1465, %v1482
      %v1499 = vadd.f32 %v1466, %v1483
      %v1500 = vadd.f32 %v1467, %v1484
      %v1501 = vadd.f32 %v1468, %v1485
      %v1502 = vadd.f32 %v1469, %v1486
      %v1503 = vadd.f32 %v1470, %v1487
      %v1504 = vadd.f32 %v1471, %v1488
      %v1505 = vadd.f32 %v1472, %v1489
      %v1506 = vadd.f32 %v1473, %v1490
      %v1507 = vadd.f32 %v1474, %v1491
      %v1508 = vadd.f32 %v1475, %v1492
      %1509 = vst [vmem:[%s246] sm:$0xff] %v1493
      %1510 = vst [vmem:[%s246 + $0x8] sm:$0xff] %v1494
      %1511 = vst [vmem:[%s246 + $0x10] sm:$0xff] %v1495
      %1512 = vst [vmem:[%s246 + $0x18] sm:$0xff] %v1496
      %1513 = vst [vmem:[%s246 + $0x20] sm:$0xff] %v1497
      %1514 = vst [vmem:[%s246 + $0x28] sm:$0xff] %v1498
      %1515 = vst [vmem:[%s246 + $0x30] sm:$0xff] %v1499
      %1516 = vst [vmem:[%s246 + $0x38] sm:$0xff] %v1500
      %1517 = vst [vmem:[%s246 + $0x40] sm:$0xff] %v1501
      %1518 = vst [vmem:[%s246 + $0x48] sm:$0xff] %v1502
      %1519 = vst [vmem:[%s246 + $0x50] sm:$0xff] %v1503
      %1520 = vst [vmem:[%s246 + $0x58] sm:$0xff] %v1504
      %1521 = vst [vmem:[%s246 + $0x60] sm:$0xff] %v1505
      %1522 = vst [vmem:[%s246 + $0x68] sm:$0xff] %v1506
      %1523 = vst [vmem:[%s246 + $0x70] sm:$0xff] %v1507
      %1524 = vst [vmem:[%s246 + $0x78] sm:$0xff] %v1508
      %s1525 = smul.u32 16, %s21
      %p1526 = scmp.lt.s32.totalorder %s20, 1
      %s1527 = scalar_select %p1526, %s20, 1
      %p1528 = scmp.lt.s32.totalorder %s1525, 31
      %s1529 = scalar_select %p1528, %s1525, 31
      %s1530 = smul.addr %s1527, 32
      %s1531 = sadd.s32 %s1529, %s1530
      %s1532 = smul.addr %s1531, 8
      %s1533 = scalar_lea.vmem %s5, %s1532
      // Predicated region
      $region52: #{resblock1_forward.3} parent=39 // pred_check
        %p1534 = pneg %p158
      $region53: #{resblock1_forward.3} parent=39 // pred_check_branch
        %1536 = sbr.rel (%p1534) target = $region55
      $region54: #{resblock1_forward.3} parent=39 // pred_region
        %s1537 = smul.u32 16, %s21
      $region55: #{resblock1_forward.3} parent=39 // pred_fallthru
        _
    $region40: #{resblock1_forward.3} parent=5 // pred_fallthru
      _
    %p1538 = scmp.le.s32.totalorder 2, %s11
    // Predicated region
    $region56: #{resblock1_forward.3} parent=5 // pred_check
      %p1539 = pneg %p1538
    $region57: #{resblock1_forward.3} parent=5 // pred_check_branch
      %1541 = sbr.rel (%p1539) target = $region59
    $region58: #{resblock1_forward.3} parent=5 // pred_region
      %s1542 = ssub.s32 %s11, 2
      // Predicated region
      $region60: #{resblock1_forward.3} parent=58 // pred_check
        %p1543 = pneg %p164
      $region61: #{resblock1_forward.3} parent=58 // pred_check_branch
        %1545 = sbr.rel (%p1543) target = $region63
      $region62: #{resblock1_forward.3} parent=58 // pred_region
        %s1546 = smul.u32 16, %s23
        %p1547 = scmp.lt.s32.totalorder %s22, 1
        %s1548 = scalar_select %p1547, %s22, 1
        %p1549 = scmp.lt.s32.totalorder %s1546, 31
        %s1550 = scalar_select %p1549, %s1546, 31
        %s1551 = smul.addr %s1548, 32
        %s1552 = sadd.s32 %s1550, %s1551
        %s1553 = smul.addr %s1552, 8
        %s1554 = scalar_lea.vmem %s5, %s1553
      $region63: #{resblock1_forward.3} parent=58 // pred_fallthru
        _
    $region59: #{resblock1_forward.3} parent=5 // pred_fallthru
      _
  $region6: #{resblock1_forward.3} parent=0 // loop_footer
    %s15 = sadd.s32 1, %s11
  $region7: #{resblock1_forward.3} parent=0 // loop_footer_branch
    %10 = sbr.rel target = $region3
  $region8: #{resblock1_forward.3} parent=0 // loop_exit
    _

// kernel: resblock1_forward.4
$region0: #{resblock1_forward.4}
  #allocation0 [shape = 'u32[]', space=smem, size = 0x4, offset = 0x4, fixed_abs, tag = 'smem constant byte address 0x4 - core index']
  #allocation1 [shape = 'u32[72,128]{1,0:T(1,128)}', space=vmem, size = 0x9000, scoped, tag = 'internal scratch']
  #allocation2 [shape = 'f32[272,128]{1,0:T(8,128)}', space=vmem, size = 0x22000, scoped, tag = 'scratch operand']
  #allocation3 [shape = 'f32[136,128]{1,0:T(8,128)}', space=vmem, size = 0x11000, scoped, tag = 'scratch operand']
  %s0 = inlined_call_operand.vmem [shape: f32[2,256,128], index: 0, kind: input, shape index: {}]
  %s1 = inlined_call_operand.vmem [shape: bf16[3,128,128], index: 1, kind: input, shape index: {}]
  %s2 = inlined_call_operand.vmem [shape: f32[1,128], index: 2, kind: input, shape index: {}]
  %s3 = inlined_call_operand.vmem [shape: bf16[3,128,128], index: 3, kind: input, shape index: {}]
  %s4 = inlined_call_operand.vmem [shape: f32[1,128], index: 4, kind: input, shape index: {}]
  %s5 = inlined_call_operand.vmem [shape: f32[2,256,128], index: 5, kind: output, shape index: {}]
  %s6 = sld [smem:[#allocation0]]
  $region64: #{resblock1_forward.4} parent=0
    _
  %s8 = ssub.s32 1, %s6
  %s9 = scalar_select 0, %s8, %s6
  loop: start=0, step=1, limit=6
  $region2: #{resblock1_forward.4} parent=0 // loop_pre_header
    _
  $region3: #{resblock1_forward.4} parent=0 // loop_header
    %s11 = sphi 0, %s15
    %p12 = scmp.ge.s32.totalorder %s11, 6
    %s18 = sphi 0, %s30
    %s19 = sphi 0, %s26
    %s20 = sphi 0, %s18
    %s21 = sphi 0, %s19
    %s22 = sphi 0, %s20
    %s23 = sphi 0, %s21
    %s33 = sphi 0, %s35
    %s36 = sphi 0, %s33
    %s37 = sphi 0, %s36
    %s53 = sphi 0, %s37
    %s57 = sphi 0, %s57
    %s59 = sphi 0, %s57
    %s60 = sphi 0, %s59
    %s74 = sphi 0, %s60
    %s78 = sphi 0, %s78
    %s80 = sphi 0, %s78
    %s81 = sphi 0, %s80
    %s95 = sphi 0, %s81
    %s99 = sphi 0, %s99
    %s101 = sphi 0, %s99
    %s102 = sphi 0, %s101
    %s116 = sphi 0, %s102
    %s120 = sphi 0, %s120
    %s122 = sphi 0, %s120
    %s123 = sphi 0, %s122
    %s137 = sphi 0, %s123
    %s145 = sphi 0, %s147
    %s148 = sphi 0, %s145
    %s149 = sphi 0, %s148
    %s165 = sphi 0, %s149
  $region4: #{resblock1_forward.4} parent=0 // loop_header_branch
    %14 = sbr.rel (%p12) target = $region8
  $region5: #{resblock1_forward.4} parent=0 // loop_body
    %s16 = ssub.s32 %s11, 1
    %s17 = ssub.s32 %s11, 2
    %s24 = sadd.s32 1, %s19
    %p25 = scmp.ge.s32.totalorder %s24, 2
    %s26 = scalar_select %p25, 0, %s24
    %s27 = sadd.s32 1, %s18
    %s28 = scalar_select %p25, %s27, %s18
    %p29 = scmp.ge.s32.totalorder %s28, 2
    %s30 = scalar_select %p29, 0, %s28
    %s31 = ssub.s32 %s18, %s30
    %p32 = scmp.eq.s32.totalorder %s31, 0
    %s34 = sadd.s32 %s33, 1
    %s35 = scalar_select %p32, %s33, %s34
    %p38 = pneg %p32
    %p39 = scmp.eq.s32.totalorder %s11, 3
    %p40 = por %p38, %p39
    %p41 = scmp.ne.s32.totalorder %s33, %s36
    %p42 = scmp.eq.s32.totalorder %s11, 0
    %p43 = por %p41, %p42
    %p44 = scmp.ne.s32.totalorder %s33, %s36
    %p45 = scmp.eq.s32.totalorder %s16, 3
    %p46 = por %p44, %p45
    %p47 = scmp.ne.s32.totalorder %s36, %s37
    %p48 = scmp.eq.s32.totalorder %s16, 0
    %p49 = por %p47, %p48
    %p50 = scmp.ne.s32.totalorder %s36, %s37
    %p51 = scmp.eq.s32.totalorder %s17, 3
    %p52 = por %p50, %p51
    %p54 = scmp.ne.s32.totalorder %s37, %s53
    %p55 = scmp.eq.s32.totalorder %s17, 0
    %p56 = por %p54, %p55
    %s58 = sadd.s32 %s57, 1
    %p61 = scmp.eq.s32.totalorder %s11, 3
    %p62 = scmp.ne.s32.totalorder %s57, %s59
    %p63 = scmp.eq.s32.totalorder %s11, 0
    %p64 = por %p62, %p63
    %p65 = scmp.ne.s32.totalorder %s57, %s59
    %p66 = scmp.eq.s32.totalorder %s16, 3
    %p67 = por %p65, %p66
    %p68 = scmp.ne.s32.totalorder %s59, %s60
    %p69 = scmp.eq.s32.totalorder %s16, 0
    %p70 = por %p68, %p69
    %p71 = scmp.ne.s32.totalorder %s59, %s60
    %p72 = scmp.eq.s32.totalorder %s17, 3
    %p73 = por %p71, %p72
    %p75 = scmp.ne.s32.totalorder %s60, %s74
    %p76 = scmp.eq.s32.totalorder %s17, 0
    %p77 = por %p75, %p76
    %s79 = sadd.s32 %s78, 1
    %p82 = scmp.eq.s32.totalorder %s11, 3
    %p83 = scmp.ne.s32.totalorder %s78, %s80
    %p84 = scmp.eq.s32.totalorder %s11, 0
    %p85 = por %p83, %p84
    %p86 = scmp.ne.s32.totalorder %s78, %s80
    %p87 = scmp.eq.s32.totalorder %s16, 3
    %p88 = por %p86, %p87
    %p89 = scmp.ne.s32.totalorder %s80, %s81
    %p90 = scmp.eq.s32.totalorder %s16, 0
    %p91 = por %p89, %p90
    %p92 = scmp.ne.s32.totalorder %s80, %s81
    %p93 = scmp.eq.s32.totalorder %s17, 3
    %p94 = por %p92, %p93
    %p96 = scmp.ne.s32.totalorder %s81, %s95
    %p97 = scmp.eq.s32.totalorder %s17, 0
    %p98 = por %p96, %p97
    %s100 = sadd.s32 %s99, 1
    %p103 = scmp.eq.s32.totalorder %s11, 3
    %p104 = scmp.ne.s32.totalorder %s99, %s101
    %p105 = scmp.eq.s32.totalorder %s11, 0
    %p106 = por %p104, %p105
    %p107 = scmp.ne.s32.totalorder %s99, %s101
    %p108 = scmp.eq.s32.totalorder %s16, 3
    %p109 = por %p107, %p108
    %p110 = scmp.ne.s32.totalorder %s101, %s102
    %p111 = scmp.eq.s32.totalorder %s16, 0
    %p112 = por %p110, %p111
    %p113 = scmp.ne.s32.totalorder %s101, %s102
    %p114 = scmp.eq.s32.totalorder %s17, 3
    %p115 = por %p113, %p114
    %p117 = scmp.ne.s32.totalorder %s102, %s116
    %p118 = scmp.eq.s32.totalorder %s17, 0
    %p119 = por %p117, %p118
    %s121 = sadd.s32 %s120, 1
    %p124 = scmp.eq.s32.totalorder %s11, 3
    %p125 = scmp.ne.s32.totalorder %s120, %s122
    %p126 = scmp.eq.s32.totalorder %s11, 0
    %p127 = por %p125, %p126
    %p128 = scmp.ne.s32.totalorder %s120, %s122
    %p129 = scmp.eq.s32.totalorder %s16, 3
    %p130 = por %p128, %p129
    %p131 = scmp.ne.s32.totalorder %s122, %s123
    %p132 = scmp.eq.s32.totalorder %s16, 0
    %p133 = por %p131, %p132
    %p134 = scmp.ne.s32.totalorder %s122, %s123
    %p135 = scmp.eq.s32.totalorder %s17, 3
    %p136 = por %p134, %p135
    %p138 = scmp.ne.s32.totalorder %s123, %s137
    %p139 = scmp.eq.s32.totalorder %s17, 0
    %p140 = por %p138, %p139
    %s141 = ssub.s32 %s18, %s30
    %s142 = ssub.s32 %s19, %s26
    %s143 = sor.u32 %s141, %s142
    %p144 = scmp.eq.s32.totalorder %s143, 0
    %s146 = sadd.s32 %s145, 1
    %s147 = scalar_select %p144, %s145, %s146
    %p150 = pneg %p144
    %p151 = scmp.eq.s32.totalorder %s11, 3
    %p152 = por %p150, %p151
    %p153 = scmp.ne.s32.totalorder %s145, %s148
    %p154 = scmp.eq.s32.totalorder %s11, 0
    %p155 = por %p153, %p154
    %p156 = scmp.ne.s32.totalorder %s145, %s148
    %p157 = scmp.eq.s32.totalorder %s16, 3
    %p158 = por %p156, %p157
    %p159 = scmp.ne.s32.totalorder %s148, %s149
    %p160 = scmp.eq.s32.totalorder %s16, 0
    %p161 = por %p159, %p160
    %p162 = scmp.ne.s32.totalorder %s148, %s149
    %p163 = scmp.eq.s32.totalorder %s17, 3
    %p164 = por %p162, %p163
    %p166 = scmp.ne.s32.totalorder %s149, %s165
    %p167 = scmp.eq.s32.totalorder %s17, 0
    %p168 = por %p166, %p167
    %p169 = scmp.le.s32.totalorder 1, %s11
    %p170 = scmp.lt.s32.totalorder %s11, 5
    %p171 = pnand %p169, %p170
    %p172 = pneg %p171
    // Predicated region
    $region9: #{resblock1_forward.4} parent=5 // pred_check
      _
    $region10: #{resblock1_forward.4} parent=5 // pred_check_branch
      %174 = sbr.rel (%p171) target = $region12
    $region11: #{resblock1_forward.4} parent=5 // pred_region
      %s175 = ssub.s32 %s11, 1
      // Predicated region
      $region13: #{resblock1_forward.4} parent=11 // pred_check
        %p176 = pneg %p70
      $region14: #{resblock1_forward.4} parent=11 // pred_check_branch
        %178 = sbr.rel (%p176) target = $region16
      $region15: #{resblock1_forward.4} parent=11 // pred_region
        _
      $region16: #{resblock1_forward.4} parent=11 // pred_fallthru
        _
      // Predicated region
      $region17: #{resblock1_forward.4} parent=11 // pred_check
        %p179 = pneg %p91
      $region18: #{resblock1_forward.4} parent=11 // pred_check_branch
        %181 = sbr.rel (%p179) target = $region20
      $region19: #{resblock1_forward.4} parent=11 // pred_region
        _
      $region20: #{resblock1_forward.4} parent=11 // pred_fallthru
        _
      // Predicated region
      $region21: #{resblock1_forward.4} parent=11 // pred_check
        %p182 = pneg %p112
      $region22: #{resblock1_forward.4} parent=11 // pred_check_branch
        %184 = sbr.rel (%p182) target = $region24
      $region23: #{resblock1_forward.4} parent=11 // pred_region
        _
      $region24: #{resblock1_forward.4} parent=11 // pred_fallthru
        _
      // Predicated region
      $region25: #{resblock1_forward.4} parent=11 // pred_check
        %p185 = pneg %p133
      $region26: #{resblock1_forward.4} parent=11 // pred_check_branch
        %187 = sbr.rel (%p185) target = $region28
      $region27: #{resblock1_forward.4} parent=11 // pred_region
        _
      $region28: #{resblock1_forward.4} parent=11 // pred_fallthru
        _
    $region12: #{resblock1_forward.4} parent=5 // pred_fallthru
      _
    %p188 = scmp.lt.s32.totalorder %s11, 4
    // Predicated region
    $region29: #{resblock1_forward.4} parent=5 // pred_check
      %p189 = pneg %p188
    $region30: #{resblock1_forward.4} parent=5 // pred_check_branch
      %191 = sbr.rel (%p189) target = $region32
    $region31: #{resblock1_forward.4} parent=5 // pred_region
      // Predicated region
      $region33: #{resblock1_forward.4} parent=31 // pred_check
        %p192 = pneg %p43
      $region34: #{resblock1_forward.4} parent=31 // pred_check_branch
        %194 = sbr.rel (%p192) target = $region36
      $region35: #{resblock1_forward.4} parent=31 // pred_region
        %p195 = scmp.lt.s32.totalorder %s18, 1
        %s196 = scalar_select %p195, %s18, 1
        %s197 = smul.addr %s196, 32
        %s198 = smul.addr %s197, 8
        %s199 = scalar_lea.vmem %s0, %s198
      $region36: #{resblock1_forward.4} parent=31 // pred_fallthru
        _
    $region32: #{resblock1_forward.4} parent=5 // pred_fallthru
      _
    %p200 = scmp.le.s32.totalorder 1, %s11
    %p201 = scmp.lt.s32.totalorder %s11, 5
    %p202 = pnand %p200, %p201
    %p203 = pneg %p202
    // Predicated region
    $region37: #{resblock1_forward.4} parent=5 // pred_check
      _
    $region38: #{resblock1_forward.4} parent=5 // pred_check_branch
      %205 = sbr.rel (%p202) target = $region40
    $region39: #{resblock1_forward.4} parent=5 // pred_region
      %s206 = ssub.s32 %s11, 1
      %p207 = scmp.lt.s32.totalorder %s20, 1
      %s208 = scalar_select %p207, %s20, 1
      %s209 = smul.addr %s208, 32
      %s210 = smul.addr %s209, 8
      %s211 = scalar_lea.vmem %s0, %s210
      %p212 = pneg %p49
      %p213 = pneg %p46
      %p214 = pneg %p70
      %p215 = pneg %p67
      %p216 = pneg %p91
      %p217 = pneg %p88
      %p218 = pneg %p112
      %p219 = pneg %p109
      %p220 = pneg %p133
      %p221 = pneg %p130
      %p222 = pneg %p161
      %p223 = pneg %p158
      %s224 = smul.u32 16, %s21
      %p225 = scmp.lt.s32.totalorder %s20, 1
      %s226 = scalar_select %p225, %s20, 1
      %p227 = scmp.lt.s32.totalorder %s224, 31
      %s228 = scalar_select %p227, %s224, 31
      %s229 = smul.addr %s226, 32
      %s230 = sadd.s32 %s228, %s229
      %s231 = smul.addr %s230, 8
      %s232 = scalar_lea.vmem %s5, %s231
      %p233 = scmp.lt.s32.totalorder %s20, 1
      %s234 = scalar_select %p233, %s20, 1
      %s235 = smul.addr %s234, 32
      %s236 = smul.addr %s235, 8
      %s237 = scalar_lea.vmem %s0, %s236
      %s238 = smul.u32 16, %s21
      %p239 = scmp.lt.s32.totalorder %s20, 1
      %s240 = scalar_select %p239, %s20, 1
      %p241 = scmp.lt.s32.totalorder %s238, 31
      %s242 = scalar_select %p241, %s238, 31
      %s243 = smul.addr %s240, 32
      %s244 = sadd.s32 %s242, %s243
      %s245 = smul.addr %s244, 8
      %s246 = scalar_lea.vmem %s5, %s245
      %s247 = smul.u32 16, %s21
      %p248 = scmp.eq.s32.totalorder %s21, 0
      // Predicated region
      $region41: #{resblock1_forward.4} parent=39 // pred_check
        %p249 = pneg %p248
      $region42: #{resblock1_forward.4} parent=39 // pred_check_branch
        %251 = sbr.rel (%p249) target = $region44
      $region43: #{resblock1_forward.4} parent=39 // pred_region
        %252 = vst [vmem:[#allocation2] sm:$0xff] 0.0
        %253 = vst [vmem:[#allocation2 + $0x108] sm:$0xff] 0.0
        loop: start=0, step=1, limit=2
        $region45: #{resblock1_forward.4} parent=43 // loop_pre_header
          _
        $region46: #{resblock1_forward.4} parent=43 // loop_header
          %s255 = sphi 0, %s259
          %p256 = scmp.ge.s32.totalorder %s255, 2
        $region47: #{resblock1_forward.4} parent=43 // loop_header_branch
          %258 = sbr.rel (%p256) target = $region51
        $region48: #{resblock1_forward.4} parent=43 // loop_body
          %s260 = smul.u32 %s255, 128
          %s261 = scalar_lea.vmem %s237, %s260
          %v262 = vld [vmem:[%s261] sm:$0xff]
          %v263 = vld [vmem:[%s261 + $0x8] sm:$0xff]
          %v264 = vld [vmem:[%s261 + $0x10] sm:$0xff]
          %v265 = vld [vmem:[%s261 + $0x18] sm:$0xff]
          %v266 = vld [vmem:[%s261 + $0x20] sm:$0xff]
          %v267 = vld [vmem:[%s261 + $0x28] sm:$0xff]
          %v268 = vld [vmem:[%s261 + $0x30] sm:$0xff]
          %v269 = vld [vmem:[%s261 + $0x38] sm:$0xff]
          %v270 = vld [vmem:[%s261 + $0x40] sm:$0xff]
          %v271 = vld [vmem:[%s261 + $0x48] sm:$0xff]
          %v272 = vld [vmem:[%s261 + $0x50] sm:$0xff]
          %v273 = vld [vmem:[%s261 + $0x58] sm:$0xff]
          %v274 = vld [vmem:[%s261 + $0x60] sm:$0xff]
          %v275 = vld [vmem:[%s261 + $0x68] sm:$0xff]
          %v276 = vld [vmem:[%s261 + $0x70] sm:$0xff]
          %v277 = vld [vmem:[%s261 + $0x78] sm:$0xff]
          %vm278 = vcmp.ge.f32.partialorder %v262, 0.0
          %vm279 = vcmp.ge.f32.partialorder %v263, 0.0
          %vm280 = vcmp.ge.f32.partialorder %v264, 0.0
          %vm281 = vcmp.ge.f32.partialorder %v265, 0.0
          %vm282 = vcmp.ge.f32.partialorder %v266, 0.0
          %vm283 = vcmp.ge.f32.partialorder %v267, 0.0
          %vm284 = vcmp.ge.f32.partialorder %v268, 0.0
          %vm285 = vcmp.ge.f32.partialorder %v269, 0.0
          %vm286 = vcmp.ge.f32.partialorder %v270, 0.0
          %vm287 = vcmp.ge.f32.partialorder %v271, 0.0
          %vm288 = vcmp.ge.f32.partialorder %v272, 0.0
          %vm289 = vcmp.ge.f32.partialorder %v273, 0.0
          %vm290 = vcmp.ge.f32.partialorder %v274, 0.0
          %vm291 = vcmp.ge.f32.partialorder %v275, 0.0
          %vm292 = vcmp.ge.f32.partialorder %v276, 0.0
          %vm293 = vcmp.ge.f32.partialorder %v277, 0.0
          %v294 = vmul.f32 %v262, 0.1
          %v295 = vmul.f32 %v263, 0.1
          %v296 = vmul.f32 %v264, 0.1
          %v297 = vmul.f32 %v265, 0.1
          %v298 = vmul.f32 %v266, 0.1
          %v299 = vmul.f32 %v267, 0.1
          %v300 = vmul.f32 %v268, 0.1
          %v301 = vmul.f32 %v269, 0.1
          %v302 = vmul.f32 %v270, 0.1
          %v303 = vmul.f32 %v271, 0.1
          %v304 = vmul.f32 %v272, 0.1
          %v305 = vmul.f32 %v273, 0.1
          %v306 = vmul.f32 %v274, 0.1
          %v307 = vmul.f32 %v275, 0.1
          %v308 = vmul.f32 %v276, 0.1
          %v309 = vmul.f32 %v277, 0.1
          %v310 = vsel %vm278, %v262, %v294
          %v311 = vsel %vm279, %v263, %v295
          %v312 = vsel %vm280, %v264, %v296
          %v313 = vsel %vm281, %v265, %v297
          %v314 = vsel %vm282, %v266, %v298
          %v315 = vsel %vm283, %v267, %v299
          %v316 = vsel %vm284, %v268, %v300
          %v317 = vsel %vm285, %v269, %v301
          %v318 = vsel %vm286, %v270, %v302
          %v319 = vsel %vm287, %v271, %v303
          %v320 = vsel %vm288, %v272, %v304
          %v321 = vsel %vm289, %v273, %v305
          %v322 = vsel %vm290, %v274, %v306
          %v323 = vsel %vm291, %v275, %v307
          %v324 = vsel %vm292, %v276, %v308
          %v325 = vsel %vm293, %v277, %v309
          %s326 = sadd.s32 %s260, 8
          %s327 = scalar_lea.vmem [#allocation2], %s326
          %328 = vst [vmem:[%s327] sm:$0xff] %v310
          %329 = vst [vmem:[%s327 + $0x8] sm:$0xff] %v311
          %330 = vst [vmem:[%s327 + $0x10] sm:$0xff] %v312
          %331 = vst [vmem:[%s327 + $0x18] sm:$0xff] %v313
          %332 = vst [vmem:[%s327 + $0x20] sm:$0xff] %v314
          %333 = vst [vmem:[%s327 + $0x28] sm:$0xff] %v315
          %334 = vst [vmem:[%s327 + $0x30] sm:$0xff] %v316
          %335 = vst [vmem:[%s327 + $0x38] sm:$0xff] %v317
          %336 = vst [vmem:[%s327 + $0x40] sm:$0xff] %v318
          %337 = vst [vmem:[%s327 + $0x48] sm:$0xff] %v319
          %338 = vst [vmem:[%s327 + $0x50] sm:$0xff] %v320
          %339 = vst [vmem:[%s327 + $0x58] sm:$0xff] %v321
          %340 = vst [vmem:[%s327 + $0x60] sm:$0xff] %v322
          %341 = vst [vmem:[%s327 + $0x68] sm:$0xff] %v323
          %342 = vst [vmem:[%s327 + $0x70] sm:$0xff] %v324
          %343 = vst [vmem:[%s327 + $0x78] sm:$0xff] %v325
        $region49: #{resblock1_forward.4} parent=43 // loop_footer
          %s259 = sadd.s32 1, %s255
        $region50: #{resblock1_forward.4} parent=43 // loop_footer_branch
          %254 = sbr.rel target = $region46
        $region51: #{resblock1_forward.4} parent=43 // loop_exit
          _
      $region44: #{resblock1_forward.4} parent=39 // pred_fallthru
        _
      %s344 = smul.u32 %s21, 128
      %s345 = sadd.s32 %s344, 4
      %s346 = scalar_lea.vmem [#allocation2], %s345
      %v347 = vld [vmem:[%s346] sm:$0xff]
      %v348 = vld [vmem:[%s346 + $0x8] sm:$0xff]
      %v349 = vld [vmem:[%s346 + $0x10] sm:$0xff]
      %v350 = vld [vmem:[%s346 + $0x18] sm:$0xff]
      %v351 = vld [vmem:[%s346 + $0x20] sm:$0xff]
      %v352 = vld [vmem:[%s346 + $0x28] sm:$0xff]
      %v353 = vld [vmem:[%s346 + $0x30] sm:$0xff]
      %v354 = vld [vmem:[%s346 + $0x38] sm:$0xff]
      %v355 = vld [vmem:[%s346 + $0x40] sm:$0xff]
      %v356 = vld [vmem:[%s346 + $0x48] sm:$0xff]
      %v357 = vld [vmem:[%s346 + $0x50] sm:$0xff]
      %v358 = vld [vmem:[%s346 + $0x58] sm:$0xff]
      %v359 = vld [vmem:[%s346 + $0x60] sm:$0xff]
      %v360 = vld [vmem:[%s346 + $0x68] sm:$0xff]
      %v361 = vld [vmem:[%s346 + $0x70] sm:$0xff]
      %v362 = vld [vmem:[%s346 + $0x78] sm:$0xff]
      %v363 = vld [vmem:[%s346 + $0x80] sm:$0x3]
      %v364 = vpack.c.bf16 %v348, %v347
      %v365 = vpack.c.bf16 %v350, %v349
      %v366 = vpack.c.bf16 %v352, %v351
      %v367 = vpack.c.bf16 %v354, %v353
      %v368 = vpack.c.bf16 %v356, %v355
      %v369 = vpack.c.bf16 %v358, %v357
      %v370 = vpack.c.bf16 %v360, %v359
      %v371 = vpack.c.bf16 %v362, %v361
      %v372 = vpack.c.bf16 %v363, %v363
      %v373 = vld [vmem:[%s1] sm:$0xf]
      %v374 = vld [vmem:[%s1 + $0x4] sm:$0xf]
      %v375 = vld [vmem:[%s1 + $0x8] sm:$0xf]
      %v376 = vld [vmem:[%s1 + $0xc] sm:$0xf]
      %v377 = vld [vmem:[%s1 + $0x10] sm:$0xf]
      %v378 = vld [vmem:[%s1 + $0x14] sm:$0xf]
      %v379 = vld [vmem:[%s1 + $0x18] sm:$0xf]
      %v380 = vld [vmem:[%s1 + $0x1c] sm:$0xf]
      %v381 = vld [vmem:[%s1 + $0x20] sm:$0xf]
      %v382 = vld [vmem:[%s1 + $0x24] sm:$0xf]
      %v383 = vld [vmem:[%s1 + $0x28] sm:$0xf]
      %v384 = vld [vmem:[%s1 + $0x2c] sm:$0xf]
      %v385 = vld [vmem:[%s1 + $0x30] sm:$0xf]
      %v386 = vld [vmem:[%s1 + $0x34] sm:$0xf]
      %v387 = vld [vmem:[%s1 + $0x38] sm:$0xf]
      %v388 = vld [vmem:[%s1 + $0x3c] sm:$0xf]
      %s389 = sadd.s32 %s344, 7
      %s390 = scalar_lea.vmem [#allocation2], %s389
      %v391 = vld [vmem:[%s390] sm:$0xff]
      %v392 = vld [vmem:[%s390 + $0x8] sm:$0xff]
      %v393 = vld [vmem:[%s390 + $0x10] sm:$0xff]
      %v394 = vld [vmem:[%s390 + $0x18] sm:$0xff]
      %v395 = vld [vmem:[%s390 + $0x20] sm:$0xff]
      %v396 = vld [vmem:[%s390 + $0x28] sm:$0xff]
      %v397 = vld [vmem:[%s390 + $0x30] sm:$0xff]
      %v398 = vld [vmem:[%s390 + $0x38] sm:$0xff]
      %v399 = vld [vmem:[%s390 + $0x40] sm:$0xff]
      %v400 = vld [vmem:[%s390 + $0x48] sm:$0xff]
      %v401 = vld [vmem:[%s390 + $0x50] sm:$0xff]
      %v402 = vld [vmem:[%s390 + $0x58] sm:$0xff]
      %v403 = vld [vmem:[%s390 + $0x60] sm:$0xff]
      %v404 = vld [vmem:[%s390 + $0x68] sm:$0xff]
      %v405 = vld [vmem:[%s390 + $0x70] sm:$0xff]
      %v406 = vld [vmem:[%s390 + $0x78] sm:$0xff]
      %v407 = vld [vmem:[%s390 + $0x80] sm:$0x3]
      %v408 = vpack.c.bf16 %v392, %v391
      %v409 = vpack.c.bf16 %v394, %v393
      %v410 = vpack.c.bf16 %v396, %v395
      %v411 = vpack.c.bf16 %v398, %v397
      %v412 = vpack.c.bf16 %v400, %v399
      %v413 = vpack.c.bf16 %v402, %v401
      %v414 = vpack.c.bf16 %v404, %v403
      %v415 = vpack.c.bf16 %v406, %v405
      %v416 = vpack.c.bf16 %v407, %v407
      %s417 = scalar_lea.vmem %s1, 64
      %v418 = vld [vmem:[%s417] sm:$0xf]
      %v419 = vld [vmem:[%s417 + $0x4] sm:$0xf]
      %v420 = vld [vmem:[%s417 + $0x8] sm:$0xf]
      %v421 = vld [vmem:[%s417 + $0xc] sm:$0xf]
      %v422 = vld [vmem:[%s417 + $0x10] sm:$0xf]
      %v423 = vld [vmem:[%s417 + $0x14] sm:$0xf]
      %v424 = vld [vmem:[%s417 + $0x18] sm:$0xf]
      %v425 = vld [vmem:[%s417 + $0x1c] sm:$0xf]
      %v426 = vld [vmem:[%s417 + $0x20] sm:$0xf]
      %v427 = vld [vmem:[%s417 + $0x24] sm:$0xf]
      %v428 = vld [vmem:[%s417 + $0x28] sm:$0xf]
      %v429 = vld [vmem:[%s417 + $0x2c] sm:$0xf]
      %v430 = vld [vmem:[%s417 + $0x30] sm:$0xf]
      %v431 = vld [vmem:[%s417 + $0x34] sm:$0xf]
      %v432 = vld [vmem:[%s417 + $0x38] sm:$0xf]
      %v433 = vld [vmem:[%s417 + $0x3c] sm:$0xf]
      %v450 = vunpack.c.l.b16 %v418
      %v451 = vunpack.c.l.b16 %v419
      %v452 = vunpack.c.l.b16 %v420
      %v453 = vunpack.c.l.b16 %v421
      %v454 = vunpack.c.l.b16 %v422
      %v455 = vunpack.c.l.b16 %v423
      %v456 = vunpack.c.l.b16 %v424
      %v457 = vunpack.c.l.b16 %v425
      %v458 = vunpack.c.l.b16 %v426
      %v459 = vunpack.c.l.b16 %v427
      %v460 = vunpack.c.l.b16 %v428
      %v461 = vunpack.c.l.b16 %v429
      %v462 = vunpack.c.l.b16 %v430
      %v463 = vunpack.c.l.b16 %v431
      %v464 = vunpack.c.l.b16 %v432
      %v465 = vunpack.c.l.b16 %v433
      %v466 = vpack.c.b16 %v451, %v450
      %v467 = vpack.c.b16 %v453, %v452
      %v468 = vpack.c.b16 %v455, %v454
      %v469 = vpack.c.b16 %v457, %v456
      %v470 = vpack.c.b16 %v459, %v458
      %v471 = vpack.c.b16 %v461, %v460
      %v472 = vpack.c.b16 %v463, %v462
      %v473 = vpack.c.b16 %v465, %v464
      %482 = vmatpush.bf16.msra.mxu0 %v473
      %483 = vmatpush.bf16.msra.mxu0 %v472
      %484 = vmatpush.bf16.msra.mxu0 %v471
      %485 = vmatpush.bf16.msra.mxu0 %v470
      %486 = vmatpush.bf16.msra.mxu0 %v469
      %487 = vmatpush.bf16.msra.mxu0 %v468
      %488 = vmatpush.bf16.msra.mxu0 %v467
      %489 = vmatpush.bf16.msra.mxu0 %v466
      %490 = vmatmul.bf16.gmra.mxu0 %v408
      %v491 = vpop.f32.mrf.mxu0
      %v492 = vadd.f32 0.0, %v491
      %v493 = vpop.f32.mrf.mxu0
      %v494 = vadd.f32 0.0, %v493
      %495 = vmatmul.bf16.gmra.mxu0 %v409
      %v496 = vpop.f32.mrf.mxu0
      %v497 = vadd.f32 0.0, %v496
      %v498 = vpop.f32.mrf.mxu0
      %v499 = vadd.f32 0.0, %v498
      %500 = vmatmul.bf16.gmra.mxu0 %v410
      %v501 = vpop.f32.mrf.mxu0
      %v502 = vadd.f32 0.0, %v501
      %v503 = vpop.f32.mrf.mxu0
      %v504 = vadd.f32 0.0, %v503
      %505 = vmatmul.bf16.gmra.mxu0 %v411
      %v506 = vpop.f32.mrf.mxu0
      %v507 = vadd.f32 0.0, %v506
      %v508 = vpop.f32.mrf.mxu0
      %v509 = vadd.f32 0.0, %v508
      %510 = vmatmul.bf16.gmra.mxu0 %v412
      %v511 = vpop.f32.mrf.mxu0
      %v512 = vadd.f32 0.0, %v511
      %v513 = vpop.f32.mrf.mxu0
      %v514 = vadd.f32 0.0, %v513
      %515 = vmatmul.bf16.gmra.mxu0 %v413
      %v516 = vpop.f32.mrf.mxu0
      %v517 = vadd.f32 0.0, %v516
      %v518 = vpop.f32.mrf.mxu0
      %v519 = vadd.f32 0.0, %v518
      %520 = vmatmul.bf16.gmra.mxu0 %v414
      %v521 = vpop.f32.mrf.mxu0
      %v522 = vadd.f32 0.0, %v521
      %v523 = vpop.f32.mrf.mxu0
      %v524 = vadd.f32 0.0, %v523
      %525 = vmatmul.bf16.gmra.mxu0 %v415
      %v526 = vpop.f32.mrf.mxu0
      %v527 = vadd.f32 0.0, %v526
      %v528 = vpop.f32.mrf.mxu0
      %v529 = vadd.f32 0.0, %v528
      %530 = vmatmul.bf16.gmra.mxu0 %v416
      %v531 = vpop.f32.mrf.mxu0
      %v532 = vadd.f32 0.0, %v531
      %v533 = vpop.f32.mrf.mxu0
      %534 = vdwg.mxu0
      %v551 = vunpack.c.l.b16 %v373
      %v552 = vunpack.c.l.b16 %v374
      %v553 = vunpack.c.l.b16 %v375
      %v554 = vunpack.c.l.b16 %v376
      %v555 = vunpack.c.l.b16 %v377
      %v556 = vunpack.c.l.b16 %v378
      %v557 = vunpack.c.l.b16 %v379
      %v558 = vunpack.c.l.b16 %v380
      %v559 = vunpack.c.l.b16 %v381
      %v560 = vunpack.c.l.b16 %v382
      %v561 = vunpack.c.l.b16 %v383
      %v562 = vunpack.c.l.b16 %v384
      %v563 = vunpack.c.l.b16 %v385
      %v564 = vunpack.c.l.b16 %v386
      %v565 = vunpack.c.l.b16 %v387
      %v566 = vunpack.c.l.b16 %v388
      %v567 = vpack.c.b16 %v552, %v551
      %v568 = vpack.c.b16 %v554, %v553
      %v569 = vpack.c.b16 %v556, %v555
      %v570 = vpack.c.b16 %v558, %v557
      %v571 = vpack.c.b16 %v560, %v559
      %v572 = vpack.c.b16 %v562, %v561
      %v573 = vpack.c.b16 %v564, %v563
      %v574 = vpack.c.b16 %v566, %v565
      %583 = vmatpush.bf16.msra.mxu0 %v574
      %584 = vmatpush.bf16.msra.mxu0 %v573
      %585 = vmatpush.bf16.msra.mxu0 %v572
      %586 = vmatpush.bf16.msra.mxu0 %v571
      %587 = vmatpush.bf16.msra.mxu0 %v570
      %588 = vmatpush.bf16.msra.mxu0 %v569
      %589 = vmatpush.bf16.msra.mxu0 %v568
      %590 = vmatpush.bf16.msra.mxu0 %v567
      %591 = vmatmul.bf16.gmra.mxu0 %v364
      %v592 = vpop.f32.mrf.mxu0
      %v593 = vadd.f32 %v492, %v592
      %v594 = vpop.f32.mrf.mxu0
      %v595 = vadd.f32 %v494, %v594
      %596 = vmatmul.bf16.gmra.mxu0 %v365
      %v597 = vpop.f32.mrf.mxu0
      %v598 = vadd.f32 %v497, %v597
      %v599 = vpop.f32.mrf.mxu0
      %v600 = vadd.f32 %v499, %v599
      %601 = vmatmul.bf16.gmra.mxu0 %v366
      %v602 = vpop.f32.mrf.mxu0
      %v603 = vadd.f32 %v502, %v602
      %v604 = vpop.f32.mrf.mxu0
      %v605 = vadd.f32 %v504, %v604
      %606 = vmatmul.bf16.gmra.mxu0 %v367
      %v607 = vpop.f32.mrf.mxu0
      %v608 = vadd.f32 %v507, %v607
      %v609 = vpop.f32.mrf.mxu0
      %v610 = vadd.f32 %v509, %v609
      %611 = vmatmul.bf16.gmra.mxu0 %v368
      %v612 = vpop.f32.mrf.mxu0
      %v613 = vadd.f32 %v512, %v612
      %v614 = vpop.f32.mrf.mxu0
      %v615 = vadd.f32 %v514, %v614
      %616 = vmatmul.bf16.gmra.mxu0 %v369
      %v617 = vpop.f32.mrf.mxu0
      %v618 = vadd.f32 %v517, %v617
      %v619 = vpop.f32.mrf.mxu0
      %v620 = vadd.f32 %v519, %v619
      %621 = vmatmul.bf16.gmra.mxu0 %v370
      %v622 = vpop.f32.mrf.mxu0
      %v623 = vadd.f32 %v522, %v622
      %v624 = vpop.f32.mrf.mxu0
      %v625 = vadd.f32 %v524, %v624
      %626 = vmatmul.bf16.gmra.mxu0 %v371
      %v627 = vpop.f32.mrf.mxu0
      %v628 = vadd.f32 %v527, %v627
      %v629 = vpop.f32.mrf.mxu0
      %v630 = vadd.f32 %v529, %v629
      %631 = vmatmul.bf16.gmra.mxu0 %v372
      %v632 = vpop.f32.mrf.mxu0
      %v633 = vadd.f32 %v532, %v632
      %v634 = vpop.f32.mrf.mxu0
      %635 = vdwg.mxu0
      %s636 = sadd.s32 %s344, 10
      %s637 = scalar_lea.vmem [#allocation2], %s636
      %v638 = vld [vmem:[%s637] sm:$0xff]
      %v639 = vld [vmem:[%s637 + $0x8] sm:$0xff]
      %v640 = vld [vmem:[%s637 + $0x10] sm:$0xff]
      %v641 = vld [vmem:[%s637 + $0x18] sm:$0xff]
      %v642 = vld [vmem:[%s637 + $0x20] sm:$0xff]
      %v643 = vld [vmem:[%s637 + $0x28] sm:$0xff]
      %v644 = vld [vmem:[%s637 + $0x30] sm:$0xff]
      %v645 = vld [vmem:[%s637 + $0x38] sm:$0xff]
      %v646 = vld [vmem:[%s637 + $0x40] sm:$0xff]
      %v647 = vld [vmem:[%s637 + $0x48] sm:$0xff]
      %v648 = vld [vmem:[%s637 + $0x50] sm:$0xff]
      %v649 = vld [vmem:[%s637 + $0x58] sm:$0xff]
      %v650 = vld [vmem:[%s637 + $0x60] sm:$0xff]
      %v651 = vld [vmem:[%s637 + $0x68] sm:$0xff]
      %v652 = vld [vmem:[%s637 + $0x70] sm:$0xff]
      %v653 = vld [vmem:[%s637 + $0x78] sm:$0xff]
      %v654 = vld [vmem:[%s637 + $0x80] sm:$0x3]
      %v655 = vpack.c.bf16 %v639, %v638
      %v656 = vpack.c.bf16 %v641, %v640
      %v657 = vpack.c.bf16 %v643, %v642
      %v658 = vpack.c.bf16 %v645, %v644
      %v659 = vpack.c.bf16 %v647, %v646
      %v660 = vpack.c.bf16 %v649, %v648
      %v661 = vpack.c.bf16 %v651, %v650
      %v662 = vpack.c.bf16 %v653, %v652
      %v663 = vpack.c.bf16 %v654, %v654
      %s664 = scalar_lea.vmem %s1, 128
      %v665 = vld [vmem:[%s664] sm:$0xf]
      %v666 = vld [vmem:[%s664 + $0x4] sm:$0xf]
      %v667 = vld [vmem:[%s664 + $0x8] sm:$0xf]
      %v668 = vld [vmem:[%s664 + $0xc] sm:$0xf]
      %v669 = vld [vmem:[%s664 + $0x10] sm:$0xf]
      %v670 = vld [vmem:[%s664 + $0x14] sm:$0xf]
      %v671 = vld [vmem:[%s664 + $0x18] sm:$0xf]
      %v672 = vld [vmem:[%s664 + $0x1c] sm:$0xf]
      %v673 = vld [vmem:[%s664 + $0x20] sm:$0xf]
      %v674 = vld [vmem:[%s664 + $0x24] sm:$0xf]
      %v675 = vld [vmem:[%s664 + $0x28] sm:$0xf]
      %v676 = vld [vmem:[%s664 + $0x2c] sm:$0xf]
      %v677 = vld [vmem:[%s664 + $0x30] sm:$0xf]
      %v678 = vld [vmem:[%s664 + $0x34] sm:$0xf]
      %v679 = vld [vmem:[%s664 + $0x38] sm:$0xf]
      %v680 = vld [vmem:[%s664 + $0x3c] sm:$0xf]
      %v697 = vunpack.c.l.b16 %v665
      %v698 = vunpack.c.l.b16 %v666
      %v699 = vunpack.c.l.b16 %v667
      %v700 = vunpack.c.l.b16 %v668
      %v701 = vunpack.c.l.b16 %v669
      %v702 = vunpack.c.l.b16 %v670
      %v703 = vunpack.c.l.b16 %v671
      %v704 = vunpack.c.l.b16 %v672
      %v705 = vunpack.c.l.b16 %v673
      %v706 = vunpack.c.l.b16 %v674
      %v707 = vunpack.c.l.b16 %v675
      %v708 = vunpack.c.l.b16 %v676
      %v709 = vunpack.c.l.b16 %v677
      %v710 = vunpack.c.l.b16 %v678
      %v711 = vunpack.c.l.b16 %v679
      %v712 = vunpack.c.l.b16 %v680
      %v713 = vpack.c.b16 %v698, %v697
      %v714 = vpack.c.b16 %v700, %v699
      %v715 = vpack.c.b16 %v702, %v701
      %v716 = vpack.c.b16 %v704, %v703
      %v717 = vpack.c.b16 %v706, %v705
      %v718 = vpack.c.b16 %v708, %v707
      %v719 = vpack.c.b16 %v710, %v709
      %v720 = vpack.c.b16 %v712, %v711
      %729 = vmatpush.bf16.msra.mxu0 %v720
      %730 = vmatpush.bf16.msra.mxu0 %v719
      %731 = vmatpush.bf16.msra.mxu0 %v718
      %732 = vmatpush.bf16.msra.mxu0 %v717
      %733 = vmatpush.bf16.msra.mxu0 %v716
      %734 = vmatpush.bf16.msra.mxu0 %v715
      %735 = vmatpush.bf16.msra.mxu0 %v714
      %736 = vmatpush.bf16.msra.mxu0 %v713
      %737 = vmatmul.bf16.gmra.mxu0 %v655
      %v738 = vpop.f32.mrf.mxu0
      %v739 = vadd.f32 0.0, %v738
      %v740 = vpop.f32.mrf.mxu0
      %v741 = vadd.f32 0.0, %v740
      %742 = vmatmul.bf16.gmra.mxu0 %v656
      %v743 = vpop.f32.mrf.mxu0
      %v744 = vadd.f32 0.0, %v743
      %v745 = vpop.f32.mrf.mxu0
      %v746 = vadd.f32 0.0, %v745
      %747 = vmatmul.bf16.gmra.mxu0 %v657
      %v748 = vpop.f32.mrf.mxu0
      %v749 = vadd.f32 0.0, %v748
      %v750 = vpop.f32.mrf.mxu0
      %v751 = vadd.f32 0.0, %v750
      %752 = vmatmul.bf16.gmra.mxu0 %v658
      %v753 = vpop.f32.mrf.mxu0
      %v754 = vadd.f32 0.0, %v753
      %v755 = vpop.f32.mrf.mxu0
      %v756 = vadd.f32 0.0, %v755
      %757 = vmatmul.bf16.gmra.mxu0 %v659
      %v758 = vpop.f32.mrf.mxu0
      %v759 = vadd.f32 0.0, %v758
      %v760 = vpop.f32.mrf.mxu0
      %v761 = vadd.f32 0.0, %v760
      %762 = vmatmul.bf16.gmra.mxu0 %v660
      %v763 = vpop.f32.mrf.mxu0
      %v764 = vadd.f32 0.0, %v763
      %v765 = vpop.f32.mrf.mxu0
      %v766 = vadd.f32 0.0, %v765
      %767 = vmatmul.bf16.gmra.mxu0 %v661
      %v768 = vpop.f32.mrf.mxu0
      %v769 = vadd.f32 0.0, %v768
      %v770 = vpop.f32.mrf.mxu0
      %v771 = vadd.f32 0.0, %v770
      %772 = vmatmul.bf16.gmra.mxu0 %v662
      %v773 = vpop.f32.mrf.mxu0
      %v774 = vadd.f32 0.0, %v773
      %v775 = vpop.f32.mrf.mxu0
      %v776 = vadd.f32 0.0, %v775
      %777 = vmatmul.bf16.gmra.mxu0 %v663
      %v778 = vpop.f32.mrf.mxu0
      %v779 = vadd.f32 0.0, %v778
      %v780 = vpop.f32.mrf.mxu0
      %781 = vdwg.mxu0
      %v782 = vadd.f32 %v593, %v739
      %v783 = vadd.f32 %v595, %v741
      %v784 = vadd.f32 %v598, %v744
      %v785 = vadd.f32 %v600, %v746
      %v786 = vadd.f32 %v603, %v749
      %v787 = vadd.f32 %v605, %v751
      %v788 = vadd.f32 %v608, %v754
      %v789 = vadd.f32 %v610, %v756
      %v790 = vadd.f32 %v613, %v759
      %v791 = vadd.f32 %v615, %v761
      %v792 = vadd.f32 %v618, %v764
      %v793 = vadd.f32 %v620, %v766
      %v794 = vadd.f32 %v623, %v769
      %v795 = vadd.f32 %v625, %v771
      %v796 = vadd.f32 %v628, %v774
      %v797 = vadd.f32 %v630, %v776
      %v798 = vadd.f32 %v633, %v779
      %v799 = vld [vmem:[%s2] sm:$0x1]
      %v801 = vperm.slane %v799, 0
      %v803 = vadd.f32 %v782, %v801
      %v804 = vadd.f32 %v783, %v801
      %v805 = vadd.f32 %v784, %v801
      %v806 = vadd.f32 %v785, %v801
      %v807 = vadd.f32 %v786, %v801
      %v808 = vadd.f32 %v787, %v801
      %v809 = vadd.f32 %v788, %v801
      %v810 = vadd.f32 %v789, %v801
      %v811 = vadd.f32 %v790, %v801
      %v812 = vadd.f32 %v791, %v801
      %v813 = vadd.f32 %v792, %v801
      %v814 = vadd.f32 %v793, %v801
      %v815 = vadd.f32 %v794, %v801
      %v816 = vadd.f32 %v795, %v801
      %v817 = vadd.f32 %v796, %v801
      %v818 = vadd.f32 %v797, %v801
      %v819 = vadd.f32 %v798, %v801
      %vm820 = vcmp.ge.f32.partialorder %v803, 0.0
      %vm821 = vcmp.ge.f32.partialorder %v804, 0.0
      %vm822 = vcmp.ge.f32.partialorder %v805, 0.0
      %vm823 = vcmp.ge.f32.partialorder %v806, 0.0
      %vm824 = vcmp.ge.f32.partialorder %v807, 0.0
      %vm825 = vcmp.ge.f32.partialorder %v808, 0.0
      %vm826 = vcmp.ge.f32.partialorder %v809, 0.0
      %vm827 = vcmp.ge.f32.partialorder %v810, 0.0
      %vm828 = vcmp.ge.f32.partialorder %v811, 0.0
      %vm829 = vcmp.ge.f32.partialorder %v812, 0.0
      %vm830 = vcmp.ge.f32.partialorder %v813, 0.0
      %vm831 = vcmp.ge.f32.partialorder %v814, 0.0
      %vm832 = vcmp.ge.f32.partialorder %v815, 0.0
      %vm833 = vcmp.ge.f32.partialorder %v816, 0.0
      %vm834 = vcmp.ge.f32.partialorder %v817, 0.0
      %vm835 = vcmp.ge.f32.partialorder %v818, 0.0
      %vm836 = vcmp.ge.f32.partialorder %v819, 0.0
      %v837 = vmul.f32 %v803, 0.1
      %v838 = vmul.f32 %v804, 0.1
      %v839 = vmul.f32 %v805, 0.1
      %v840 = vmul.f32 %v806, 0.1
      %v841 = vmul.f32 %v807, 0.1
      %v842 = vmul.f32 %v808, 0.1
      %v843 = vmul.f32 %v809, 0.1
      %v844 = vmul.f32 %v810, 0.1
      %v845 = vmul.f32 %v811, 0.1
      %v846 = vmul.f32 %v812, 0.1
      %v847 = vmul.f32 %v813, 0.1
      %v848 = vmul.f32 %v814, 0.1
      %v849 = vmul.f32 %v815, 0.1
      %v850 = vmul.f32 %v816, 0.1
      %v851 = vmul.f32 %v817, 0.1
      %v852 = vmul.f32 %v818, 0.1
      %v853 = vmul.f32 %v819, 0.1
      %v854 = vsel %vm820, %v803, %v837
      %v855 = vsel %vm821, %v804, %v838
      %v856 = vsel %vm822, %v805, %v839
      %v857 = vsel %vm823, %v806, %v840
      %v858 = vsel %vm824, %v807, %v841
      %v859 = vsel %vm825, %v808, %v842
      %v860 = vsel %vm826, %v809, %v843
      %v861 = vsel %vm827, %v810, %v844
      %v862 = vsel %vm828, %v811, %v845
      %v863 = vsel %vm829, %v812, %v846
      %v864 = vsel %vm830, %v813, %v847
      %v865 = vsel %vm831, %v814, %v848
      %v866 = vsel %vm832, %v815, %v849
      %v867 = vsel %vm833, %v816, %v850
      %v868 = vsel %vm834, %v817, %v851
      %v869 = vsel %vm835, %v818, %v852
      %v870 = vsel %vm836, %v819, %v853
      %s871 = ssub.s32 %s344, 1
      %v872 = vlaneseq
      %v873 = vshrl.u32 %v872, 7
      %v874 = vadd.s32 %v873, 8
      %v875 = vadd.s32 %v873, 16
      %v876 = vadd.s32 %v873, 24
      %v877 = vadd.s32 %v873, 32
      %v878 = vadd.s32 %v873, 40
      %v879 = vadd.s32 %v873, 48
      %v880 = vadd.s32 %v873, 56
      %v881 = vadd.s32 %v873, 64
      %v882 = vadd.s32 %v873, 72
      %v883 = vadd.s32 %v873, 80
      %v884 = vadd.s32 %v873, 88
      %v885 = vadd.s32 %v873, 96
      %v886 = vadd.s32 %v873, 104
      %v887 = vadd.s32 %v873, 112
      %v888 = vadd.s32 %v873, 120
      %v889 = vadd.s32 %v873, 128
      %v890 = vstv %s871
      %v891 = vadd.s32 %v890, %v873
      %v892 = vadd.s32 %v890, %v874
      %v893 = vadd.s32 %v890, %v875
      %v894 = vadd.s32 %v890, %v876
      %v895 = vadd.s32 %v890, %v877
      %v896 = vadd.s32 %v890, %v878
      %v897 = vadd.s32 %v890, %v879
      %v898 = vadd.s32 %v890, %v880
      %v899 = vadd.s32 %v890, %v881
      %v900 = vadd.s32 %v890, %v882
      %v901 = vadd.s32 %v890, %v883
      %v902 = vadd.s32 %v890, %v884
      %v903 = vadd.s32 %v890, %v885
      %v904 = vadd.s32 %v890, %v886
      %v905 = vadd.s32 %v890, %v887
      %v906 = vadd.s32 %v890, %v888
      %v907 = vadd.s32 %v890, %v889
      %vm908 = vcmp.ge.s32.totalorder %v891, 0
      %vm909 = vcmp.ge.s32.totalorder %v892, 0
      %vm910 = vcmp.ge.s32.totalorder %v893, 0
      %vm911 = vcmp.ge.s32.totalorder %v894, 0
      %vm912 = vcmp.ge.s32.totalorder %v895, 0
      %vm913 = vcmp.ge.s32.totalorder %v896, 0
      %vm914 = vcmp.ge.s32.totalorder %v897, 0
      %vm915 = vcmp.ge.s32.totalorder %v898, 0
      %vm916 = vcmp.ge.s32.totalorder %v899, 0
      %vm917 = vcmp.ge.s32.totalorder %v900, 0
      %vm918 = vcmp.ge.s32.totalorder %v901, 0
      %vm919 = vcmp.ge.s32.totalorder %v902, 0
      %vm920 = vcmp.ge.s32.totalorder %v903, 0
      %vm921 = vcmp.ge.s32.totalorder %v904, 0
      %vm922 = vcmp.ge.s32.totalorder %v905, 0
      %vm923 = vcmp.ge.s32.totalorder %v906, 0
      %vm924 = vcmp.ge.s32.totalorder %v907, 0
      %vm925 = vcmp.lt.s32.totalorder %v891, 256
      %vm926 = vcmp.lt.s32.totalorder %v892, 256
      %vm927 = vcmp.lt.s32.totalorder %v893, 256
      %vm928 = vcmp.lt.s32.totalorder %v894, 256
      %vm929 = vcmp.lt.s32.totalorder %v895, 256
      %vm930 = vcmp.lt.s32.totalorder %v896, 256
      %vm931 = vcmp.lt.s32.totalorder %v897, 256
      %vm932 = vcmp.lt.s32.totalorder %v898, 256
      %vm933 = vcmp.lt.s32.totalorder %v899, 256
      %vm934 = vcmp.lt.s32.totalorder %v900, 256
      %vm935 = vcmp.lt.s32.totalorder %v901, 256
      %vm936 = vcmp.lt.s32.totalorder %v902, 256
      %vm937 = vcmp.lt.s32.totalorder %v903, 256
      %vm938 = vcmp.lt.s32.totalorder %v904, 256
      %vm939 = vcmp.lt.s32.totalorder %v905, 256
      %vm940 = vcmp.lt.s32.totalorder %v906, 256
      %vm941 = vcmp.lt.s32.totalorder %v907, 256
      %vm942 = vmand %vm908, %vm925
      %vm943 = vmand %vm909, %vm926
      %vm944 = vmand %vm910, %vm927
      %vm945 = vmand %vm911, %vm928
      %vm946 = vmand %vm912, %vm929
      %vm947 = vmand %vm913, %vm930
      %vm948 = vmand %vm914, %vm931
      %vm949 = vmand %vm915, %vm932
      %vm950 = vmand %vm916, %vm933
      %vm951 = vmand %vm917, %vm934
      %vm952 = vmand %vm918, %vm935
      %vm953 = vmand %vm919, %vm936
      %vm954 = vmand %vm920, %vm937
      %vm955 = vmand %vm921, %vm938
      %vm956 = vmand %vm922, %vm939
      %vm957 = vmand %vm923, %vm940
      %vm958 = vmand %vm924, %vm941
      %v959 = vsel %vm942, 1, 0
      %v960 = vsel %vm943, 1, 0
      %v961 = vsel %vm944, 1, 0
      %v962 = vsel %vm945, 1, 0
      %v963 = vsel %vm946, 1, 0
      %v964 = vsel %vm947, 1, 0
      %v965 = vsel %vm948, 1, 0
      %v966 = vsel %vm949, 1, 0
      %v967 = vsel %vm950, 1, 0
      %v968 = vsel %vm951, 1, 0
      %v969 = vsel %vm952, 1, 0
      %v970 = vsel %vm953, 1, 0
      %v971 = vsel %vm954, 1, 0
      %v972 = vsel %vm955, 1, 0
      %v973 = vsel %vm956, 1, 0
      %v974 = vsel %vm957, 1, 0
      %v975 = vsel %vm958, 1, 0
      %vm976 = vcmp.eq.s32.totalorder %v959, 1
      %vm977 = vcmp.eq.s32.totalorder %v960, 1
      %vm978 = vcmp.eq.s32.totalorder %v961, 1
      %vm979 = vcmp.eq.s32.totalorder %v962, 1
      %vm980 = vcmp.eq.s32.totalorder %v963, 1
      %vm981 = vcmp.eq.s32.totalorder %v964, 1
      %vm982 = vcmp.eq.s32.totalorder %v965, 1
      %vm983 = vcmp.eq.s32.totalorder %v966, 1
      %vm984 = vcmp.eq.s32.totalorder %v967, 1
      %vm985 = vcmp.eq.s32.totalorder %v968, 1
      %vm986 = vcmp.eq.s32.totalorder %v969, 1
      %vm987 = vcmp.eq.s32.totalorder %v970, 1
      %vm988 = vcmp.eq.s32.totalorder %v971, 1
      %vm989 = vcmp.eq.s32.totalorder %v972, 1
      %vm990 = vcmp.eq.s32.totalorder %v973, 1
      %vm991 = vcmp.eq.s32.totalorder %v974, 1
      %vm992 = vcmp.eq.s32.totalorder %v975, 1
      %v993 = vsel %vm976, %v854, 0.0
      %v994 = vsel %vm977, %v855, 0.0
      %v995 = vsel %vm978, %v856, 0.0
      %v996 = vsel %vm979, %v857, 0.0
      %v997 = vsel %vm980, %v858, 0.0
      %v998 = vsel %vm981, %v859, 0.0
      %v999 = vsel %vm982, %v860, 0.0
      %v1000 = vsel %vm983, %v861, 0.0
      %v1001 = vsel %vm984, %v862, 0.0
      %v1002 = vsel %vm985, %v863, 0.0
      %v1003 = vsel %vm986, %v864, 0.0
      %v1004 = vsel %vm987, %v865, 0.0
      %v1005 = vsel %vm988, %v866, 0.0
      %v1006 = vsel %vm989, %v867, 0.0
      %v1007 = vsel %vm990, %v868, 0.0
      %v1008 = vsel %vm991, %v869, 0.0
      %v1009 = vsel %vm992, %v870, 0.0
      %1010 = vst [vmem:[#allocation3] sm:$0xff] %v993
      %1011 = vst [vmem:[#allocation3 + $0x8] sm:$0xff] %v994
      %1012 = vst [vmem:[#allocation3 + $0x10] sm:$0xff] %v995
      %1013 = vst [vmem:[#allocation3 + $0x18] sm:$0xff] %v996
      %1014 = vst [vmem:[#allocation3 + $0x20] sm:$0xff] %v997
      %1015 = vst [vmem:[#allocation3 + $0x28] sm:$0xff] %v998
      %1016 = vst [vmem:[#allocation3 + $0x30] sm:$0xff] %v999
      %1017 = vst [vmem:[#allocation3 + $0x38] sm:$0xff] %v1000
      %1018 = vst [vmem:[#allocation3 + $0x40] sm:$0xff] %v1001
      %1019 = vst [vmem:[#allocation3 + $0x48] sm:$0xff] %v1002
      %1020 = vst [vmem:[#allocation3 + $0x50] sm:$0xff] %v1003
      %1021 = vst [vmem:[#allocation3 + $0x58] sm:$0xff] %v1004
      %1022 = vst [vmem:[#allocation3 + $0x60] sm:$0xff] %v1005
      %1023 = vst [vmem:[#allocation3 + $0x68] sm:$0xff] %v1006
      %1024 = vst [vmem:[#allocation3 + $0x70] sm:$0xff] %v1007
      %1025 = vst [vmem:[#allocation3 + $0x78] sm:$0xff] %v1008
      %1026 = vst [vmem:[#allocation3 + $0x80] sm:$0x3] %v1009
      %v1027 = vld [vmem:[#allocation3] sm:$0xff]
      %v1028 = vld [vmem:[#allocation3 + $0x8] sm:$0xff]
      %v1029 = vld [vmem:[#allocation3 + $0x10] sm:$0xff]
      %v1030 = vld [vmem:[#allocation3 + $0x18] sm:$0xff]
      %v1031 = vld [vmem:[#allocation3 + $0x20] sm:$0xff]
      %v1032 = vld [vmem:[#allocation3 + $0x28] sm:$0xff]
      %v1033 = vld [vmem:[#allocation3 + $0x30] sm:$0xff]
      %v1034 = vld [vmem:[#allocation3 + $0x38] sm:$0xff]
      %v1035 = vld [vmem:[#allocation3 + $0x40] sm:$0xff]
      %v1036 = vld [vmem:[#allocation3 + $0x48] sm:$0xff]
      %v1037 = vld [vmem:[#allocation3 + $0x50] sm:$0xff]
      %v1038 = vld [vmem:[#allocation3 + $0x58] sm:$0xff]
      %v1039 = vld [vmem:[#allocation3 + $0x60] sm:$0xff]
      %v1040 = vld [vmem:[#allocation3 + $0x68] sm:$0xff]
      %v1041 = vld [vmem:[#allocation3 + $0x70] sm:$0xff]
      %v1042 = vld [vmem:[#allocation3 + $0x78] sm:$0xff]
      %v1043 = vpack.c.bf16 %v1028, %v1027
      %v1044 = vpack.c.bf16 %v1030, %v1029
      %v1045 = vpack.c.bf16 %v1032, %v1031
      %v1046 = vpack.c.bf16 %v1034, %v1033
      %v1047 = vpack.c.bf16 %v1036, %v1035
      %v1048 = vpack.c.bf16 %v1038, %v1037
      %v1049 = vpack.c.bf16 %v1040, %v1039
      %v1050 = vpack.c.bf16 %v1042, %v1041
      %v1051 = vld [vmem:[%s3] sm:$0xf]
      %v1052 = vld [vmem:[%s3 + $0x4] sm:$0xf]
      %v1053 = vld [vmem:[%s3 + $0x8] sm:$0xf]
      %v1054 = vld [vmem:[%s3 + $0xc] sm:$0xf]
      %v1055 = vld [vmem:[%s3 + $0x10] sm:$0xf]
      %v1056 = vld [vmem:[%s3 + $0x14] sm:$0xf]
      %v1057 = vld [vmem:[%s3 + $0x18] sm:$0xf]
      %v1058 = vld [vmem:[%s3 + $0x1c] sm:$0xf]
      %v1059 = vld [vmem:[%s3 + $0x20] sm:$0xf]
      %v1060 = vld [vmem:[%s3 + $0x24] sm:$0xf]
      %v1061 = vld [vmem:[%s3 + $0x28] sm:$0xf]
      %v1062 = vld [vmem:[%s3 + $0x2c] sm:$0xf]
      %v1063 = vld [vmem:[%s3 + $0x30] sm:$0xf]
      %v1064 = vld [vmem:[%s3 + $0x34] sm:$0xf]
      %v1065 = vld [vmem:[%s3 + $0x38] sm:$0xf]
      %v1066 = vld [vmem:[%s3 + $0x3c] sm:$0xf]
      %v1067 = vld [vmem:[#allocation3 + $0x1] sm:$0xff]
      %v1068 = vld [vmem:[#allocation3 + $0x9] sm:$0xff]
      %v1069 = vld [vmem:[#allocation3 + $0x11] sm:$0xff]
      %v1070 = vld [vmem:[#allocation3 + $0x19] sm:$0xff]
      %v1071 = vld [vmem:[#allocation3 + $0x21] sm:$0xff]
      %v1072 = vld [vmem:[#allocation3 + $0x29] sm:$0xff]
      %v1073 = vld [vmem:[#allocation3 + $0x31] sm:$0xff]
      %v1074 = vld [vmem:[#allocation3 + $0x39] sm:$0xff]
      %v1075 = vld [vmem:[#allocation3 + $0x41] sm:$0xff]
      %v1076 = vld [vmem:[#allocation3 + $0x49] sm:$0xff]
      %v1077 = vld [vmem:[#allocation3 + $0x51] sm:$0xff]
      %v1078 = vld [vmem:[#allocation3 + $0x59] sm:$0xff]
      %v1079 = vld [vmem:[#allocation3 + $0x61] sm:$0xff]
      %v1080 = vld [vmem:[#allocation3 + $0x69] sm:$0xff]
      %v1081 = vld [vmem:[#allocation3 + $0x71] sm:$0xff]
      %v1082 = vld [vmem:[#allocation3 + $0x79] sm:$0xff]
      %v1083 = vpack.c.bf16 %v1068, %v1067
      %v1084 = vpack.c.bf16 %v1070, %v1069
      %v1085 = vpack.c.bf16 %v1072, %v1071
      %v1086 = vpack.c.bf16 %v1074, %v1073
      %v1087 = vpack.c.bf16 %v1076, %v1075
      %v1088 = vpack.c.bf16 %v1078, %v1077
      %v1089 = vpack.c.bf16 %v1080, %v1079
      %v1090 = vpack.c.bf16 %v1082, %v1081
      %s1091 = scalar_lea.vmem %s3, 64
      %v1092 = vld [vmem:[%s1091] sm:$0xf]
      %v1093 = vld [vmem:[%s1091 + $0x4] sm:$0xf]
      %v1094 = vld [vmem:[%s1091 + $0x8] sm:$0xf]
      %v1095 = vld [vmem:[%s1091 + $0xc] sm:$0xf]
      %v1096 = vld [vmem:[%s1091 + $0x10] sm:$0xf]
      %v1097 = vld [vmem:[%s1091 + $0x14] sm:$0xf]
      %v1098 = vld [vmem:[%s1091 + $0x18] sm:$0xf]
      %v1099 = vld [vmem:[%s1091 + $0x1c] sm:$0xf]
      %v1100 = vld [vmem:[%s1091 + $0x20] sm:$0xf]
      %v1101 = vld [vmem:[%s1091 + $0x24] sm:$0xf]
      %v1102 = vld [vmem:[%s1091 + $0x28] sm:$0xf]
      %v1103 = vld [vmem:[%s1091 + $0x2c] sm:$0xf]
      %v1104 = vld [vmem:[%s1091 + $0x30] sm:$0xf]
      %v1105 = vld [vmem:[%s1091 + $0x34] sm:$0xf]
      %v1106 = vld [vmem:[%s1091 + $0x38] sm:$0xf]
      %v1107 = vld [vmem:[%s1091 + $0x3c] sm:$0xf]
      %v1124 = vunpack.c.l.b16 %v1092
      %v1125 = vunpack.c.l.b16 %v1093
      %v1126 = vunpack.c.l.b16 %v1094
      %v1127 = vunpack.c.l.b16 %v1095
      %v1128 = vunpack.c.l.b16 %v1096
      %v1129 = vunpack.c.l.b16 %v1097
      %v1130 = vunpack.c.l.b16 %v1098
      %v1131 = vunpack.c.l.b16 %v1099
      %v1132 = vunpack.c.l.b16 %v1100
      %v1133 = vunpack.c.l.b16 %v1101
      %v1134 = vunpack.c.l.b16 %v1102
      %v1135 = vunpack.c.l.b16 %v1103
      %v1136 = vunpack.c.l.b16 %v1104
      %v1137 = vunpack.c.l.b16 %v1105
      %v1138 = vunpack.c.l.b16 %v1106
      %v1139 = vunpack.c.l.b16 %v1107
      %v1140 = vpack.c.b16 %v1125, %v1124
      %v1141 = vpack.c.b16 %v1127, %v1126
      %v1142 = vpack.c.b16 %v1129, %v1128
      %v1143 = vpack.c.b16 %v1131, %v1130
      %v1144 = vpack.c.b16 %v1133, %v1132
      %v1145 = vpack.c.b16 %v1135, %v1134
      %v1146 = vpack.c.b16 %v1137, %v1136
      %v1147 = vpack.c.b16 %v1139, %v1138
      %1156 = vmatpush.bf16.msra.mxu0 %v1147
      %1157 = vmatpush.bf16.msra.mxu0 %v1146
      %1158 = vmatpush.bf16.msra.mxu0 %v1145
      %1159 = vmatpush.bf16.msra.mxu0 %v1144
      %1160 = vmatpush.bf16.msra.mxu0 %v1143
      %1161 = vmatpush.bf16.msra.mxu0 %v1142
      %1162 = vmatpush.bf16.msra.mxu0 %v1141
      %1163 = vmatpush.bf16.msra.mxu0 %v1140
      %1164 = vmatmul.bf16.gmra.mxu0 %v1083
      %v1165 = vpop.f32.mrf.mxu0
      %v1166 = vadd.f32 0.0, %v1165
      %v1167 = vpop.f32.mrf.mxu0
      %v1168 = vadd.f32 0.0, %v1167
      %1169 = vmatmul.bf16.gmra.mxu0 %v1084
      %v1170 = vpop.f32.mrf.mxu0
      %v1171 = vadd.f32 0.0, %v1170
      %v1172 = vpop.f32.mrf.mxu0
      %v1173 = vadd.f32 0.0, %v1172
      %1174 = vmatmul.bf16.gmra.mxu0 %v1085
      %v1175 = vpop.f32.mrf.mxu0
      %v1176 = vadd.f32 0.0, %v1175
      %v1177 = vpop.f32.mrf.mxu0
      %v1178 = vadd.f32 0.0, %v1177
      %1179 = vmatmul.bf16.gmra.mxu0 %v1086
      %v1180 = vpop.f32.mrf.mxu0
      %v1181 = vadd.f32 0.0, %v1180
      %v1182 = vpop.f32.mrf.mxu0
      %v1183 = vadd.f32 0.0, %v1182
      %1184 = vmatmul.bf16.gmra.mxu0 %v1087
      %v1185 = vpop.f32.mrf.mxu0
      %v1186 = vadd.f32 0.0, %v1185
      %v1187 = vpop.f32.mrf.mxu0
      %v1188 = vadd.f32 0.0, %v1187
      %1189 = vmatmul.bf16.gmra.mxu0 %v1088
      %v1190 = vpop.f32.mrf.mxu0
      %v1191 = vadd.f32 0.0, %v1190
      %v1192 = vpop.f32.mrf.mxu0
      %v1193 = vadd.f32 0.0, %v1192
      %1194 = vmatmul.bf16.gmra.mxu0 %v1089
      %v1195 = vpop.f32.mrf.mxu0
      %v1196 = vadd.f32 0.0, %v1195
      %v1197 = vpop.f32.mrf.mxu0
      %v1198 = vadd.f32 0.0, %v1197
      %1199 = vmatmul.bf16.gmra.mxu0 %v1090
      %v1200 = vpop.f32.mrf.mxu0
      %v1201 = vadd.f32 0.0, %v1200
      %v1202 = vpop.f32.mrf.mxu0
      %v1203 = vadd.f32 0.0, %v1202
      %1204 = vdwg.mxu0
      %v1221 = vunpack.c.l.b16 %v1051
      %v1222 = vunpack.c.l.b16 %v1052
      %v1223 = vunpack.c.l.b16 %v1053
      %v1224 = vunpack.c.l.b16 %v1054
      %v1225 = vunpack.c.l.b16 %v1055
      %v1226 = vunpack.c.l.b16 %v1056
      %v1227 = vunpack.c.l.b16 %v1057
      %v1228 = vunpack.c.l.b16 %v1058
      %v1229 = vunpack.c.l.b16 %v1059
      %v1230 = vunpack.c.l.b16 %v1060
      %v1231 = vunpack.c.l.b16 %v1061
      %v1232 = vunpack.c.l.b16 %v1062
      %v1233 = vunpack.c.l.b16 %v1063
      %v1234 = vunpack.c.l.b16 %v1064
      %v1235 = vunpack.c.l.b16 %v1065
      %v1236 = vunpack.c.l.b16 %v1066
      %v1237 = vpack.c.b16 %v1222, %v1221
      %v1238 = vpack.c.b16 %v1224, %v1223
      %v1239 = vpack.c.b16 %v1226, %v1225
      %v1240 = vpack.c.b16 %v1228, %v1227
      %v1241 = vpack.c.b16 %v1230, %v1229
      %v1242 = vpack.c.b16 %v1232, %v1231
      %v1243 = vpack.c.b16 %v1234, %v1233
      %v1244 = vpack.c.b16 %v1236, %v1235
      %1253 = vmatpush.bf16.msra.mxu0 %v1244
      %1254 = vmatpush.bf16.msra.mxu0 %v1243
      %1255 = vmatpush.bf16.msra.mxu0 %v1242
      %1256 = vmatpush.bf16.msra.mxu0 %v1241
      %1257 = vmatpush.bf16.msra.mxu0 %v1240
      %1258 = vmatpush.bf16.msra.mxu0 %v1239
      %1259 = vmatpush.bf16.msra.mxu0 %v1238
      %1260 = vmatpush.bf16.msra.mxu0 %v1237
      %1261 = vmatmul.bf16.gmra.mxu0 %v1043
      %v1262 = vpop.f32.mrf.mxu0
      %v1263 = vadd.f32 %v1166, %v1262
      %v1264 = vpop.f32.mrf.mxu0
      %v1265 = vadd.f32 %v1168, %v1264
      %1266 = vmatmul.bf16.gmra.mxu0 %v1044
      %v1267 = vpop.f32.mrf.mxu0
      %v1268 = vadd.f32 %v1171, %v1267
      %v1269 = vpop.f32.mrf.mxu0
      %v1270 = vadd.f32 %v1173, %v1269
      %1271 = vmatmul.bf16.gmra.mxu0 %v1045
      %v1272 = vpop.f32.mrf.mxu0
      %v1273 = vadd.f32 %v1176, %v1272
      %v1274 = vpop.f32.mrf.mxu0
      %v1275 = vadd.f32 %v1178, %v1274
      %1276 = vmatmul.bf16.gmra.mxu0 %v1046
      %v1277 = vpop.f32.mrf.mxu0
      %v1278 = vadd.f32 %v1181, %v1277
      %v1279 = vpop.f32.mrf.mxu0
      %v1280 = vadd.f32 %v1183, %v1279
      %1281 = vmatmul.bf16.gmra.mxu0 %v1047
      %v1282 = vpop.f32.mrf.mxu0
      %v1283 = vadd.f32 %v1186, %v1282
      %v1284 = vpop.f32.mrf.mxu0
      %v1285 = vadd.f32 %v1188, %v1284
      %1286 = vmatmul.bf16.gmra.mxu0 %v1048
      %v1287 = vpop.f32.mrf.mxu0
      %v1288 = vadd.f32 %v1191, %v1287
      %v1289 = vpop.f32.mrf.mxu0
      %v1290 = vadd.f32 %v1193, %v1289
      %1291 = vmatmul.bf16.gmra.mxu0 %v1049
      %v1292 = vpop.f32.mrf.mxu0
      %v1293 = vadd.f32 %v1196, %v1292
      %v1294 = vpop.f32.mrf.mxu0
      %v1295 = vadd.f32 %v1198, %v1294
      %1296 = vmatmul.bf16.gmra.mxu0 %v1050
      %v1297 = vpop.f32.mrf.mxu0
      %v1298 = vadd.f32 %v1201, %v1297
      %v1299 = vpop.f32.mrf.mxu0
      %v1300 = vadd.f32 %v1203, %v1299
      %1301 = vdwg.mxu0
      %v1302 = vld [vmem:[#allocation3 + $0x2] sm:$0xff]
      %v1303 = vld [vmem:[#allocation3 + $0xa] sm:$0xff]
      %v1304 = vld [vmem:[#allocation3 + $0x12] sm:$0xff]
      %v1305 = vld [vmem:[#allocation3 + $0x1a] sm:$0xff]
      %v1306 = vld [vmem:[#allocation3 + $0x22] sm:$0xff]
      %v1307 = vld [vmem:[#allocation3 + $0x2a] sm:$0xff]
      %v1308 = vld [vmem:[#allocation3 + $0x32] sm:$0xff]
      %v1309 = vld [vmem:[#allocation3 + $0x3a] sm:$0xff]
      %v1310 = vld [vmem:[#allocation3 + $0x42] sm:$0xff]
      %v1311 = vld [vmem:[#allocation3 + $0x4a] sm:$0xff]
      %v1312 = vld [vmem:[#allocation3 + $0x52] sm:$0xff]
      %v1313 = vld [vmem:[#allocation3 + $0x5a] sm:$0xff]
      %v1314 = vld [vmem:[#allocation3 + $0x62] sm:$0xff]
      %v1315 = vld [vmem:[#allocation3 + $0x6a] sm:$0xff]
      %v1316 = vld [vmem:[#allocation3 + $0x72] sm:$0xff]
      %v1317 = vld [vmem:[#allocation3 + $0x7a] sm:$0xff]
      %v1318 = vpack.c.bf16 %v1303, %v1302
      %v1319 = vpack.c.bf16 %v1305, %v1304
      %v1320 = vpack.c.bf16 %v1307, %v1306
      %v1321 = vpack.c.bf16 %v1309, %v1308
      %v1322 = vpack.c.bf16 %v1311, %v1310
      %v1323 = vpack.c.bf16 %v1313, %v1312
      %v1324 = vpack.c.bf16 %v1315, %v1314
      %v1325 = vpack.c.bf16 %v1317, %v1316
      %s1326 = scalar_lea.vmem %s3, 128
      %v1327 = vld [vmem:[%s1326] sm:$0xf]
      %v1328 = vld [vmem:[%s1326 + $0x4] sm:$0xf]
      %v1329 = vld [vmem:[%s1326 + $0x8] sm:$0xf]
      %v1330 = vld [vmem:[%s1326 + $0xc] sm:$0xf]
      %v1331 = vld [vmem:[%s1326 + $0x10] sm:$0xf]
      %v1332 = vld [vmem:[%s1326 + $0x14] sm:$0xf]
      %v1333 = vld [vmem:[%s1326 + $0x18] sm:$0xf]
      %v1334 = vld [vmem:[%s1326 + $0x1c] sm:$0xf]
      %v1335 = vld [vmem:[%s1326 + $0x20] sm:$0xf]
      %v1336 = vld [vmem:[%s1326 + $0x24] sm:$0xf]
      %v1337 = vld [vmem:[%s1326 + $0x28] sm:$0xf]
      %v1338 = vld [vmem:[%s1326 + $0x2c] sm:$0xf]
      %v1339 = vld [vmem:[%s1326 + $0x30] sm:$0xf]
      %v1340 = vld [vmem:[%s1326 + $0x34] sm:$0xf]
      %v1341 = vld [vmem:[%s1326 + $0x38] sm:$0xf]
      %v1342 = vld [vmem:[%s1326 + $0x3c] sm:$0xf]
      %v1359 = vunpack.c.l.b16 %v1327
      %v1360 = vunpack.c.l.b16 %v1328
      %v1361 = vunpack.c.l.b16 %v1329
      %v1362 = vunpack.c.l.b16 %v1330
      %v1363 = vunpack.c.l.b16 %v1331
      %v1364 = vunpack.c.l.b16 %v1332
      %v1365 = vunpack.c.l.b16 %v1333
      %v1366 = vunpack.c.l.b16 %v1334
      %v1367 = vunpack.c.l.b16 %v1335
      %v1368 = vunpack.c.l.b16 %v1336
      %v1369 = vunpack.c.l.b16 %v1337
      %v1370 = vunpack.c.l.b16 %v1338
      %v1371 = vunpack.c.l.b16 %v1339
      %v1372 = vunpack.c.l.b16 %v1340
      %v1373 = vunpack.c.l.b16 %v1341
      %v1374 = vunpack.c.l.b16 %v1342
      %v1375 = vpack.c.b16 %v1360, %v1359
      %v1376 = vpack.c.b16 %v1362, %v1361
      %v1377 = vpack.c.b16 %v1364, %v1363
      %v1378 = vpack.c.b16 %v1366, %v1365
      %v1379 = vpack.c.b16 %v1368, %v1367
      %v1380 = vpack.c.b16 %v1370, %v1369
      %v1381 = vpack.c.b16 %v1372, %v1371
      %v1382 = vpack.c.b16 %v1374, %v1373
      %1391 = vmatpush.bf16.msra.mxu0 %v1382
      %1392 = vmatpush.bf16.msra.mxu0 %v1381
      %1393 = vmatpush.bf16.msra.mxu0 %v1380
      %1394 = vmatpush.bf16.msra.mxu0 %v1379
      %1395 = vmatpush.bf16.msra.mxu0 %v1378
      %1396 = vmatpush.bf16.msra.mxu0 %v1377
      %1397 = vmatpush.bf16.msra.mxu0 %v1376
      %1398 = vmatpush.bf16.msra.mxu0 %v1375
      %1399 = vmatmul.bf16.gmra.mxu0 %v1318
      %v1400 = vpop.f32.mrf.mxu0
      %v1401 = vadd.f32 0.0, %v1400
      %v1402 = vpop.f32.mrf.mxu0
      %v1403 = vadd.f32 0.0, %v1402
      %1404 = vmatmul.bf16.gmra.mxu0 %v1319
      %v1405 = vpop.f32.mrf.mxu0
      %v1406 = vadd.f32 0.0, %v1405
      %v1407 = vpop.f32.mrf.mxu0
      %v1408 = vadd.f32 0.0, %v1407
      %1409 = vmatmul.bf16.gmra.mxu0 %v1320
      %v1410 = vpop.f32.mrf.mxu0
      %v1411 = vadd.f32 0.0, %v1410
      %v1412 = vpop.f32.mrf.mxu0
      %v1413 = vadd.f32 0.0, %v1412
      %1414 = vmatmul.bf16.gmra.mxu0 %v1321
      %v1415 = vpop.f32.mrf.mxu0
      %v1416 = vadd.f32 0.0, %v1415
      %v1417 = vpop.f32.mrf.mxu0
      %v1418 = vadd.f32 0.0, %v1417
      %1419 = vmatmul.bf16.gmra.mxu0 %v1322
      %v1420 = vpop.f32.mrf.mxu0
      %v1421 = vadd.f32 0.0, %v1420
      %v1422 = vpop.f32.mrf.mxu0
      %v1423 = vadd.f32 0.0, %v1422
      %1424 = vmatmul.bf16.gmra.mxu0 %v1323
      %v1425 = vpop.f32.mrf.mxu0
      %v1426 = vadd.f32 0.0, %v1425
      %v1427 = vpop.f32.mrf.mxu0
      %v1428 = vadd.f32 0.0, %v1427
      %1429 = vmatmul.bf16.gmra.mxu0 %v1324
      %v1430 = vpop.f32.mrf.mxu0
      %v1431 = vadd.f32 0.0, %v1430
      %v1432 = vpop.f32.mrf.mxu0
      %v1433 = vadd.f32 0.0, %v1432
      %1434 = vmatmul.bf16.gmra.mxu0 %v1325
      %v1435 = vpop.f32.mrf.mxu0
      %v1436 = vadd.f32 0.0, %v1435
      %v1437 = vpop.f32.mrf.mxu0
      %v1438 = vadd.f32 0.0, %v1437
      %1439 = vdwg.mxu0
      %v1440 = vadd.f32 %v1263, %v1401
      %v1441 = vadd.f32 %v1265, %v1403
      %v1442 = vadd.f32 %v1268, %v1406
      %v1443 = vadd.f32 %v1270, %v1408
      %v1444 = vadd.f32 %v1273, %v1411
      %v1445 = vadd.f32 %v1275, %v1413
      %v1446 = vadd.f32 %v1278, %v1416
      %v1447 = vadd.f32 %v1280, %v1418
      %v1448 = vadd.f32 %v1283, %v1421
      %v1449 = vadd.f32 %v1285, %v1423
      %v1450 = vadd.f32 %v1288, %v1426
      %v1451 = vadd.f32 %v1290, %v1428
      %v1452 = vadd.f32 %v1293, %v1431
      %v1453 = vadd.f32 %v1295, %v1433
      %v1454 = vadd.f32 %v1298, %v1436
      %v1455 = vadd.f32 %v1300, %v1438
      %v1456 = vld [vmem:[%s4] sm:$0x1]
      %v1458 = vperm.slane %v1456, 0
      %v1460 = vadd.f32 %v1440, %v1458
      %v1461 = vadd.f32 %v1441, %v1458
      %v1462 = vadd.f32 %v1442, %v1458
      %v1463 = vadd.f32 %v1443, %v1458
      %v1464 = vadd.f32 %v1444, %v1458
      %v1465 = vadd.f32 %v1445, %v1458
      %v1466 = vadd.f32 %v1446, %v1458
      %v1467 = vadd.f32 %v1447, %v1458
      %v1468 = vadd.f32 %v1448, %v1458
      %v1469 = vadd.f32 %v1449, %v1458
      %v1470 = vadd.f32 %v1450, %v1458
      %v1471 = vadd.f32 %v1451, %v1458
      %v1472 = vadd.f32 %v1452, %v1458
      %v1473 = vadd.f32 %v1453, %v1458
      %v1474 = vadd.f32 %v1454, %v1458
      %v1475 = vadd.f32 %v1455, %v1458
      %s1476 = scalar_lea.vmem %s237, %s344
      %v1477 = vld [vmem:[%s1476] sm:$0xff]
      %v1478 = vld [vmem:[%s1476 + $0x8] sm:$0xff]
      %v1479 = vld [vmem:[%s1476 + $0x10] sm:$0xff]
      %v1480 = vld [vmem:[%s1476 + $0x18] sm:$0xff]
      %v1481 = vld [vmem:[%s1476 + $0x20] sm:$0xff]
      %v1482 = vld [vmem:[%s1476 + $0x28] sm:$0xff]
      %v1483 = vld [vmem:[%s1476 + $0x30] sm:$0xff]
      %v1484 = vld [vmem:[%s1476 + $0x38] sm:$0xff]
      %v1485 = vld [vmem:[%s1476 + $0x40] sm:$0xff]
      %v1486 = vld [vmem:[%s1476 + $0x48] sm:$0xff]
      %v1487 = vld [vmem:[%s1476 + $0x50] sm:$0xff]
      %v1488 = vld [vmem:[%s1476 + $0x58] sm:$0xff]
      %v1489 = vld [vmem:[%s1476 + $0x60] sm:$0xff]
      %v1490 = vld [vmem:[%s1476 + $0x68] sm:$0xff]
      %v1491 = vld [vmem:[%s1476 + $0x70] sm:$0xff]
      %v1492 = vld [vmem:[%s1476 + $0x78] sm:$0xff]
      %v1493 = vadd.f32 %v1460, %v1477
      %v1494 = vadd.f32 %v1461, %v1478
      %v1495 = vadd.f32 %v1462, %v1479
      %v1496 = vadd.f32 %v1463, %v1480
      %v1497 = vadd.f32 %v1464, %v1481
      %v1498 = vadd.f32 %v1465, %v1482
      %v1499 = vadd.f32 %v1466, %v1483
      %v1500 = vadd.f32 %v1467, %v1484
      %v1501 = vadd.f32 %v1468, %v1485
      %v1502 = vadd.f32 %v1469, %v1486
      %v1503 = vadd.f32 %v1470, %v1487
      %v1504 = vadd.f32 %v1471, %v1488
      %v1505 = vadd.f32 %v1472, %v1489
      %v1506 = vadd.f32 %v1473, %v1490
      %v1507 = vadd.f32 %v1474, %v1491
      %v1508 = vadd.f32 %v1475, %v1492
      %1509 = vst [vmem:[%s246] sm:$0xff] %v1493
      %1510 = vst [vmem:[%s246 + $0x8] sm:$0xff] %v1494
      %1511 = vst [vmem:[%s246 + $0x10] sm:$0xff] %v1495
      %1512 = vst [vmem:[%s246 + $0x18] sm:$0xff] %v1496
      %1513 = vst [vmem:[%s246 + $0x20] sm:$0xff] %v1497
      %1514 = vst [vmem:[%s246 + $0x28] sm:$0xff] %v1498
      %1515 = vst [vmem:[%s246 + $0x30] sm:$0xff] %v1499
      %1516 = vst [vmem:[%s246 + $0x38] sm:$0xff] %v1500
      %1517 = vst [vmem:[%s246 + $0x40] sm:$0xff] %v1501
      %1518 = vst [vmem:[%s246 + $0x48] sm:$0xff] %v1502
      %1519 = vst [vmem:[%s246 + $0x50] sm:$0xff] %v1503
      %1520 = vst [vmem:[%s246 + $0x58] sm:$0xff] %v1504
      %1521 = vst [vmem:[%s246 + $0x60] sm:$0xff] %v1505
      %1522 = vst [vmem:[%s246 + $0x68] sm:$0xff] %v1506
      %1523 = vst [vmem:[%s246 + $0x70] sm:$0xff] %v1507
      %1524 = vst [vmem:[%s246 + $0x78] sm:$0xff] %v1508
      %s1525 = smul.u32 16, %s21
      %p1526 = scmp.lt.s32.totalorder %s20, 1
      %s1527 = scalar_select %p1526, %s20, 1
      %p1528 = scmp.lt.s32.totalorder %s1525, 31
      %s1529 = scalar_select %p1528, %s1525, 31
      %s1530 = smul.addr %s1527, 32
      %s1531 = sadd.s32 %s1529, %s1530
      %s1532 = smul.addr %s1531, 8
      %s1533 = scalar_lea.vmem %s5, %s1532
      // Predicated region
      $region52: #{resblock1_forward.4} parent=39 // pred_check
        %p1534 = pneg %p158
      $region53: #{resblock1_forward.4} parent=39 // pred_check_branch
        %1536 = sbr.rel (%p1534) target = $region55
      $region54: #{resblock1_forward.4} parent=39 // pred_region
        %s1537 = smul.u32 16, %s21
      $region55: #{resblock1_forward.4} parent=39 // pred_fallthru
        _
    $region40: #{resblock1_forward.4} parent=5 // pred_fallthru
      _
    %p1538 = scmp.le.s32.totalorder 2, %s11
    // Predicated region
    $region56: #{resblock1_forward.4} parent=5 // pred_check
      %p1539 = pneg %p1538
    $region57: #{resblock1_forward.4} parent=5 // pred_check_branch
      %1541 = sbr.rel (%p1539) target = $region59
    $region58: #{resblock1_forward.4} parent=5 // pred_region
      %s1542 = ssub.s32 %s11, 2
      // Predicated region
      $region60: #{resblock1_forward.4} parent=58 // pred_check
        %p1543 = pneg %p164
      $region61: #{resblock1_forward.4} parent=58 // pred_check_branch
        %1545 = sbr.rel (%p1543) target = $region63
      $region62: #{resblock1_forward.4} parent=58 // pred_region
        %s1546 = smul.u32 16, %s23
        %p1547 = scmp.lt.s32.totalorder %s22, 1
        %s1548 = scalar_select %p1547, %s22, 1
        %p1549 = scmp.lt.s32.totalorder %s1546, 31
        %s1550 = scalar_select %p1549, %s1546, 31
        %s1551 = smul.addr %s1548, 32
        %s1552 = sadd.s32 %s1550, %s1551
        %s1553 = smul.addr %s1552, 8
        %s1554 = scalar_lea.vmem %s5, %s1553
      $region63: #{resblock1_forward.4} parent=58 // pred_fallthru
        _
    $region59: #{resblock1_forward.4} parent=5 // pred_fallthru
      _
  $region6: #{resblock1_forward.4} parent=0 // loop_footer
    %s15 = sadd.s32 1, %s11
  $region7: #{resblock1_forward.4} parent=0 // loop_footer_branch
    %10 = sbr.rel target = $region3
  $region8: #{resblock1_forward.4} parent=0 // loop_exit
    _

// kernel: resblock1_forward.5
$region0: #{resblock1_forward.5}
  #allocation0 [shape = 'u32[]', space=smem, size = 0x4, offset = 0x4, fixed_abs, tag = 'smem constant byte address 0x4 - core index']
  #allocation1 [shape = 'u32[72,128]{1,0:T(1,128)}', space=vmem, size = 0x9000, scoped, tag = 'internal scratch']
  #allocation2 [shape = 'f32[272,128]{1,0:T(8,128)}', space=vmem, size = 0x22000, scoped, tag = 'scratch operand']
  #allocation3 [shape = 'f32[136,128]{1,0:T(8,128)}', space=vmem, size = 0x11000, scoped, tag = 'scratch operand']
  %s0 = inlined_call_operand.vmem [shape: f32[2,256,128], index: 0, kind: input, shape index: {}]
  %s1 = inlined_call_operand.vmem [shape: bf16[3,128,128], index: 1, kind: input, shape index: {}]
  %s2 = inlined_call_operand.vmem [shape: f32[1,128], index: 2, kind: input, shape index: {}]
  %s3 = inlined_call_operand.vmem [shape: bf16[3,128,128], index: 3, kind: input, shape index: {}]
  %s4 = inlined_call_operand.vmem [shape: f32[1,128], index: 4, kind: input, shape index: {}]
  %s5 = inlined_call_operand.vmem [shape: f32[2,256,128], index: 5, kind: output, shape index: {}]
  %s6 = sld [smem:[#allocation0]]
  $region64: #{resblock1_forward.5} parent=0
    _
  %s8 = ssub.s32 1, %s6
  %s9 = scalar_select 0, %s8, %s6
  loop: start=0, step=1, limit=6
  $region2: #{resblock1_forward.5} parent=0 // loop_pre_header
    _
  $region3: #{resblock1_forward.5} parent=0 // loop_header
    %s11 = sphi 0, %s15
    %p12 = scmp.ge.s32.totalorder %s11, 6
    %s18 = sphi 0, %s30
    %s19 = sphi 0, %s26
    %s20 = sphi 0, %s18
    %s21 = sphi 0, %s19
    %s22 = sphi 0, %s20
    %s23 = sphi 0, %s21
    %s33 = sphi 0, %s35
    %s36 = sphi 0, %s33
    %s37 = sphi 0, %s36
    %s53 = sphi 0, %s37
    %s57 = sphi 0, %s57
    %s59 = sphi 0, %s57
    %s60 = sphi 0, %s59
    %s74 = sphi 0, %s60
    %s78 = sphi 0, %s78
    %s80 = sphi 0, %s78
    %s81 = sphi 0, %s80
    %s95 = sphi 0, %s81
    %s99 = sphi 0, %s99
    %s101 = sphi 0, %s99
    %s102 = sphi 0, %s101
    %s116 = sphi 0, %s102
    %s120 = sphi 0, %s120
    %s122 = sphi 0, %s120
    %s123 = sphi 0, %s122
    %s137 = sphi 0, %s123
    %s145 = sphi 0, %s147
    %s148 = sphi 0, %s145
    %s149 = sphi 0, %s148
    %s165 = sphi 0, %s149
  $region4: #{resblock1_forward.5} parent=0 // loop_header_branch
    %14 = sbr.rel (%p12) target = $region8
  $region5: #{resblock1_forward.5} parent=0 // loop_body
    %s16 = ssub.s32 %s11, 1
    %s17 = ssub.s32 %s11, 2
    %s24 = sadd.s32 1, %s19
    %p25 = scmp.ge.s32.totalorder %s24, 2
    %s26 = scalar_select %p25, 0, %s24
    %s27 = sadd.s32 1, %s18
    %s28 = scalar_select %p25, %s27, %s18
    %p29 = scmp.ge.s32.totalorder %s28, 2
    %s30 = scalar_select %p29, 0, %s28
    %s31 = ssub.s32 %s18, %s30
    %p32 = scmp.eq.s32.totalorder %s31, 0
    %s34 = sadd.s32 %s33, 1
    %s35 = scalar_select %p32, %s33, %s34
    %p38 = pneg %p32
    %p39 = scmp.eq.s32.totalorder %s11, 3
    %p40 = por %p38, %p39
    %p41 = scmp.ne.s32.totalorder %s33, %s36
    %p42 = scmp.eq.s32.totalorder %s11, 0
    %p43 = por %p41, %p42
    %p44 = scmp.ne.s32.totalorder %s33, %s36
    %p45 = scmp.eq.s32.totalorder %s16, 3
    %p46 = por %p44, %p45
    %p47 = scmp.ne.s32.totalorder %s36, %s37
    %p48 = scmp.eq.s32.totalorder %s16, 0
    %p49 = por %p47, %p48
    %p50 = scmp.ne.s32.totalorder %s36, %s37
    %p51 = scmp.eq.s32.totalorder %s17, 3
    %p52 = por %p50, %p51
    %p54 = scmp.ne.s32.totalorder %s37, %s53
    %p55 = scmp.eq.s32.totalorder %s17, 0
    %p56 = por %p54, %p55
    %s58 = sadd.s32 %s57, 1
    %p61 = scmp.eq.s32.totalorder %s11, 3
    %p62 = scmp.ne.s32.totalorder %s57, %s59
    %p63 = scmp.eq.s32.totalorder %s11, 0
    %p64 = por %p62, %p63
    %p65 = scmp.ne.s32.totalorder %s57, %s59
    %p66 = scmp.eq.s32.totalorder %s16, 3
    %p67 = por %p65, %p66
    %p68 = scmp.ne.s32.totalorder %s59, %s60
    %p69 = scmp.eq.s32.totalorder %s16, 0
    %p70 = por %p68, %p69
    %p71 = scmp.ne.s32.totalorder %s59, %s60
    %p72 = scmp.eq.s32.totalorder %s17, 3
    %p73 = por %p71, %p72
    %p75 = scmp.ne.s32.totalorder %s60, %s74
    %p76 = scmp.eq.s32.totalorder %s17, 0
    %p77 = por %p75, %p76
    %s79 = sadd.s32 %s78, 1
    %p82 = scmp.eq.s32.totalorder %s11, 3
    %p83 = scmp.ne.s32.totalorder %s78, %s80
    %p84 = scmp.eq.s32.totalorder %s11, 0
    %p85 = por %p83, %p84
    %p86 = scmp.ne.s32.totalorder %s78, %s80
    %p87 = scmp.eq.s32.totalorder %s16, 3
    %p88 = por %p86, %p87
    %p89 = scmp.ne.s32.totalorder %s80, %s81
    %p90 = scmp.eq.s32.totalorder %s16, 0
    %p91 = por %p89, %p90
    %p92 = scmp.ne.s32.totalorder %s80, %s81
    %p93 = scmp.eq.s32.totalorder %s17, 3
    %p94 = por %p92, %p93
    %p96 = scmp.ne.s32.totalorder %s81, %s95
    %p97 = scmp.eq.s32.totalorder %s17, 0
    %p98 = por %p96, %p97
    %s100 = sadd.s32 %s99, 1
    %p103 = scmp.eq.s32.totalorder %s11, 3
    %p104 = scmp.ne.s32.totalorder %s99, %s101
    %p105 = scmp.eq.s32.totalorder %s11, 0
    %p106 = por %p104, %p105
    %p107 = scmp.ne.s32.totalorder %s99, %s101
    %p108 = scmp.eq.s32.totalorder %s16, 3
    %p109 = por %p107, %p108
    %p110 = scmp.ne.s32.totalorder %s101, %s102
    %p111 = scmp.eq.s32.totalorder %s16, 0
    %p112 = por %p110, %p111
    %p113 = scmp.ne.s32.totalorder %s101, %s102
    %p114 = scmp.eq.s32.totalorder %s17, 3
    %p115 = por %p113, %p114
    %p117 = scmp.ne.s32.totalorder %s102, %s116
    %p118 = scmp.eq.s32.totalorder %s17, 0
    %p119 = por %p117, %p118
    %s121 = sadd.s32 %s120, 1
    %p124 = scmp.eq.s32.totalorder %s11, 3
    %p125 = scmp.ne.s32.totalorder %s120, %s122
    %p126 = scmp.eq.s32.totalorder %s11, 0
    %p127 = por %p125, %p126
    %p128 = scmp.ne.s32.totalorder %s120, %s122
    %p129 = scmp.eq.s32.totalorder %s16, 3
    %p130 = por %p128, %p129
    %p131 = scmp.ne.s32.totalorder %s122, %s123
    %p132 = scmp.eq.s32.totalorder %s16, 0
    %p133 = por %p131, %p132
    %p134 = scmp.ne.s32.totalorder %s122, %s123
    %p135 = scmp.eq.s32.totalorder %s17, 3
    %p136 = por %p134, %p135
    %p138 = scmp.ne.s32.totalorder %s123, %s137
    %p139 = scmp.eq.s32.totalorder %s17, 0
    %p140 = por %p138, %p139
    %s141 = ssub.s32 %s18, %s30
    %s142 = ssub.s32 %s19, %s26
    %s143 = sor.u32 %s141, %s142
    %p144 = scmp.eq.s32.totalorder %s143, 0
    %s146 = sadd.s32 %s145, 1
    %s147 = scalar_select %p144, %s145, %s146
    %p150 = pneg %p144
    %p151 = scmp.eq.s32.totalorder %s11, 3
    %p152 = por %p150, %p151
    %p153 = scmp.ne.s32.totalorder %s145, %s148
    %p154 = scmp.eq.s32.totalorder %s11, 0
    %p155 = por %p153, %p154
    %p156 = scmp.ne.s32.totalorder %s145, %s148
    %p157 = scmp.eq.s32.totalorder %s16, 3
    %p158 = por %p156, %p157
    %p159 = scmp.ne.s32.totalorder %s148, %s149
    %p160 = scmp.eq.s32.totalorder %s16, 0
    %p161 = por %p159, %p160
    %p162 = scmp.ne.s32.totalorder %s148, %s149
    %p163 = scmp.eq.s32.totalorder %s17, 3
    %p164 = por %p162, %p163
    %p166 = scmp.ne.s32.totalorder %s149, %s165
    %p167 = scmp.eq.s32.totalorder %s17, 0
    %p168 = por %p166, %p167
    %p169 = scmp.le.s32.totalorder 1, %s11
    %p170 = scmp.lt.s32.totalorder %s11, 5
    %p171 = pnand %p169, %p170
    %p172 = pneg %p171
    // Predicated region
    $region9: #{resblock1_forward.5} parent=5 // pred_check
      _
    $region10: #{resblock1_forward.5} parent=5 // pred_check_branch
      %174 = sbr.rel (%p171) target = $region12
    $region11: #{resblock1_forward.5} parent=5 // pred_region
      %s175 = ssub.s32 %s11, 1
      // Predicated region
      $region13: #{resblock1_forward.5} parent=11 // pred_check
        %p176 = pneg %p70
      $region14: #{resblock1_forward.5} parent=11 // pred_check_branch
        %178 = sbr.rel (%p176) target = $region16
      $region15: #{resblock1_forward.5} parent=11 // pred_region
        _
      $region16: #{resblock1_forward.5} parent=11 // pred_fallthru
        _
      // Predicated region
      $region17: #{resblock1_forward.5} parent=11 // pred_check
        %p179 = pneg %p91
      $region18: #{resblock1_forward.5} parent=11 // pred_check_branch
        %181 = sbr.rel (%p179) target = $region20
      $region19: #{resblock1_forward.5} parent=11 // pred_region
        _
      $region20: #{resblock1_forward.5} parent=11 // pred_fallthru
        _
      // Predicated region
      $region21: #{resblock1_forward.5} parent=11 // pred_check
        %p182 = pneg %p112
      $region22: #{resblock1_forward.5} parent=11 // pred_check_branch
        %184 = sbr.rel (%p182) target = $region24
      $region23: #{resblock1_forward.5} parent=11 // pred_region
        _
      $region24: #{resblock1_forward.5} parent=11 // pred_fallthru
        _
      // Predicated region
      $region25: #{resblock1_forward.5} parent=11 // pred_check
        %p185 = pneg %p133
      $region26: #{resblock1_forward.5} parent=11 // pred_check_branch
        %187 = sbr.rel (%p185) target = $region28
      $region27: #{resblock1_forward.5} parent=11 // pred_region
        _
      $region28: #{resblock1_forward.5} parent=11 // pred_fallthru
        _
    $region12: #{resblock1_forward.5} parent=5 // pred_fallthru
      _
    %p188 = scmp.lt.s32.totalorder %s11, 4
    // Predicated region
    $region29: #{resblock1_forward.5} parent=5 // pred_check
      %p189 = pneg %p188
    $region30: #{resblock1_forward.5} parent=5 // pred_check_branch
      %191 = sbr.rel (%p189) target = $region32
    $region31: #{resblock1_forward.5} parent=5 // pred_region
      // Predicated region
      $region33: #{resblock1_forward.5} parent=31 // pred_check
        %p192 = pneg %p43
      $region34: #{resblock1_forward.5} parent=31 // pred_check_branch
        %194 = sbr.rel (%p192) target = $region36
      $region35: #{resblock1_forward.5} parent=31 // pred_region
        %p195 = scmp.lt.s32.totalorder %s18, 1
        %s196 = scalar_select %p195, %s18, 1
        %s197 = smul.addr %s196, 32
        %s198 = smul.addr %s197, 8
        %s199 = scalar_lea.vmem %s0, %s198
      $region36: #{resblock1_forward.5} parent=31 // pred_fallthru
        _
    $region32: #{resblock1_forward.5} parent=5 // pred_fallthru
      _
    %p200 = scmp.le.s32.totalorder 1, %s11
    %p201 = scmp.lt.s32.totalorder %s11, 5
    %p202 = pnand %p200, %p201
    %p203 = pneg %p202
    // Predicated region
    $region37: #{resblock1_forward.5} parent=5 // pred_check
      _
    $region38: #{resblock1_forward.5} parent=5 // pred_check_branch
      %205 = sbr.rel (%p202) target = $region40
    $region39: #{resblock1_forward.5} parent=5 // pred_region
      %s206 = ssub.s32 %s11, 1
      %p207 = scmp.lt.s32.totalorder %s20, 1
      %s208 = scalar_select %p207, %s20, 1
      %s209 = smul.addr %s208, 32
      %s210 = smul.addr %s209, 8
      %s211 = scalar_lea.vmem %s0, %s210
      %p212 = pneg %p49
      %p213 = pneg %p46
      %p214 = pneg %p70
      %p215 = pneg %p67
      %p216 = pneg %p91
      %p217 = pneg %p88
      %p218 = pneg %p112
      %p219 = pneg %p109
      %p220 = pneg %p133
      %p221 = pneg %p130
      %p222 = pneg %p161
      %p223 = pneg %p158
      %s224 = smul.u32 16, %s21
      %p225 = scmp.lt.s32.totalorder %s20, 1
      %s226 = scalar_select %p225, %s20, 1
      %p227 = scmp.lt.s32.totalorder %s224, 31
      %s228 = scalar_select %p227, %s224, 31
      %s229 = smul.addr %s226, 32
      %s230 = sadd.s32 %s228, %s229
      %s231 = smul.addr %s230, 8
      %s232 = scalar_lea.vmem %s5, %s231
      %p233 = scmp.lt.s32.totalorder %s20, 1
      %s234 = scalar_select %p233, %s20, 1
      %s235 = smul.addr %s234, 32
      %s236 = smul.addr %s235, 8
      %s237 = scalar_lea.vmem %s0, %s236
      %s238 = smul.u32 16, %s21
      %p239 = scmp.lt.s32.totalorder %s20, 1
      %s240 = scalar_select %p239, %s20, 1
      %p241 = scmp.lt.s32.totalorder %s238, 31
      %s242 = scalar_select %p241, %s238, 31
      %s243 = smul.addr %s240, 32
      %s244 = sadd.s32 %s242, %s243
      %s245 = smul.addr %s244, 8
      %s246 = scalar_lea.vmem %s5, %s245
      %s247 = smul.u32 16, %s21
      %p248 = scmp.eq.s32.totalorder %s21, 0
      // Predicated region
      $region41: #{resblock1_forward.5} parent=39 // pred_check
        %p249 = pneg %p248
      $region42: #{resblock1_forward.5} parent=39 // pred_check_branch
        %251 = sbr.rel (%p249) target = $region44
      $region43: #{resblock1_forward.5} parent=39 // pred_region
        %252 = vst [vmem:[#allocation2] sm:$0xff] 0.0
        %253 = vst [vmem:[#allocation2 + $0x108] sm:$0xff] 0.0
        loop: start=0, step=1, limit=2
        $region45: #{resblock1_forward.5} parent=43 // loop_pre_header
          _
        $region46: #{resblock1_forward.5} parent=43 // loop_header
          %s255 = sphi 0, %s259
          %p256 = scmp.ge.s32.totalorder %s255, 2
        $region47: #{resblock1_forward.5} parent=43 // loop_header_branch
          %258 = sbr.rel (%p256) target = $region51
        $region48: #{resblock1_forward.5} parent=43 // loop_body
          %s260 = smul.u32 %s255, 128
          %s261 = scalar_lea.vmem %s237, %s260
          %v262 = vld [vmem:[%s261] sm:$0xff]
          %v263 = vld [vmem:[%s261 + $0x8] sm:$0xff]
          %v264 = vld [vmem:[%s261 + $0x10] sm:$0xff]
          %v265 = vld [vmem:[%s261 + $0x18] sm:$0xff]
          %v266 = vld [vmem:[%s261 + $0x20] sm:$0xff]
          %v267 = vld [vmem:[%s261 + $0x28] sm:$0xff]
          %v268 = vld [vmem:[%s261 + $0x30] sm:$0xff]
          %v269 = vld [vmem:[%s261 + $0x38] sm:$0xff]
          %v270 = vld [vmem:[%s261 + $0x40] sm:$0xff]
          %v271 = vld [vmem:[%s261 + $0x48] sm:$0xff]
          %v272 = vld [vmem:[%s261 + $0x50] sm:$0xff]
          %v273 = vld [vmem:[%s261 + $0x58] sm:$0xff]
          %v274 = vld [vmem:[%s261 + $0x60] sm:$0xff]
          %v275 = vld [vmem:[%s261 + $0x68] sm:$0xff]
          %v276 = vld [vmem:[%s261 + $0x70] sm:$0xff]
          %v277 = vld [vmem:[%s261 + $0x78] sm:$0xff]
          %vm278 = vcmp.ge.f32.partialorder %v262, 0.0
          %vm279 = vcmp.ge.f32.partialorder %v263, 0.0
          %vm280 = vcmp.ge.f32.partialorder %v264, 0.0
          %vm281 = vcmp.ge.f32.partialorder %v265, 0.0
          %vm282 = vcmp.ge.f32.partialorder %v266, 0.0
          %vm283 = vcmp.ge.f32.partialorder %v267, 0.0
          %vm284 = vcmp.ge.f32.partialorder %v268, 0.0
          %vm285 = vcmp.ge.f32.partialorder %v269, 0.0
          %vm286 = vcmp.ge.f32.partialorder %v270, 0.0
          %vm287 = vcmp.ge.f32.partialorder %v271, 0.0
          %vm288 = vcmp.ge.f32.partialorder %v272, 0.0
          %vm289 = vcmp.ge.f32.partialorder %v273, 0.0
          %vm290 = vcmp.ge.f32.partialorder %v274, 0.0
          %vm291 = vcmp.ge.f32.partialorder %v275, 0.0
          %vm292 = vcmp.ge.f32.partialorder %v276, 0.0
          %vm293 = vcmp.ge.f32.partialorder %v277, 0.0
          %v294 = vmul.f32 %v262, 0.1
          %v295 = vmul.f32 %v263, 0.1
          %v296 = vmul.f32 %v264, 0.1
          %v297 = vmul.f32 %v265, 0.1
          %v298 = vmul.f32 %v266, 0.1
          %v299 = vmul.f32 %v267, 0.1
          %v300 = vmul.f32 %v268, 0.1
          %v301 = vmul.f32 %v269, 0.1
          %v302 = vmul.f32 %v270, 0.1
          %v303 = vmul.f32 %v271, 0.1
          %v304 = vmul.f32 %v272, 0.1
          %v305 = vmul.f32 %v273, 0.1
          %v306 = vmul.f32 %v274, 0.1
          %v307 = vmul.f32 %v275, 0.1
          %v308 = vmul.f32 %v276, 0.1
          %v309 = vmul.f32 %v277, 0.1
          %v310 = vsel %vm278, %v262, %v294
          %v311 = vsel %vm279, %v263, %v295
          %v312 = vsel %vm280, %v264, %v296
          %v313 = vsel %vm281, %v265, %v297
          %v314 = vsel %vm282, %v266, %v298
          %v315 = vsel %vm283, %v267, %v299
          %v316 = vsel %vm284, %v268, %v300
          %v317 = vsel %vm285, %v269, %v301
          %v318 = vsel %vm286, %v270, %v302
          %v319 = vsel %vm287, %v271, %v303
          %v320 = vsel %vm288, %v272, %v304
          %v321 = vsel %vm289, %v273, %v305
          %v322 = vsel %vm290, %v274, %v306
          %v323 = vsel %vm291, %v275, %v307
          %v324 = vsel %vm292, %v276, %v308
          %v325 = vsel %vm293, %v277, %v309
          %s326 = sadd.s32 %s260, 8
          %s327 = scalar_lea.vmem [#allocation2], %s326
          %328 = vst [vmem:[%s327] sm:$0xff] %v310
          %329 = vst [vmem:[%s327 + $0x8] sm:$0xff] %v311
          %330 = vst [vmem:[%s327 + $0x10] sm:$0xff] %v312
          %331 = vst [vmem:[%s327 + $0x18] sm:$0xff] %v313
          %332 = vst [vmem:[%s327 + $0x20] sm:$0xff] %v314
          %333 = vst [vmem:[%s327 + $0x28] sm:$0xff] %v315
          %334 = vst [vmem:[%s327 + $0x30] sm:$0xff] %v316
          %335 = vst [vmem:[%s327 + $0x38] sm:$0xff] %v317
          %336 = vst [vmem:[%s327 + $0x40] sm:$0xff] %v318
          %337 = vst [vmem:[%s327 + $0x48] sm:$0xff] %v319
          %338 = vst [vmem:[%s327 + $0x50] sm:$0xff] %v320
          %339 = vst [vmem:[%s327 + $0x58] sm:$0xff] %v321
          %340 = vst [vmem:[%s327 + $0x60] sm:$0xff] %v322
          %341 = vst [vmem:[%s327 + $0x68] sm:$0xff] %v323
          %342 = vst [vmem:[%s327 + $0x70] sm:$0xff] %v324
          %343 = vst [vmem:[%s327 + $0x78] sm:$0xff] %v325
        $region49: #{resblock1_forward.5} parent=43 // loop_footer
          %s259 = sadd.s32 1, %s255
        $region50: #{resblock1_forward.5} parent=43 // loop_footer_branch
          %254 = sbr.rel target = $region46
        $region51: #{resblock1_forward.5} parent=43 // loop_exit
          _
      $region44: #{resblock1_forward.5} parent=39 // pred_fallthru
        _
      %s344 = smul.u32 %s21, 128
      %s345 = sadd.s32 %s344, 2
      %s346 = scalar_lea.vmem [#allocation2], %s345
      %v347 = vld [vmem:[%s346] sm:$0xff]
      %v348 = vld [vmem:[%s346 + $0x8] sm:$0xff]
      %v349 = vld [vmem:[%s346 + $0x10] sm:$0xff]
      %v350 = vld [vmem:[%s346 + $0x18] sm:$0xff]
      %v351 = vld [vmem:[%s346 + $0x20] sm:$0xff]
      %v352 = vld [vmem:[%s346 + $0x28] sm:$0xff]
      %v353 = vld [vmem:[%s346 + $0x30] sm:$0xff]
      %v354 = vld [vmem:[%s346 + $0x38] sm:$0xff]
      %v355 = vld [vmem:[%s346 + $0x40] sm:$0xff]
      %v356 = vld [vmem:[%s346 + $0x48] sm:$0xff]
      %v357 = vld [vmem:[%s346 + $0x50] sm:$0xff]
      %v358 = vld [vmem:[%s346 + $0x58] sm:$0xff]
      %v359 = vld [vmem:[%s346 + $0x60] sm:$0xff]
      %v360 = vld [vmem:[%s346 + $0x68] sm:$0xff]
      %v361 = vld [vmem:[%s346 + $0x70] sm:$0xff]
      %v362 = vld [vmem:[%s346 + $0x78] sm:$0xff]
      %v363 = vld [vmem:[%s346 + $0x80] sm:$0x3]
      %v364 = vpack.c.bf16 %v348, %v347
      %v365 = vpack.c.bf16 %v350, %v349
      %v366 = vpack.c.bf16 %v352, %v351
      %v367 = vpack.c.bf16 %v354, %v353
      %v368 = vpack.c.bf16 %v356, %v355
      %v369 = vpack.c.bf16 %v358, %v357
      %v370 = vpack.c.bf16 %v360, %v359
      %v371 = vpack.c.bf16 %v362, %v361
      %v372 = vpack.c.bf16 %v363, %v363
      %v373 = vld [vmem:[%s1] sm:$0xf]
      %v374 = vld [vmem:[%s1 + $0x4] sm:$0xf]
      %v375 = vld [vmem:[%s1 + $0x8] sm:$0xf]
      %v376 = vld [vmem:[%s1 + $0xc] sm:$0xf]
      %v377 = vld [vmem:[%s1 + $0x10] sm:$0xf]
      %v378 = vld [vmem:[%s1 + $0x14] sm:$0xf]
      %v379 = vld [vmem:[%s1 + $0x18] sm:$0xf]
      %v380 = vld [vmem:[%s1 + $0x1c] sm:$0xf]
      %v381 = vld [vmem:[%s1 + $0x20] sm:$0xf]
      %v382 = vld [vmem:[%s1 + $0x24] sm:$0xf]
      %v383 = vld [vmem:[%s1 + $0x28] sm:$0xf]
      %v384 = vld [vmem:[%s1 + $0x2c] sm:$0xf]
      %v385 = vld [vmem:[%s1 + $0x30] sm:$0xf]
      %v386 = vld [vmem:[%s1 + $0x34] sm:$0xf]
      %v387 = vld [vmem:[%s1 + $0x38] sm:$0xf]
      %v388 = vld [vmem:[%s1 + $0x3c] sm:$0xf]
      %s389 = sadd.s32 %s344, 7
      %s390 = scalar_lea.vmem [#allocation2], %s389
      %v391 = vld [vmem:[%s390] sm:$0xff]
      %v392 = vld [vmem:[%s390 + $0x8] sm:$0xff]
      %v393 = vld [vmem:[%s390 + $0x10] sm:$0xff]
      %v394 = vld [vmem:[%s390 + $0x18] sm:$0xff]
      %v395 = vld [vmem:[%s390 + $0x20] sm:$0xff]
      %v396 = vld [vmem:[%s390 + $0x28] sm:$0xff]
      %v397 = vld [vmem:[%s390 + $0x30] sm:$0xff]
      %v398 = vld [vmem:[%s390 + $0x38] sm:$0xff]
      %v399 = vld [vmem:[%s390 + $0x40] sm:$0xff]
      %v400 = vld [vmem:[%s390 + $0x48] sm:$0xff]
      %v401 = vld [vmem:[%s390 + $0x50] sm:$0xff]
      %v402 = vld [vmem:[%s390 + $0x58] sm:$0xff]
      %v403 = vld [vmem:[%s390 + $0x60] sm:$0xff]
      %v404 = vld [vmem:[%s390 + $0x68] sm:$0xff]
      %v405 = vld [vmem:[%s390 + $0x70] sm:$0xff]
      %v406 = vld [vmem:[%s390 + $0x78] sm:$0xff]
      %v407 = vld [vmem:[%s390 + $0x80] sm:$0x3]
      %v408 = vpack.c.bf16 %v392, %v391
      %v409 = vpack.c.bf16 %v394, %v393
      %v410 = vpack.c.bf16 %v396, %v395
      %v411 = vpack.c.bf16 %v398, %v397
      %v412 = vpack.c.bf16 %v400, %v399
      %v413 = vpack.c.bf16 %v402, %v401
      %v414 = vpack.c.bf16 %v404, %v403
      %v415 = vpack.c.bf16 %v406, %v405
      %v416 = vpack.c.bf16 %v407, %v407
      %s417 = scalar_lea.vmem %s1, 64
      %v418 = vld [vmem:[%s417] sm:$0xf]
      %v419 = vld [vmem:[%s417 + $0x4] sm:$0xf]
      %v420 = vld [vmem:[%s417 + $0x8] sm:$0xf]
      %v421 = vld [vmem:[%s417 + $0xc] sm:$0xf]
      %v422 = vld [vmem:[%s417 + $0x10] sm:$0xf]
      %v423 = vld [vmem:[%s417 + $0x14] sm:$0xf]
      %v424 = vld [vmem:[%s417 + $0x18] sm:$0xf]
      %v425 = vld [vmem:[%s417 + $0x1c] sm:$0xf]
      %v426 = vld [vmem:[%s417 + $0x20] sm:$0xf]
      %v427 = vld [vmem:[%s417 + $0x24] sm:$0xf]
      %v428 = vld [vmem:[%s417 + $0x28] sm:$0xf]
      %v429 = vld [vmem:[%s417 + $0x2c] sm:$0xf]
      %v430 = vld [vmem:[%s417 + $0x30] sm:$0xf]
      %v431 = vld [vmem:[%s417 + $0x34] sm:$0xf]
      %v432 = vld [vmem:[%s417 + $0x38] sm:$0xf]
      %v433 = vld [vmem:[%s417 + $0x3c] sm:$0xf]
      %v450 = vunpack.c.l.b16 %v418
      %v451 = vunpack.c.l.b16 %v419
      %v452 = vunpack.c.l.b16 %v420
      %v453 = vunpack.c.l.b16 %v421
      %v454 = vunpack.c.l.b16 %v422
      %v455 = vunpack.c.l.b16 %v423
      %v456 = vunpack.c.l.b16 %v424
      %v457 = vunpack.c.l.b16 %v425
      %v458 = vunpack.c.l.b16 %v426
      %v459 = vunpack.c.l.b16 %v427
      %v460 = vunpack.c.l.b16 %v428
      %v461 = vunpack.c.l.b16 %v429
      %v462 = vunpack.c.l.b16 %v430
      %v463 = vunpack.c.l.b16 %v431
      %v464 = vunpack.c.l.b16 %v432
      %v465 = vunpack.c.l.b16 %v433
      %v466 = vpack.c.b16 %v451, %v450
      %v467 = vpack.c.b16 %v453, %v452
      %v468 = vpack.c.b16 %v455, %v454
      %v469 = vpack.c.b16 %v457, %v456
      %v470 = vpack.c.b16 %v459, %v458
      %v471 = vpack.c.b16 %v461, %v460
      %v472 = vpack.c.b16 %v463, %v462
      %v473 = vpack.c.b16 %v465, %v464
      %482 = vmatpush.bf16.msra.mxu0 %v473
      %483 = vmatpush.bf16.msra.mxu0 %v472
      %484 = vmatpush.bf16.msra.mxu0 %v471
      %485 = vmatpush.bf16.msra.mxu0 %v470
      %486 = vmatpush.bf16.msra.mxu0 %v469
      %487 = vmatpush.bf16.msra.mxu0 %v468
      %488 = vmatpush.bf16.msra.mxu0 %v467
      %489 = vmatpush.bf16.msra.mxu0 %v466
      %490 = vmatmul.bf16.gmra.mxu0 %v408
      %v491 = vpop.f32.mrf.mxu0
      %v492 = vadd.f32 0.0, %v491
      %v493 = vpop.f32.mrf.mxu0
      %v494 = vadd.f32 0.0, %v493
      %495 = vmatmul.bf16.gmra.mxu0 %v409
      %v496 = vpop.f32.mrf.mxu0
      %v497 = vadd.f32 0.0, %v496
      %v498 = vpop.f32.mrf.mxu0
      %v499 = vadd.f32 0.0, %v498
      %500 = vmatmul.bf16.gmra.mxu0 %v410
      %v501 = vpop.f32.mrf.mxu0
      %v502 = vadd.f32 0.0, %v501
      %v503 = vpop.f32.mrf.mxu0
      %v504 = vadd.f32 0.0, %v503
      %505 = vmatmul.bf16.gmra.mxu0 %v411
      %v506 = vpop.f32.mrf.mxu0
      %v507 = vadd.f32 0.0, %v506
      %v508 = vpop.f32.mrf.mxu0
      %v509 = vadd.f32 0.0, %v508
      %510 = vmatmul.bf16.gmra.mxu0 %v412
      %v511 = vpop.f32.mrf.mxu0
      %v512 = vadd.f32 0.0, %v511
      %v513 = vpop.f32.mrf.mxu0
      %v514 = vadd.f32 0.0, %v513
      %515 = vmatmul.bf16.gmra.mxu0 %v413
      %v516 = vpop.f32.mrf.mxu0
      %v517 = vadd.f32 0.0, %v516
      %v518 = vpop.f32.mrf.mxu0
      %v519 = vadd.f32 0.0, %v518
      %520 = vmatmul.bf16.gmra.mxu0 %v414
      %v521 = vpop.f32.mrf.mxu0
      %v522 = vadd.f32 0.0, %v521
      %v523 = vpop.f32.mrf.mxu0
      %v524 = vadd.f32 0.0, %v523
      %525 = vmatmul.bf16.gmra.mxu0 %v415
      %v526 = vpop.f32.mrf.mxu0
      %v527 = vadd.f32 0.0, %v526
      %v528 = vpop.f32.mrf.mxu0
      %v529 = vadd.f32 0.0, %v528
      %530 = vmatmul.bf16.gmra.mxu0 %v416
      %v531 = vpop.f32.mrf.mxu0
      %v532 = vadd.f32 0.0, %v531
      %v533 = vpop.f32.mrf.mxu0
      %534 = vdwg.mxu0
      %v551 = vunpack.c.l.b16 %v373
      %v552 = vunpack.c.l.b16 %v374
      %v553 = vunpack.c.l.b16 %v375
      %v554 = vunpack.c.l.b16 %v376
      %v555 = vunpack.c.l.b16 %v377
      %v556 = vunpack.c.l.b16 %v378
      %v557 = vunpack.c.l.b16 %v379
      %v558 = vunpack.c.l.b16 %v380
      %v559 = vunpack.c.l.b16 %v381
      %v560 = vunpack.c.l.b16 %v382
      %v561 = vunpack.c.l.b16 %v383
      %v562 = vunpack.c.l.b16 %v384
      %v563 = vunpack.c.l.b16 %v385
      %v564 = vunpack.c.l.b16 %v386
      %v565 = vunpack.c.l.b16 %v387
      %v566 = vunpack.c.l.b16 %v388
      %v567 = vpack.c.b16 %v552, %v551
      %v568 = vpack.c.b16 %v554, %v553
      %v569 = vpack.c.b16 %v556, %v555
      %v570 = vpack.c.b16 %v558, %v557
      %v571 = vpack.c.b16 %v560, %v559
      %v572 = vpack.c.b16 %v562, %v561
      %v573 = vpack.c.b16 %v564, %v563
      %v574 = vpack.c.b16 %v566, %v565
      %583 = vmatpush.bf16.msra.mxu0 %v574
      %584 = vmatpush.bf16.msra.mxu0 %v573
      %585 = vmatpush.bf16.msra.mxu0 %v572
      %586 = vmatpush.bf16.msra.mxu0 %v571
      %587 = vmatpush.bf16.msra.mxu0 %v570
      %588 = vmatpush.bf16.msra.mxu0 %v569
      %589 = vmatpush.bf16.msra.mxu0 %v568
      %590 = vmatpush.bf16.msra.mxu0 %v567
      %591 = vmatmul.bf16.gmra.mxu0 %v364
      %v592 = vpop.f32.mrf.mxu0
      %v593 = vadd.f32 %v492, %v592
      %v594 = vpop.f32.mrf.mxu0
      %v595 = vadd.f32 %v494, %v594
      %596 = vmatmul.bf16.gmra.mxu0 %v365
      %v597 = vpop.f32.mrf.mxu0
      %v598 = vadd.f32 %v497, %v597
      %v599 = vpop.f32.mrf.mxu0
      %v600 = vadd.f32 %v499, %v599
      %601 = vmatmul.bf16.gmra.mxu0 %v366
      %v602 = vpop.f32.mrf.mxu0
      %v603 = vadd.f32 %v502, %v602
      %v604 = vpop.f32.mrf.mxu0
      %v605 = vadd.f32 %v504, %v604
      %606 = vmatmul.bf16.gmra.mxu0 %v367
      %v607 = vpop.f32.mrf.mxu0
      %v608 = vadd.f32 %v507, %v607
      %v609 = vpop.f32.mrf.mxu0
      %v610 = vadd.f32 %v509, %v609
      %611 = vmatmul.bf16.gmra.mxu0 %v368
      %v612 = vpop.f32.mrf.mxu0
      %v613 = vadd.f32 %v512, %v612
      %v614 = vpop.f32.mrf.mxu0
      %v615 = vadd.f32 %v514, %v614
      %616 = vmatmul.bf16.gmra.mxu0 %v369
      %v617 = vpop.f32.mrf.mxu0
      %v618 = vadd.f32 %v517, %v617
      %v619 = vpop.f32.mrf.mxu0
      %v620 = vadd.f32 %v519, %v619
      %621 = vmatmul.bf16.gmra.mxu0 %v370
      %v622 = vpop.f32.mrf.mxu0
      %v623 = vadd.f32 %v522, %v622
      %v624 = vpop.f32.mrf.mxu0
      %v625 = vadd.f32 %v524, %v624
      %626 = vmatmul.bf16.gmra.mxu0 %v371
      %v627 = vpop.f32.mrf.mxu0
      %v628 = vadd.f32 %v527, %v627
      %v629 = vpop.f32.mrf.mxu0
      %v630 = vadd.f32 %v529, %v629
      %631 = vmatmul.bf16.gmra.mxu0 %v372
      %v632 = vpop.f32.mrf.mxu0
      %v633 = vadd.f32 %v532, %v632
      %v634 = vpop.f32.mrf.mxu0
      %635 = vdwg.mxu0
      %s636 = sadd.s32 %s344, 12
      %s637 = scalar_lea.vmem [#allocation2], %s636
      %v638 = vld [vmem:[%s637] sm:$0xff]
      %v639 = vld [vmem:[%s637 + $0x8] sm:$0xff]
      %v640 = vld [vmem:[%s637 + $0x10] sm:$0xff]
      %v641 = vld [vmem:[%s637 + $0x18] sm:$0xff]
      %v642 = vld [vmem:[%s637 + $0x20] sm:$0xff]
      %v643 = vld [vmem:[%s637 + $0x28] sm:$0xff]
      %v644 = vld [vmem:[%s637 + $0x30] sm:$0xff]
      %v645 = vld [vmem:[%s637 + $0x38] sm:$0xff]
      %v646 = vld [vmem:[%s637 + $0x40] sm:$0xff]
      %v647 = vld [vmem:[%s637 + $0x48] sm:$0xff]
      %v648 = vld [vmem:[%s637 + $0x50] sm:$0xff]
      %v649 = vld [vmem:[%s637 + $0x58] sm:$0xff]
      %v650 = vld [vmem:[%s637 + $0x60] sm:$0xff]
      %v651 = vld [vmem:[%s637 + $0x68] sm:$0xff]
      %v652 = vld [vmem:[%s637 + $0x70] sm:$0xff]
      %v653 = vld [vmem:[%s637 + $0x78] sm:$0xff]
      %v654 = vld [vmem:[%s637 + $0x80] sm:$0x3]
      %v655 = vpack.c.bf16 %v639, %v638
      %v656 = vpack.c.bf16 %v641, %v640
      %v657 = vpack.c.bf16 %v643, %v642
      %v658 = vpack.c.bf16 %v645, %v644
      %v659 = vpack.c.bf16 %v647, %v646
      %v660 = vpack.c.bf16 %v649, %v648
      %v661 = vpack.c.bf16 %v651, %v650
      %v662 = vpack.c.bf16 %v653, %v652
      %v663 = vpack.c.bf16 %v654, %v654
      %s664 = scalar_lea.vmem %s1, 128
      %v665 = vld [vmem:[%s664] sm:$0xf]
      %v666 = vld [vmem:[%s664 + $0x4] sm:$0xf]
      %v667 = vld [vmem:[%s664 + $0x8] sm:$0xf]
      %v668 = vld [vmem:[%s664 + $0xc] sm:$0xf]
      %v669 = vld [vmem:[%s664 + $0x10] sm:$0xf]
      %v670 = vld [vmem:[%s664 + $0x14] sm:$0xf]
      %v671 = vld [vmem:[%s664 + $0x18] sm:$0xf]
      %v672 = vld [vmem:[%s664 + $0x1c] sm:$0xf]
      %v673 = vld [vmem:[%s664 + $0x20] sm:$0xf]
      %v674 = vld [vmem:[%s664 + $0x24] sm:$0xf]
      %v675 = vld [vmem:[%s664 + $0x28] sm:$0xf]
      %v676 = vld [vmem:[%s664 + $0x2c] sm:$0xf]
      %v677 = vld [vmem:[%s664 + $0x30] sm:$0xf]
      %v678 = vld [vmem:[%s664 + $0x34] sm:$0xf]
      %v679 = vld [vmem:[%s664 + $0x38] sm:$0xf]
      %v680 = vld [vmem:[%s664 + $0x3c] sm:$0xf]
      %v697 = vunpack.c.l.b16 %v665
      %v698 = vunpack.c.l.b16 %v666
      %v699 = vunpack.c.l.b16 %v667
      %v700 = vunpack.c.l.b16 %v668
      %v701 = vunpack.c.l.b16 %v669
      %v702 = vunpack.c.l.b16 %v670
      %v703 = vunpack.c.l.b16 %v671
      %v704 = vunpack.c.l.b16 %v672
      %v705 = vunpack.c.l.b16 %v673
      %v706 = vunpack.c.l.b16 %v674
      %v707 = vunpack.c.l.b16 %v675
      %v708 = vunpack.c.l.b16 %v676
      %v709 = vunpack.c.l.b16 %v677
      %v710 = vunpack.c.l.b16 %v678
      %v711 = vunpack.c.l.b16 %v679
      %v712 = vunpack.c.l.b16 %v680
      %v713 = vpack.c.b16 %v698, %v697
      %v714 = vpack.c.b16 %v700, %v699
      %v715 = vpack.c.b16 %v702, %v701
      %v716 = vpack.c.b16 %v704, %v703
      %v717 = vpack.c.b16 %v706, %v705
      %v718 = vpack.c.b16 %v708, %v707
      %v719 = vpack.c.b16 %v710, %v709
      %v720 = vpack.c.b16 %v712, %v711
      %729 = vmatpush.bf16.msra.mxu0 %v720
      %730 = vmatpush.bf16.msra.mxu0 %v719
      %731 = vmatpush.bf16.msra.mxu0 %v718
      %732 = vmatpush.bf16.msra.mxu0 %v717
      %733 = vmatpush.bf16.msra.mxu0 %v716
      %734 = vmatpush.bf16.msra.mxu0 %v715
      %735 = vmatpush.bf16.msra.mxu0 %v714
      %736 = vmatpush.bf16.msra.mxu0 %v713
      %737 = vmatmul.bf16.gmra.mxu0 %v655
      %v738 = vpop.f32.mrf.mxu0
      %v739 = vadd.f32 0.0, %v738
      %v740 = vpop.f32.mrf.mxu0
      %v741 = vadd.f32 0.0, %v740
      %742 = vmatmul.bf16.gmra.mxu0 %v656
      %v743 = vpop.f32.mrf.mxu0
      %v744 = vadd.f32 0.0, %v743
      %v745 = vpop.f32.mrf.mxu0
      %v746 = vadd.f32 0.0, %v745
      %747 = vmatmul.bf16.gmra.mxu0 %v657
      %v748 = vpop.f32.mrf.mxu0
      %v749 = vadd.f32 0.0, %v748
      %v750 = vpop.f32.mrf.mxu0
      %v751 = vadd.f32 0.0, %v750
      %752 = vmatmul.bf16.gmra.mxu0 %v658
      %v753 = vpop.f32.mrf.mxu0
      %v754 = vadd.f32 0.0, %v753
      %v755 = vpop.f32.mrf.mxu0
      %v756 = vadd.f32 0.0, %v755
      %757 = vmatmul.bf16.gmra.mxu0 %v659
      %v758 = vpop.f32.mrf.mxu0
      %v759 = vadd.f32 0.0, %v758
      %v760 = vpop.f32.mrf.mxu0
      %v761 = vadd.f32 0.0, %v760
      %762 = vmatmul.bf16.gmra.mxu0 %v660
      %v763 = vpop.f32.mrf.mxu0
      %v764 = vadd.f32 0.0, %v763
      %v765 = vpop.f32.mrf.mxu0
      %v766 = vadd.f32 0.0, %v765
      %767 = vmatmul.bf16.gmra.mxu0 %v661
      %v768 = vpop.f32.mrf.mxu0
      %v769 = vadd.f32 0.0, %v768
      %v770 = vpop.f32.mrf.mxu0
      %v771 = vadd.f32 0.0, %v770
      %772 = vmatmul.bf16.gmra.mxu0 %v662
      %v773 = vpop.f32.mrf.mxu0
      %v774 = vadd.f32 0.0, %v773
      %v775 = vpop.f32.mrf.mxu0
      %v776 = vadd.f32 0.0, %v775
      %777 = vmatmul.bf16.gmra.mxu0 %v663
      %v778 = vpop.f32.mrf.mxu0
      %v779 = vadd.f32 0.0, %v778
      %v780 = vpop.f32.mrf.mxu0
      %781 = vdwg.mxu0
      %v782 = vadd.f32 %v593, %v739
      %v783 = vadd.f32 %v595, %v741
      %v784 = vadd.f32 %v598, %v744
      %v785 = vadd.f32 %v600, %v746
      %v786 = vadd.f32 %v603, %v749
      %v787 = vadd.f32 %v605, %v751
      %v788 = vadd.f32 %v608, %v754
      %v789 = vadd.f32 %v610, %v756
      %v790 = vadd.f32 %v613, %v759
      %v791 = vadd.f32 %v615, %v761
      %v792 = vadd.f32 %v618, %v764
      %v793 = vadd.f32 %v620, %v766
      %v794 = vadd.f32 %v623, %v769
      %v795 = vadd.f32 %v625, %v771
      %v796 = vadd.f32 %v628, %v774
      %v797 = vadd.f32 %v630, %v776
      %v798 = vadd.f32 %v633, %v779
      %v799 = vld [vmem:[%s2] sm:$0x1]
      %v801 = vperm.slane %v799, 0
      %v803 = vadd.f32 %v782, %v801
      %v804 = vadd.f32 %v783, %v801
      %v805 = vadd.f32 %v784, %v801
      %v806 = vadd.f32 %v785, %v801
      %v807 = vadd.f32 %v786, %v801
      %v808 = vadd.f32 %v787, %v801
      %v809 = vadd.f32 %v788, %v801
      %v810 = vadd.f32 %v789, %v801
      %v811 = vadd.f32 %v790, %v801
      %v812 = vadd.f32 %v791, %v801
      %v813 = vadd.f32 %v792, %v801
      %v814 = vadd.f32 %v793, %v801
      %v815 = vadd.f32 %v794, %v801
      %v816 = vadd.f32 %v795, %v801
      %v817 = vadd.f32 %v796, %v801
      %v818 = vadd.f32 %v797, %v801
      %v819 = vadd.f32 %v798, %v801
      %vm820 = vcmp.ge.f32.partialorder %v803, 0.0
      %vm821 = vcmp.ge.f32.partialorder %v804, 0.0
      %vm822 = vcmp.ge.f32.partialorder %v805, 0.0
      %vm823 = vcmp.ge.f32.partialorder %v806, 0.0
      %vm824 = vcmp.ge.f32.partialorder %v807, 0.0
      %vm825 = vcmp.ge.f32.partialorder %v808, 0.0
      %vm826 = vcmp.ge.f32.partialorder %v809, 0.0
      %vm827 = vcmp.ge.f32.partialorder %v810, 0.0
      %vm828 = vcmp.ge.f32.partialorder %v811, 0.0
      %vm829 = vcmp.ge.f32.partialorder %v812, 0.0
      %vm830 = vcmp.ge.f32.partialorder %v813, 0.0
      %vm831 = vcmp.ge.f32.partialorder %v814, 0.0
      %vm832 = vcmp.ge.f32.partialorder %v815, 0.0
      %vm833 = vcmp.ge.f32.partialorder %v816, 0.0
      %vm834 = vcmp.ge.f32.partialorder %v817, 0.0
      %vm835 = vcmp.ge.f32.partialorder %v818, 0.0
      %vm836 = vcmp.ge.f32.partialorder %v819, 0.0
      %v837 = vmul.f32 %v803, 0.1
      %v838 = vmul.f32 %v804, 0.1
      %v839 = vmul.f32 %v805, 0.1
      %v840 = vmul.f32 %v806, 0.1
      %v841 = vmul.f32 %v807, 0.1
      %v842 = vmul.f32 %v808, 0.1
      %v843 = vmul.f32 %v809, 0.1
      %v844 = vmul.f32 %v810, 0.1
      %v845 = vmul.f32 %v811, 0.1
      %v846 = vmul.f32 %v812, 0.1
      %v847 = vmul.f32 %v813, 0.1
      %v848 = vmul.f32 %v814, 0.1
      %v849 = vmul.f32 %v815, 0.1
      %v850 = vmul.f32 %v816, 0.1
      %v851 = vmul.f32 %v817, 0.1
      %v852 = vmul.f32 %v818, 0.1
      %v853 = vmul.f32 %v819, 0.1
      %v854 = vsel %vm820, %v803, %v837
      %v855 = vsel %vm821, %v804, %v838
      %v856 = vsel %vm822, %v805, %v839
      %v857 = vsel %vm823, %v806, %v840
      %v858 = vsel %vm824, %v807, %v841
      %v859 = vsel %vm825, %v808, %v842
      %v860 = vsel %vm826, %v809, %v843
      %v861 = vsel %vm827, %v810, %v844
      %v862 = vsel %vm828, %v811, %v845
      %v863 = vsel %vm829, %v812, %v846
      %v864 = vsel %vm830, %v813, %v847
      %v865 = vsel %vm831, %v814, %v848
      %v866 = vsel %vm832, %v815, %v849
      %v867 = vsel %vm833, %v816, %v850
      %v868 = vsel %vm834, %v817, %v851
      %v869 = vsel %vm835, %v818, %v852
      %v870 = vsel %vm836, %v819, %v853
      %s871 = ssub.s32 %s344, 1
      %v872 = vlaneseq
      %v873 = vshrl.u32 %v872, 7
      %v874 = vadd.s32 %v873, 8
      %v875 = vadd.s32 %v873, 16
      %v876 = vadd.s32 %v873, 24
      %v877 = vadd.s32 %v873, 32
      %v878 = vadd.s32 %v873, 40
      %v879 = vadd.s32 %v873, 48
      %v880 = vadd.s32 %v873, 56
      %v881 = vadd.s32 %v873, 64
      %v882 = vadd.s32 %v873, 72
      %v883 = vadd.s32 %v873, 80
      %v884 = vadd.s32 %v873, 88
      %v885 = vadd.s32 %v873, 96
      %v886 = vadd.s32 %v873, 104
      %v887 = vadd.s32 %v873, 112
      %v888 = vadd.s32 %v873, 120
      %v889 = vadd.s32 %v873, 128
      %v890 = vstv %s871
      %v891 = vadd.s32 %v890, %v873
      %v892 = vadd.s32 %v890, %v874
      %v893 = vadd.s32 %v890, %v875
      %v894 = vadd.s32 %v890, %v876
      %v895 = vadd.s32 %v890, %v877
      %v896 = vadd.s32 %v890, %v878
      %v897 = vadd.s32 %v890, %v879
      %v898 = vadd.s32 %v890, %v880
      %v899 = vadd.s32 %v890, %v881
      %v900 = vadd.s32 %v890, %v882
      %v901 = vadd.s32 %v890, %v883
      %v902 = vadd.s32 %v890, %v884
      %v903 = vadd.s32 %v890, %v885
      %v904 = vadd.s32 %v890, %v886
      %v905 = vadd.s32 %v890, %v887
      %v906 = vadd.s32 %v890, %v888
      %v907 = vadd.s32 %v890, %v889
      %vm908 = vcmp.ge.s32.totalorder %v891, 0
      %vm909 = vcmp.ge.s32.totalorder %v892, 0
      %vm910 = vcmp.ge.s32.totalorder %v893, 0
      %vm911 = vcmp.ge.s32.totalorder %v894, 0
      %vm912 = vcmp.ge.s32.totalorder %v895, 0
      %vm913 = vcmp.ge.s32.totalorder %v896, 0
      %vm914 = vcmp.ge.s32.totalorder %v897, 0
      %vm915 = vcmp.ge.s32.totalorder %v898, 0
      %vm916 = vcmp.ge.s32.totalorder %v899, 0
      %vm917 = vcmp.ge.s32.totalorder %v900, 0
      %vm918 = vcmp.ge.s32.totalorder %v901, 0
      %vm919 = vcmp.ge.s32.totalorder %v902, 0
      %vm920 = vcmp.ge.s32.totalorder %v903, 0
      %vm921 = vcmp.ge.s32.totalorder %v904, 0
      %vm922 = vcmp.ge.s32.totalorder %v905, 0
      %vm923 = vcmp.ge.s32.totalorder %v906, 0
      %vm924 = vcmp.ge.s32.totalorder %v907, 0
      %vm925 = vcmp.lt.s32.totalorder %v891, 256
      %vm926 = vcmp.lt.s32.totalorder %v892, 256
      %vm927 = vcmp.lt.s32.totalorder %v893, 256
      %vm928 = vcmp.lt.s32.totalorder %v894, 256
      %vm929 = vcmp.lt.s32.totalorder %v895, 256
      %vm930 = vcmp.lt.s32.totalorder %v896, 256
      %vm931 = vcmp.lt.s32.totalorder %v897, 256
      %vm932 = vcmp.lt.s32.totalorder %v898, 256
      %vm933 = vcmp.lt.s32.totalorder %v899, 256
      %vm934 = vcmp.lt.s32.totalorder %v900, 256
      %vm935 = vcmp.lt.s32.totalorder %v901, 256
      %vm936 = vcmp.lt.s32.totalorder %v902, 256
      %vm937 = vcmp.lt.s32.totalorder %v903, 256
      %vm938 = vcmp.lt.s32.totalorder %v904, 256
      %vm939 = vcmp.lt.s32.totalorder %v905, 256
      %vm940 = vcmp.lt.s32.totalorder %v906, 256
      %vm941 = vcmp.lt.s32.totalorder %v907, 256
      %vm942 = vmand %vm908, %vm925
      %vm943 = vmand %vm909, %vm926
      %vm944 = vmand %vm910, %vm927
      %vm945 = vmand %vm911, %vm928
      %vm946 = vmand %vm912, %vm929
      %vm947 = vmand %vm913, %vm930
      %vm948 = vmand %vm914, %vm931
      %vm949 = vmand %vm915, %vm932
      %vm950 = vmand %vm916, %vm933
      %vm951 = vmand %vm917, %vm934
      %vm952 = vmand %vm918, %vm935
      %vm953 = vmand %vm919, %vm936
      %vm954 = vmand %vm920, %vm937
      %vm955 = vmand %vm921, %vm938
      %vm956 = vmand %vm922, %vm939
      %vm957 = vmand %vm923, %vm940
      %vm958 = vmand %vm924, %vm941
      %v959 = vsel %vm942, 1, 0
      %v960 = vsel %vm943, 1, 0
      %v961 = vsel %vm944, 1, 0
      %v962 = vsel %vm945, 1, 0
      %v963 = vsel %vm946, 1, 0
      %v964 = vsel %vm947, 1, 0
      %v965 = vsel %vm948, 1, 0
      %v966 = vsel %vm949, 1, 0
      %v967 = vsel %vm950, 1, 0
      %v968 = vsel %vm951, 1, 0
      %v969 = vsel %vm952, 1, 0
      %v970 = vsel %vm953, 1, 0
      %v971 = vsel %vm954, 1, 0
      %v972 = vsel %vm955, 1, 0
      %v973 = vsel %vm956, 1, 0
      %v974 = vsel %vm957, 1, 0
      %v975 = vsel %vm958, 1, 0
      %vm976 = vcmp.eq.s32.totalorder %v959, 1
      %vm977 = vcmp.eq.s32.totalorder %v960, 1
      %vm978 = vcmp.eq.s32.totalorder %v961, 1
      %vm979 = vcmp.eq.s32.totalorder %v962, 1
      %vm980 = vcmp.eq.s32.totalorder %v963, 1
      %vm981 = vcmp.eq.s32.totalorder %v964, 1
      %vm982 = vcmp.eq.s32.totalorder %v965, 1
      %vm983 = vcmp.eq.s32.totalorder %v966, 1
      %vm984 = vcmp.eq.s32.totalorder %v967, 1
      %vm985 = vcmp.eq.s32.totalorder %v968, 1
      %vm986 = vcmp.eq.s32.totalorder %v969, 1
      %vm987 = vcmp.eq.s32.totalorder %v970, 1
      %vm988 = vcmp.eq.s32.totalorder %v971, 1
      %vm989 = vcmp.eq.s32.totalorder %v972, 1
      %vm990 = vcmp.eq.s32.totalorder %v973, 1
      %vm991 = vcmp.eq.s32.totalorder %v974, 1
      %vm992 = vcmp.eq.s32.totalorder %v975, 1
      %v993 = vsel %vm976, %v854, 0.0
      %v994 = vsel %vm977, %v855, 0.0
      %v995 = vsel %vm978, %v856, 0.0
      %v996 = vsel %vm979, %v857, 0.0
      %v997 = vsel %vm980, %v858, 0.0
      %v998 = vsel %vm981, %v859, 0.0
      %v999 = vsel %vm982, %v860, 0.0
      %v1000 = vsel %vm983, %v861, 0.0
      %v1001 = vsel %vm984, %v862, 0.0
      %v1002 = vsel %vm985, %v863, 0.0
      %v1003 = vsel %vm986, %v864, 0.0
      %v1004 = vsel %vm987, %v865, 0.0
      %v1005 = vsel %vm988, %v866, 0.0
      %v1006 = vsel %vm989, %v867, 0.0
      %v1007 = vsel %vm990, %v868, 0.0
      %v1008 = vsel %vm991, %v869, 0.0
      %v1009 = vsel %vm992, %v870, 0.0
      %1010 = vst [vmem:[#allocation3] sm:$0xff] %v993
      %1011 = vst [vmem:[#allocation3 + $0x8] sm:$0xff] %v994
      %1012 = vst [vmem:[#allocation3 + $0x10] sm:$0xff] %v995
      %1013 = vst [vmem:[#allocation3 + $0x18] sm:$0xff] %v996
      %1014 = vst [vmem:[#allocation3 + $0x20] sm:$0xff] %v997
      %1015 = vst [vmem:[#allocation3 + $0x28] sm:$0xff] %v998
      %1016 = vst [vmem:[#allocation3 + $0x30] sm:$0xff] %v999
      %1017 = vst [vmem:[#allocation3 + $0x38] sm:$0xff] %v1000
      %1018 = vst [vmem:[#allocation3 + $0x40] sm:$0xff] %v1001
      %1019 = vst [vmem:[#allocation3 + $0x48] sm:$0xff] %v1002
      %1020 = vst [vmem:[#allocation3 + $0x50] sm:$0xff] %v1003
      %1021 = vst [vmem:[#allocation3 + $0x58] sm:$0xff] %v1004
      %1022 = vst [vmem:[#allocation3 + $0x60] sm:$0xff] %v1005
      %1023 = vst [vmem:[#allocation3 + $0x68] sm:$0xff] %v1006
      %1024 = vst [vmem:[#allocation3 + $0x70] sm:$0xff] %v1007
      %1025 = vst [vmem:[#allocation3 + $0x78] sm:$0xff] %v1008
      %1026 = vst [vmem:[#allocation3 + $0x80] sm:$0x3] %v1009
      %v1027 = vld [vmem:[#allocation3] sm:$0xff]
      %v1028 = vld [vmem:[#allocation3 + $0x8] sm:$0xff]
      %v1029 = vld [vmem:[#allocation3 + $0x10] sm:$0xff]
      %v1030 = vld [vmem:[#allocation3 + $0x18] sm:$0xff]
      %v1031 = vld [vmem:[#allocation3 + $0x20] sm:$0xff]
      %v1032 = vld [vmem:[#allocation3 + $0x28] sm:$0xff]
      %v1033 = vld [vmem:[#allocation3 + $0x30] sm:$0xff]
      %v1034 = vld [vmem:[#allocation3 + $0x38] sm:$0xff]
      %v1035 = vld [vmem:[#allocation3 + $0x40] sm:$0xff]
      %v1036 = vld [vmem:[#allocation3 + $0x48] sm:$0xff]
      %v1037 = vld [vmem:[#allocation3 + $0x50] sm:$0xff]
      %v1038 = vld [vmem:[#allocation3 + $0x58] sm:$0xff]
      %v1039 = vld [vmem:[#allocation3 + $0x60] sm:$0xff]
      %v1040 = vld [vmem:[#allocation3 + $0x68] sm:$0xff]
      %v1041 = vld [vmem:[#allocation3 + $0x70] sm:$0xff]
      %v1042 = vld [vmem:[#allocation3 + $0x78] sm:$0xff]
      %v1043 = vpack.c.bf16 %v1028, %v1027
      %v1044 = vpack.c.bf16 %v1030, %v1029
      %v1045 = vpack.c.bf16 %v1032, %v1031
      %v1046 = vpack.c.bf16 %v1034, %v1033
      %v1047 = vpack.c.bf16 %v1036, %v1035
      %v1048 = vpack.c.bf16 %v1038, %v1037
      %v1049 = vpack.c.bf16 %v1040, %v1039
      %v1050 = vpack.c.bf16 %v1042, %v1041
      %v1051 = vld [vmem:[%s3] sm:$0xf]
      %v1052 = vld [vmem:[%s3 + $0x4] sm:$0xf]
      %v1053 = vld [vmem:[%s3 + $0x8] sm:$0xf]
      %v1054 = vld [vmem:[%s3 + $0xc] sm:$0xf]
      %v1055 = vld [vmem:[%s3 + $0x10] sm:$0xf]
      %v1056 = vld [vmem:[%s3 + $0x14] sm:$0xf]
      %v1057 = vld [vmem:[%s3 + $0x18] sm:$0xf]
      %v1058 = vld [vmem:[%s3 + $0x1c] sm:$0xf]
      %v1059 = vld [vmem:[%s3 + $0x20] sm:$0xf]
      %v1060 = vld [vmem:[%s3 + $0x24] sm:$0xf]
      %v1061 = vld [vmem:[%s3 + $0x28] sm:$0xf]
      %v1062 = vld [vmem:[%s3 + $0x2c] sm:$0xf]
      %v1063 = vld [vmem:[%s3 + $0x30] sm:$0xf]
      %v1064 = vld [vmem:[%s3 + $0x34] sm:$0xf]
      %v1065 = vld [vmem:[%s3 + $0x38] sm:$0xf]
      %v1066 = vld [vmem:[%s3 + $0x3c] sm:$0xf]
      %v1067 = vld [vmem:[#allocation3 + $0x1] sm:$0xff]
      %v1068 = vld [vmem:[#allocation3 + $0x9] sm:$0xff]
      %v1069 = vld [vmem:[#allocation3 + $0x11] sm:$0xff]
      %v1070 = vld [vmem:[#allocation3 + $0x19] sm:$0xff]
      %v1071 = vld [vmem:[#allocation3 + $0x21] sm:$0xff]
      %v1072 = vld [vmem:[#allocation3 + $0x29] sm:$0xff]
      %v1073 = vld [vmem:[#allocation3 + $0x31] sm:$0xff]
      %v1074 = vld [vmem:[#allocation3 + $0x39] sm:$0xff]
      %v1075 = vld [vmem:[#allocation3 + $0x41] sm:$0xff]
      %v1076 = vld [vmem:[#allocation3 + $0x49] sm:$0xff]
      %v1077 = vld [vmem:[#allocation3 + $0x51] sm:$0xff]
      %v1078 = vld [vmem:[#allocation3 + $0x59] sm:$0xff]
      %v1079 = vld [vmem:[#allocation3 + $0x61] sm:$0xff]
      %v1080 = vld [vmem:[#allocation3 + $0x69] sm:$0xff]
      %v1081 = vld [vmem:[#allocation3 + $0x71] sm:$0xff]
      %v1082 = vld [vmem:[#allocation3 + $0x79] sm:$0xff]
      %v1083 = vpack.c.bf16 %v1068, %v1067
      %v1084 = vpack.c.bf16 %v1070, %v1069
      %v1085 = vpack.c.bf16 %v1072, %v1071
      %v1086 = vpack.c.bf16 %v1074, %v1073
      %v1087 = vpack.c.bf16 %v1076, %v1075
      %v1088 = vpack.c.bf16 %v1078, %v1077
      %v1089 = vpack.c.bf16 %v1080, %v1079
      %v1090 = vpack.c.bf16 %v1082, %v1081
      %s1091 = scalar_lea.vmem %s3, 64
      %v1092 = vld [vmem:[%s1091] sm:$0xf]
      %v1093 = vld [vmem:[%s1091 + $0x4] sm:$0xf]
      %v1094 = vld [vmem:[%s1091 + $0x8] sm:$0xf]
      %v1095 = vld [vmem:[%s1091 + $0xc] sm:$0xf]
      %v1096 = vld [vmem:[%s1091 + $0x10] sm:$0xf]
      %v1097 = vld [vmem:[%s1091 + $0x14] sm:$0xf]
      %v1098 = vld [vmem:[%s1091 + $0x18] sm:$0xf]
      %v1099 = vld [vmem:[%s1091 + $0x1c] sm:$0xf]
      %v1100 = vld [vmem:[%s1091 + $0x20] sm:$0xf]
      %v1101 = vld [vmem:[%s1091 + $0x24] sm:$0xf]
      %v1102 = vld [vmem:[%s1091 + $0x28] sm:$0xf]
      %v1103 = vld [vmem:[%s1091 + $0x2c] sm:$0xf]
      %v1104 = vld [vmem:[%s1091 + $0x30] sm:$0xf]
      %v1105 = vld [vmem:[%s1091 + $0x34] sm:$0xf]
      %v1106 = vld [vmem:[%s1091 + $0x38] sm:$0xf]
      %v1107 = vld [vmem:[%s1091 + $0x3c] sm:$0xf]
      %v1124 = vunpack.c.l.b16 %v1092
      %v1125 = vunpack.c.l.b16 %v1093
      %v1126 = vunpack.c.l.b16 %v1094
      %v1127 = vunpack.c.l.b16 %v1095
      %v1128 = vunpack.c.l.b16 %v1096
      %v1129 = vunpack.c.l.b16 %v1097
      %v1130 = vunpack.c.l.b16 %v1098
      %v1131 = vunpack.c.l.b16 %v1099
      %v1132 = vunpack.c.l.b16 %v1100
      %v1133 = vunpack.c.l.b16 %v1101
      %v1134 = vunpack.c.l.b16 %v1102
      %v1135 = vunpack.c.l.b16 %v1103
      %v1136 = vunpack.c.l.b16 %v1104
      %v1137 = vunpack.c.l.b16 %v1105
      %v1138 = vunpack.c.l.b16 %v1106
      %v1139 = vunpack.c.l.b16 %v1107
      %v1140 = vpack.c.b16 %v1125, %v1124
      %v1141 = vpack.c.b16 %v1127, %v1126
      %v1142 = vpack.c.b16 %v1129, %v1128
      %v1143 = vpack.c.b16 %v1131, %v1130
      %v1144 = vpack.c.b16 %v1133, %v1132
      %v1145 = vpack.c.b16 %v1135, %v1134
      %v1146 = vpack.c.b16 %v1137, %v1136
      %v1147 = vpack.c.b16 %v1139, %v1138
      %1156 = vmatpush.bf16.msra.mxu0 %v1147
      %1157 = vmatpush.bf16.msra.mxu0 %v1146
      %1158 = vmatpush.bf16.msra.mxu0 %v1145
      %1159 = vmatpush.bf16.msra.mxu0 %v1144
      %1160 = vmatpush.bf16.msra.mxu0 %v1143
      %1161 = vmatpush.bf16.msra.mxu0 %v1142
      %1162 = vmatpush.bf16.msra.mxu0 %v1141
      %1163 = vmatpush.bf16.msra.mxu0 %v1140
      %1164 = vmatmul.bf16.gmra.mxu0 %v1083
      %v1165 = vpop.f32.mrf.mxu0
      %v1166 = vadd.f32 0.0, %v1165
      %v1167 = vpop.f32.mrf.mxu0
      %v1168 = vadd.f32 0.0, %v1167
      %1169 = vmatmul.bf16.gmra.mxu0 %v1084
      %v1170 = vpop.f32.mrf.mxu0
      %v1171 = vadd.f32 0.0, %v1170
      %v1172 = vpop.f32.mrf.mxu0
      %v1173 = vadd.f32 0.0, %v1172
      %1174 = vmatmul.bf16.gmra.mxu0 %v1085
      %v1175 = vpop.f32.mrf.mxu0
      %v1176 = vadd.f32 0.0, %v1175
      %v1177 = vpop.f32.mrf.mxu0
      %v1178 = vadd.f32 0.0, %v1177
      %1179 = vmatmul.bf16.gmra.mxu0 %v1086
      %v1180 = vpop.f32.mrf.mxu0
      %v1181 = vadd.f32 0.0, %v1180
      %v1182 = vpop.f32.mrf.mxu0
      %v1183 = vadd.f32 0.0, %v1182
      %1184 = vmatmul.bf16.gmra.mxu0 %v1087
      %v1185 = vpop.f32.mrf.mxu0
      %v1186 = vadd.f32 0.0, %v1185
      %v1187 = vpop.f32.mrf.mxu0
      %v1188 = vadd.f32 0.0, %v1187
      %1189 = vmatmul.bf16.gmra.mxu0 %v1088
      %v1190 = vpop.f32.mrf.mxu0
      %v1191 = vadd.f32 0.0, %v1190
      %v1192 = vpop.f32.mrf.mxu0
      %v1193 = vadd.f32 0.0, %v1192
      %1194 = vmatmul.bf16.gmra.mxu0 %v1089
      %v1195 = vpop.f32.mrf.mxu0
      %v1196 = vadd.f32 0.0, %v1195
      %v1197 = vpop.f32.mrf.mxu0
      %v1198 = vadd.f32 0.0, %v1197
      %1199 = vmatmul.bf16.gmra.mxu0 %v1090
      %v1200 = vpop.f32.mrf.mxu0
      %v1201 = vadd.f32 0.0, %v1200
      %v1202 = vpop.f32.mrf.mxu0
      %v1203 = vadd.f32 0.0, %v1202
      %1204 = vdwg.mxu0
      %v1221 = vunpack.c.l.b16 %v1051
      %v1222 = vunpack.c.l.b16 %v1052
      %v1223 = vunpack.c.l.b16 %v1053
      %v1224 = vunpack.c.l.b16 %v1054
      %v1225 = vunpack.c.l.b16 %v1055
      %v1226 = vunpack.c.l.b16 %v1056
      %v1227 = vunpack.c.l.b16 %v1057
      %v1228 = vunpack.c.l.b16 %v1058
      %v1229 = vunpack.c.l.b16 %v1059
      %v1230 = vunpack.c.l.b16 %v1060
      %v1231 = vunpack.c.l.b16 %v1061
      %v1232 = vunpack.c.l.b16 %v1062
      %v1233 = vunpack.c.l.b16 %v1063
      %v1234 = vunpack.c.l.b16 %v1064
      %v1235 = vunpack.c.l.b16 %v1065
      %v1236 = vunpack.c.l.b16 %v1066
      %v1237 = vpack.c.b16 %v1222, %v1221
      %v1238 = vpack.c.b16 %v1224, %v1223
      %v1239 = vpack.c.b16 %v1226, %v1225
      %v1240 = vpack.c.b16 %v1228, %v1227
      %v1241 = vpack.c.b16 %v1230, %v1229
      %v1242 = vpack.c.b16 %v1232, %v1231
      %v1243 = vpack.c.b16 %v1234, %v1233
      %v1244 = vpack.c.b16 %v1236, %v1235
      %1253 = vmatpush.bf16.msra.mxu0 %v1244
      %1254 = vmatpush.bf16.msra.mxu0 %v1243
      %1255 = vmatpush.bf16.msra.mxu0 %v1242
      %1256 = vmatpush.bf16.msra.mxu0 %v1241
      %1257 = vmatpush.bf16.msra.mxu0 %v1240
      %1258 = vmatpush.bf16.msra.mxu0 %v1239
      %1259 = vmatpush.bf16.msra.mxu0 %v1238
      %1260 = vmatpush.bf16.msra.mxu0 %v1237
      %1261 = vmatmul.bf16.gmra.mxu0 %v1043
      %v1262 = vpop.f32.mrf.mxu0
      %v1263 = vadd.f32 %v1166, %v1262
      %v1264 = vpop.f32.mrf.mxu0
      %v1265 = vadd.f32 %v1168, %v1264
      %1266 = vmatmul.bf16.gmra.mxu0 %v1044
      %v1267 = vpop.f32.mrf.mxu0
      %v1268 = vadd.f32 %v1171, %v1267
      %v1269 = vpop.f32.mrf.mxu0
      %v1270 = vadd.f32 %v1173, %v1269
      %1271 = vmatmul.bf16.gmra.mxu0 %v1045
      %v1272 = vpop.f32.mrf.mxu0
      %v1273 = vadd.f32 %v1176, %v1272
      %v1274 = vpop.f32.mrf.mxu0
      %v1275 = vadd.f32 %v1178, %v1274
      %1276 = vmatmul.bf16.gmra.mxu0 %v1046
      %v1277 = vpop.f32.mrf.mxu0
      %v1278 = vadd.f32 %v1181, %v1277
      %v1279 = vpop.f32.mrf.mxu0
      %v1280 = vadd.f32 %v1183, %v1279
      %1281 = vmatmul.bf16.gmra.mxu0 %v1047
      %v1282 = vpop.f32.mrf.mxu0
      %v1283 = vadd.f32 %v1186, %v1282
      %v1284 = vpop.f32.mrf.mxu0
      %v1285 = vadd.f32 %v1188, %v1284
      %1286 = vmatmul.bf16.gmra.mxu0 %v1048
      %v1287 = vpop.f32.mrf.mxu0
      %v1288 = vadd.f32 %v1191, %v1287
      %v1289 = vpop.f32.mrf.mxu0
      %v1290 = vadd.f32 %v1193, %v1289
      %1291 = vmatmul.bf16.gmra.mxu0 %v1049
      %v1292 = vpop.f32.mrf.mxu0
      %v1293 = vadd.f32 %v1196, %v1292
      %v1294 = vpop.f32.mrf.mxu0
      %v1295 = vadd.f32 %v1198, %v1294
      %1296 = vmatmul.bf16.gmra.mxu0 %v1050
      %v1297 = vpop.f32.mrf.mxu0
      %v1298 = vadd.f32 %v1201, %v1297
      %v1299 = vpop.f32.mrf.mxu0
      %v1300 = vadd.f32 %v1203, %v1299
      %1301 = vdwg.mxu0
      %v1302 = vld [vmem:[#allocation3 + $0x2] sm:$0xff]
      %v1303 = vld [vmem:[#allocation3 + $0xa] sm:$0xff]
      %v1304 = vld [vmem:[#allocation3 + $0x12] sm:$0xff]
      %v1305 = vld [vmem:[#allocation3 + $0x1a] sm:$0xff]
      %v1306 = vld [vmem:[#allocation3 + $0x22] sm:$0xff]
      %v1307 = vld [vmem:[#allocation3 + $0x2a] sm:$0xff]
      %v1308 = vld [vmem:[#allocation3 + $0x32] sm:$0xff]
      %v1309 = vld [vmem:[#allocation3 + $0x3a] sm:$0xff]
      %v1310 = vld [vmem:[#allocation3 + $0x42] sm:$0xff]
      %v1311 = vld [vmem:[#allocation3 + $0x4a] sm:$0xff]
      %v1312 = vld [vmem:[#allocation3 + $0x52] sm:$0xff]
      %v1313 = vld [vmem:[#allocation3 + $0x5a] sm:$0xff]
      %v1314 = vld [vmem:[#allocation3 + $0x62] sm:$0xff]
      %v1315 = vld [vmem:[#allocation3 + $0x6a] sm:$0xff]
      %v1316 = vld [vmem:[#allocation3 + $0x72] sm:$0xff]
      %v1317 = vld [vmem:[#allocation3 + $0x7a] sm:$0xff]
      %v1318 = vpack.c.bf16 %v1303, %v1302
      %v1319 = vpack.c.bf16 %v1305, %v1304
      %v1320 = vpack.c.bf16 %v1307, %v1306
      %v1321 = vpack.c.bf16 %v1309, %v1308
      %v1322 = vpack.c.bf16 %v1311, %v1310
      %v1323 = vpack.c.bf16 %v1313, %v1312
      %v1324 = vpack.c.bf16 %v1315, %v1314
      %v1325 = vpack.c.bf16 %v1317, %v1316
      %s1326 = scalar_lea.vmem %s3, 128
      %v1327 = vld [vmem:[%s1326] sm:$0xf]
      %v1328 = vld [vmem:[%s1326 + $0x4] sm:$0xf]
      %v1329 = vld [vmem:[%s1326 + $0x8] sm:$0xf]
      %v1330 = vld [vmem:[%s1326 + $0xc] sm:$0xf]
      %v1331 = vld [vmem:[%s1326 + $0x10] sm:$0xf]
      %v1332 = vld [vmem:[%s1326 + $0x14] sm:$0xf]
      %v1333 = vld [vmem:[%s1326 + $0x18] sm:$0xf]
      %v1334 = vld [vmem:[%s1326 + $0x1c] sm:$0xf]
      %v1335 = vld [vmem:[%s1326 + $0x20] sm:$0xf]
      %v1336 = vld [vmem:[%s1326 + $0x24] sm:$0xf]
      %v1337 = vld [vmem:[%s1326 + $0x28] sm:$0xf]
      %v1338 = vld [vmem:[%s1326 + $0x2c] sm:$0xf]
      %v1339 = vld [vmem:[%s1326 + $0x30] sm:$0xf]
      %v1340 = vld [vmem:[%s1326 + $0x34] sm:$0xf]
      %v1341 = vld [vmem:[%s1326 + $0x38] sm:$0xf]
      %v1342 = vld [vmem:[%s1326 + $0x3c] sm:$0xf]
      %v1359 = vunpack.c.l.b16 %v1327
      %v1360 = vunpack.c.l.b16 %v1328
      %v1361 = vunpack.c.l.b16 %v1329
      %v1362 = vunpack.c.l.b16 %v1330
      %v1363 = vunpack.c.l.b16 %v1331
      %v1364 = vunpack.c.l.b16 %v1332
      %v1365 = vunpack.c.l.b16 %v1333
      %v1366 = vunpack.c.l.b16 %v1334
      %v1367 = vunpack.c.l.b16 %v1335
      %v1368 = vunpack.c.l.b16 %v1336
      %v1369 = vunpack.c.l.b16 %v1337
      %v1370 = vunpack.c.l.b16 %v1338
      %v1371 = vunpack.c.l.b16 %v1339
      %v1372 = vunpack.c.l.b16 %v1340
      %v1373 = vunpack.c.l.b16 %v1341
      %v1374 = vunpack.c.l.b16 %v1342
      %v1375 = vpack.c.b16 %v1360, %v1359
      %v1376 = vpack.c.b16 %v1362, %v1361
      %v1377 = vpack.c.b16 %v1364, %v1363
      %v1378 = vpack.c.b16 %v1366, %v1365
      %v1379 = vpack.c.b16 %v1368, %v1367
      %v1380 = vpack.c.b16 %v1370, %v1369
      %v1381 = vpack.c.b16 %v1372, %v1371
      %v1382 = vpack.c.b16 %v1374, %v1373
      %1391 = vmatpush.bf16.msra.mxu0 %v1382
      %1392 = vmatpush.bf16.msra.mxu0 %v1381
      %1393 = vmatpush.bf16.msra.mxu0 %v1380
      %1394 = vmatpush.bf16.msra.mxu0 %v1379
      %1395 = vmatpush.bf16.msra.mxu0 %v1378
      %1396 = vmatpush.bf16.msra.mxu0 %v1377
      %1397 = vmatpush.bf16.msra.mxu0 %v1376
      %1398 = vmatpush.bf16.msra.mxu0 %v1375
      %1399 = vmatmul.bf16.gmra.mxu0 %v1318
      %v1400 = vpop.f32.mrf.mxu0
      %v1401 = vadd.f32 0.0, %v1400
      %v1402 = vpop.f32.mrf.mxu0
      %v1403 = vadd.f32 0.0, %v1402
      %1404 = vmatmul.bf16.gmra.mxu0 %v1319
      %v1405 = vpop.f32.mrf.mxu0
      %v1406 = vadd.f32 0.0, %v1405
      %v1407 = vpop.f32.mrf.mxu0
      %v1408 = vadd.f32 0.0, %v1407
      %1409 = vmatmul.bf16.gmra.mxu0 %v1320
      %v1410 = vpop.f32.mrf.mxu0
      %v1411 = vadd.f32 0.0, %v1410
      %v1412 = vpop.f32.mrf.mxu0
      %v1413 = vadd.f32 0.0, %v1412
      %1414 = vmatmul.bf16.gmra.mxu0 %v1321
      %v1415 = vpop.f32.mrf.mxu0
      %v1416 = vadd.f32 0.0, %v1415
      %v1417 = vpop.f32.mrf.mxu0
      %v1418 = vadd.f32 0.0, %v1417
      %1419 = vmatmul.bf16.gmra.mxu0 %v1322
      %v1420 = vpop.f32.mrf.mxu0
      %v1421 = vadd.f32 0.0, %v1420
      %v1422 = vpop.f32.mrf.mxu0
      %v1423 = vadd.f32 0.0, %v1422
      %1424 = vmatmul.bf16.gmra.mxu0 %v1323
      %v1425 = vpop.f32.mrf.mxu0
      %v1426 = vadd.f32 0.0, %v1425
      %v1427 = vpop.f32.mrf.mxu0
      %v1428 = vadd.f32 0.0, %v1427
      %1429 = vmatmul.bf16.gmra.mxu0 %v1324
      %v1430 = vpop.f32.mrf.mxu0
      %v1431 = vadd.f32 0.0, %v1430
      %v1432 = vpop.f32.mrf.mxu0
      %v1433 = vadd.f32 0.0, %v1432
      %1434 = vmatmul.bf16.gmra.mxu0 %v1325
      %v1435 = vpop.f32.mrf.mxu0
      %v1436 = vadd.f32 0.0, %v1435
      %v1437 = vpop.f32.mrf.mxu0
      %v1438 = vadd.f32 0.0, %v1437
      %1439 = vdwg.mxu0
      %v1440 = vadd.f32 %v1263, %v1401
      %v1441 = vadd.f32 %v1265, %v1403
      %v1442 = vadd.f32 %v1268, %v1406
      %v1443 = vadd.f32 %v1270, %v1408
      %v1444 = vadd.f32 %v1273, %v1411
      %v1445 = vadd.f32 %v1275, %v1413
      %v1446 = vadd.f32 %v1278, %v1416
      %v1447 = vadd.f32 %v1280, %v1418
      %v1448 = vadd.f32 %v1283, %v1421
      %v1449 = vadd.f32 %v1285, %v1423
      %v1450 = vadd.f32 %v1288, %v1426
      %v1451 = vadd.f32 %v1290, %v1428
      %v1452 = vadd.f32 %v1293, %v1431
      %v1453 = vadd.f32 %v1295, %v1433
      %v1454 = vadd.f32 %v1298, %v1436
      %v1455 = vadd.f32 %v1300, %v1438
      %v1456 = vld [vmem:[%s4] sm:$0x1]
      %v1458 = vperm.slane %v1456, 0
      %v1460 = vadd.f32 %v1440, %v1458
      %v1461 = vadd.f32 %v1441, %v1458
      %v1462 = vadd.f32 %v1442, %v1458
      %v1463 = vadd.f32 %v1443, %v1458
      %v1464 = vadd.f32 %v1444, %v1458
      %v1465 = vadd.f32 %v1445, %v1458
      %v1466 = vadd.f32 %v1446, %v1458
      %v1467 = vadd.f32 %v1447, %v1458
      %v1468 = vadd.f32 %v1448, %v1458
      %v1469 = vadd.f32 %v1449, %v1458
      %v1470 = vadd.f32 %v1450, %v1458
      %v1471 = vadd.f32 %v1451, %v1458
      %v1472 = vadd.f32 %v1452, %v1458
      %v1473 = vadd.f32 %v1453, %v1458
      %v1474 = vadd.f32 %v1454, %v1458
      %v1475 = vadd.f32 %v1455, %v1458
      %s1476 = scalar_lea.vmem %s237, %s344
      %v1477 = vld [vmem:[%s1476] sm:$0xff]
      %v1478 = vld [vmem:[%s1476 + $0x8] sm:$0xff]
      %v1479 = vld [vmem:[%s1476 + $0x10] sm:$0xff]
      %v1480 = vld [vmem:[%s1476 + $0x18] sm:$0xff]
      %v1481 = vld [vmem:[%s1476 + $0x20] sm:$0xff]
      %v1482 = vld [vmem:[%s1476 + $0x28] sm:$0xff]
      %v1483 = vld [vmem:[%s1476 + $0x30] sm:$0xff]
      %v1484 = vld [vmem:[%s1476 + $0x38] sm:$0xff]
      %v1485 = vld [vmem:[%s1476 + $0x40] sm:$0xff]
      %v1486 = vld [vmem:[%s1476 + $0x48] sm:$0xff]
      %v1487 = vld [vmem:[%s1476 + $0x50] sm:$0xff]
      %v1488 = vld [vmem:[%s1476 + $0x58] sm:$0xff]
      %v1489 = vld [vmem:[%s1476 + $0x60] sm:$0xff]
      %v1490 = vld [vmem:[%s1476 + $0x68] sm:$0xff]
      %v1491 = vld [vmem:[%s1476 + $0x70] sm:$0xff]
      %v1492 = vld [vmem:[%s1476 + $0x78] sm:$0xff]
      %v1493 = vadd.f32 %v1460, %v1477
      %v1494 = vadd.f32 %v1461, %v1478
      %v1495 = vadd.f32 %v1462, %v1479
      %v1496 = vadd.f32 %v1463, %v1480
      %v1497 = vadd.f32 %v1464, %v1481
      %v1498 = vadd.f32 %v1465, %v1482
      %v1499 = vadd.f32 %v1466, %v1483
      %v1500 = vadd.f32 %v1467, %v1484
      %v1501 = vadd.f32 %v1468, %v1485
      %v1502 = vadd.f32 %v1469, %v1486
      %v1503 = vadd.f32 %v1470, %v1487
      %v1504 = vadd.f32 %v1471, %v1488
      %v1505 = vadd.f32 %v1472, %v1489
      %v1506 = vadd.f32 %v1473, %v1490
      %v1507 = vadd.f32 %v1474, %v1491
      %v1508 = vadd.f32 %v1475, %v1492
      %1509 = vst [vmem:[%s246] sm:$0xff] %v1493
      %1510 = vst [vmem:[%s246 + $0x8] sm:$0xff] %v1494
      %1511 = vst [vmem:[%s246 + $0x10] sm:$0xff] %v1495
      %1512 = vst [vmem:[%s246 + $0x18] sm:$0xff] %v1496
      %1513 = vst [vmem:[%s246 + $0x20] sm:$0xff] %v1497
      %1514 = vst [vmem:[%s246 + $0x28] sm:$0xff] %v1498
      %1515 = vst [vmem:[%s246 + $0x30] sm:$0xff] %v1499
      %1516 = vst [vmem:[%s246 + $0x38] sm:$0xff] %v1500
      %1517 = vst [vmem:[%s246 + $0x40] sm:$0xff] %v1501
      %1518 = vst [vmem:[%s246 + $0x48] sm:$0xff] %v1502
      %1519 = vst [vmem:[%s246 + $0x50] sm:$0xff] %v1503
      %1520 = vst [vmem:[%s246 + $0x58] sm:$0xff] %v1504
      %1521 = vst [vmem:[%s246 + $0x60] sm:$0xff] %v1505
      %1522 = vst [vmem:[%s246 + $0x68] sm:$0xff] %v1506
      %1523 = vst [vmem:[%s246 + $0x70] sm:$0xff] %v1507
      %1524 = vst [vmem:[%s246 + $0x78] sm:$0xff] %v1508
      %s1525 = smul.u32 16, %s21
      %p1526 = scmp.lt.s32.totalorder %s20, 1
      %s1527 = scalar_select %p1526, %s20, 1
      %p1528 = scmp.lt.s32.totalorder %s1525, 31
      %s1529 = scalar_select %p1528, %s1525, 31
      %s1530 = smul.addr %s1527, 32
      %s1531 = sadd.s32 %s1529, %s1530
      %s1532 = smul.addr %s1531, 8
      %s1533 = scalar_lea.vmem %s5, %s1532
      // Predicated region
      $region52: #{resblock1_forward.5} parent=39 // pred_check
        %p1534 = pneg %p158
      $region53: #{resblock1_forward.5} parent=39 // pred_check_branch
        %1536 = sbr.rel (%p1534) target = $region55
      $region54: #{resblock1_forward.5} parent=39 // pred_region
        %s1537 = smul.u32 16, %s21
      $region55: #{resblock1_forward.5} parent=39 // pred_fallthru
        _
    $region40: #{resblock1_forward.5} parent=5 // pred_fallthru
      _
    %p1538 = scmp.le.s32.totalorder 2, %s11
    // Predicated region
    $region56: #{resblock1_forward.5} parent=5 // pred_check
      %p1539 = pneg %p1538
    $region57: #{resblock1_forward.5} parent=5 // pred_check_branch
      %1541 = sbr.rel (%p1539) target = $region59
    $region58: #{resblock1_forward.5} parent=5 // pred_region
      %s1542 = ssub.s32 %s11, 2
      // Predicated region
      $region60: #{resblock1_forward.5} parent=58 // pred_check
        %p1543 = pneg %p164
      $region61: #{resblock1_forward.5} parent=58 // pred_check_branch
        %1545 = sbr.rel (%p1543) target = $region63
      $region62: #{resblock1_forward.5} parent=58 // pred_region
        %s1546 = smul.u32 16, %s23
        %p1547 = scmp.lt.s32.totalorder %s22, 1
        %s1548 = scalar_select %p1547, %s22, 1
        %p1549 = scmp.lt.s32.totalorder %s1546, 31
        %s1550 = scalar_select %p1549, %s1546, 31
        %s1551 = smul.addr %s1548, 32
        %s1552 = sadd.s32 %s1550, %s1551
        %s1553 = smul.addr %s1552, 8
        %s1554 = scalar_lea.vmem %s5, %s1553
      $region63: #{resblock1_forward.5} parent=58 // pred_fallthru
        _
    $region59: #{resblock1_forward.5} parent=5 // pred_fallthru
      _
  $region6: #{resblock1_forward.5} parent=0 // loop_footer
    %s15 = sadd.s32 1, %s11
  $region7: #{resblock1_forward.5} parent=0 // loop_footer_branch
    %10 = sbr.rel target = $region3
  $region8: #{resblock1_forward.5} parent=0 // loop_exit
    _

</llo_original>
